<compile_context>
chip_gen: v6e
topology: v6e:2x2x1
jax: 0.10.0
libtpu: 0.0.40
codegen_flags: <defaults>
</compile_context>

<pallas_src>
import functools

import jax
import jax.numpy as jnp
from jax.experimental import pallas as pl
from jax.experimental.pallas import tpu as pltpu


# bf16 operands for every MXU matmul; accumulation stays f32 via
# preferred_element_type, elementwise math stays f32 (safe on v5e too).
MATMUL_OPERAND_DTYPE = jnp.bfloat16


# ----------------------------------------------------------------------------
# Fused Pallas kernel: the whole M2 forward on one batch tile
# ----------------------------------------------------------------------------
def _m2_fused_kernel(
    # batch-tiled inputs
    x_ref, y_ref, eps_ref,
    # encoder (784->h, h->h x4)
    we0, be0, we1, be1, we2, be2, we3, be3, we4, be4,
    # heads (h->L, h->L, h->10)
    wm, bm, wv, bv, wy, by,
    # latent2, weight rows pre-split into the z part (L,h) and the y part (10,h)
    wl2z, wl2y, bl2,
    # decoder (h->h x4, h->784)
    wd1, bd1, wd2, bd2, wd3, bd3, wd4, bd4, wd5, bd5,
    # outputs
    out_ref, mean_ref, logvar_ref, recy_ref,
    *, use_labels, matmul_dtype):

    def dense(h, w_ref, b_ref):
        # MXU matmul: bf16 operands, f32 accumulation, f32 bias add.
        return jnp.dot(h.astype(matmul_dtype), w_ref[...].astype(matmul_dtype),
                       preferred_element_type=jnp.float32) + b_ref[...]

    # ----- Encoder: 5 x tanh(linear) -------------------------------------
    h = x_ref[...]
    for w_ref, b_ref in ((we0, be0), (we1, be1), (we2, be2), (we3, be3), (we4, be4)):
        h = jnp.tanh(dense(h, w_ref, b_ref))
    latent1 = h

    # ----- Heads (kept as 3 small in-kernel dots on the VMEM-resident
    # latent1; no extra launches or HBM round trips) -----------------------
    mean = jnp.tanh(dense(latent1, wm, bm))
    log_var = jnp.tanh(dense(latent1, wv, bv))
    logits = dense(latent1, wy, by)
    logits = logits - jnp.max(logits, axis=-1, keepdims=True)
    e = jnp.exp(logits)
    rec_y = e * pl.reciprocal(jnp.sum(e, axis=-1, keepdims=True), approx=True)

    # ----- Reparameterization: z = mean + exp(0.5*log_var) * eps ----------
    z = mean + jnp.exp(0.5 * log_var) * eps_ref[...]

    # ----- latent2 = tanh(cat(z, y) @ W + b) without the concat -----------
    yy = y_ref[...] if use_labels else rec_y
    lat2 = jnp.tanh(
        jnp.dot(z.astype(matmul_dtype), wl2z[...].astype(matmul_dtype),
                preferred_element_type=jnp.float32)
        + jnp.dot(yy.astype(matmul_dtype), wl2y[...].astype(matmul_dtype),
                  preferred_element_type=jnp.float32)
        + bl2[...])

    # ----- Decoder: 4 x tanh(linear) + sigmoid(linear) --------------------
    h = lat2
    for w_ref, b_ref in ((wd1, bd1), (wd2, bd2), (wd3, bd3), (wd4, bd4)):
        h = jnp.tanh(dense(h, w_ref, b_ref))
    o = dense(h, wd5, bd5)
    out = pl.reciprocal(1.0 + jnp.exp(-o), approx=True)  # sigmoid, divide on EUP

    out_ref[...] = out.astype(out_ref.dtype)
    mean_ref[...] = mean.astype(mean_ref.dtype)
    logvar_ref[...] = log_var.astype(logvar_ref.dtype)
    recy_ref[...] = rec_y.astype(recy_ref.dtype)


# ----------------------------------------------------------------------------
# Wrapper
# ----------------------------------------------------------------------------
def _pick_batch_tile(B):
    # Largest divisor tile (<=128 rows) so the grid stays sublane-aligned and
    # exposes multiple "parallel" steps for v7x's two TensorCores.
    for t in (128, 64, 32, 16, 8):
        if B % t == 0:
            return t
    return B  # full-extent block is always a legal block shape


def _rep_spec(shape):
    # Weight / bias: full array as one block, same block for every grid step
    # (constant index_map -> no re-DMA between consecutive steps).
    return pl.BlockSpec(shape, lambda i: (0, 0))


def m2_forward(params, x, y, eps):
    """Mirrors M2.forward.

    x: (B, 784) f32, y: (B, 10) one-hot f32 or None,
    eps: (B, latent) f32 (the randn_like draw used by Sampling()).
    Returns (out, mean, log_var, rec_y).
    """
    B, input_dim = x.shape
    L = params["mean"][0].shape[1]
    use_labels = y is not None
    if y is None:
        y = jnp.zeros((B, 10), jnp.float32)

    # Split the latent2 weight rows so the kernel never needs cat((z, y)).
    w_l2, b_l2 = params["latent2"]
    w_l2z, w_l2y = w_l2[:L, :], w_l2[L:, :]

    def wb(name):
        w, b = params[name]
        return [w, b.reshape(1, -1)]

    operands = [x, y, eps]
    for name in ("enc0", "enc1", "enc2", "enc3", "enc4", "mean", "var", "y"):
        operands += wb(name)
    operands += [w_l2z, w_l2y, b_l2.reshape(1, -1)]
    for name in ("dec1", "dec2", "dec3", "dec4", "dec5"):
        operands += wb(name)

    tb = _pick_batch_tile(B)
    grid = (B // tb,)

    def batch_spec(feat):
        return pl.BlockSpec((tb, feat), lambda i: (i, 0))

    in_specs = [batch_spec(input_dim), batch_spec(10), batch_spec(L)]
    in_specs += [_rep_spec(op.shape) for op in operands[3:]]

    out_shape = (jax.ShapeDtypeStruct((B, input_dim), jnp.float32),
                 jax.ShapeDtypeStruct((B, L), jnp.float32),
                 jax.ShapeDtypeStruct((B, L), jnp.float32),
                 jax.ShapeDtypeStruct((B, 10), jnp.float32))
    out_specs = (batch_spec(input_dim), batch_spec(L),
                 batch_spec(L), batch_spec(10))

    kernel = functools.partial(_m2_fused_kernel, use_labels=use_labels,
                               matmul_dtype=MATMUL_OPERAND_DTYPE)
    return pl.pallas_call(
        kernel,
        out_shape=out_shape,
        grid=grid,
        in_specs=in_specs,
        out_specs=out_specs,
        compiler_params=pltpu.CompilerParams(
            dimension_semantics=("parallel",)),
    )(*operands)


# ----------------------------------------------------------------------------
# Parameter construction (deterministic, PyTorch-nn.Linear-style init)
# ----------------------------------------------------------------------------
def make_linear_params(key, in_features, out_features):
    k_w, k_b = jax.random.split(key)
    bound = 1.0 / jnp.sqrt(jnp.float32(in_features))
    # stored as (in, out) == W^T of PyTorch
    w = jax.random.uniform(k_w, (in_features, out_features), jnp.float32,
                           minval=-bound, maxval=bound)
    b = jax.random.uniform(k_b, (out_features,), jnp.float32,
                           minval=-bound, maxval=bound)
    return w, b


def make_m2_params(key, hidden, latent_dimension, input_dim=784):
    names_and_shapes = [
        # encoder
        ("enc0", input_dim, hidden), ("enc1", hidden, hidden),
        ("enc2", hidden, hidden), ("enc3", hidden, hidden), ("enc4", hidden, hidden),
        # heads
        ("mean", hidden, latent_dimension),
        ("var", hidden, latent_dimension),
        ("y", hidden, 10),
        ("latent2", latent_dimension + 10, hidden),
        # decoder
        ("dec1", hidden, hidden), ("dec2", hidden, hidden),
        ("dec3", hidden, hidden), ("dec4", hidden, hidden),
        ("dec5", hidden, input_dim),
    ]
    keys = jax.random.split(key, len(names_and_shapes))
    params = {}
    for k, (name, fin, fout) in zip(keys, names_and_shapes):
        params[name] = make_linear_params(k, fin, fout)
    return params
    # NOTE: M2 also owns a Classifier submodule, but it is never used in
    # M2.forward, so it has no kernel here.


# ----------------------------------------------------------------------------
# Main
# ----------------------------------------------------------------------------
if __name__ == "__main__":
    batch = 256            # larger batch per call -> amortizes launch + fills MXU rows
    hidden = 32
    latent_dimension = 16
    input_dim = 784

    root = jax.random.PRNGKey(0)
    k_params, k_x, k_y, k_eps = jax.random.split(root, 4)

    params = make_m2_params(k_params, hidden, latent_dimension, input_dim)

    x = jax.random.uniform(k_x, (batch, input_dim), jnp.float32)            # "images"
    labels = jax.random.randint(k_y, (batch,), 0, 10)
    y = jax.nn.one_hot(labels, 10, dtype=jnp.float32)                       # one-hot labels
    eps = jax.random.normal(k_eps, (batch, latent_dimension), jnp.float32)  # randn_like

    fwd = jax.jit(m2_forward)
    out, mean, log_var, rec_y = fwd(params, x, y, eps)
    jax.block_until_ready((out, mean, log_var, rec_y))

    assert out.shape == (batch, input_dim)
    assert mean.shape == (batch, latent_dimension)
    assert log_var.shape == (batch, latent_dimension)
    assert rec_y.shape == (batch, 10)
    assert bool(jnp.all(jnp.isfinite(out)))

    print("KERNEL_OK")
</pallas_src>

<mosaic_0001>
module attributes {stable_mosaic.version = 11 : i64} {
  func.func @_m2_fused_kernel(%arg0: i32, %arg1: memref<128x784xf32, #tpu.memory_space<vmem>>, %arg2: memref<128x10xf32, #tpu.memory_space<vmem>>, %arg3: memref<128x16xf32, #tpu.memory_space<vmem>>, %arg4: memref<784x32xf32, #tpu.memory_space<vmem>>, %arg5: memref<1x32xf32, #tpu.memory_space<vmem>>, %arg6: memref<32x32xf32, #tpu.memory_space<vmem>>, %arg7: memref<1x32xf32, #tpu.memory_space<vmem>>, %arg8: memref<32x32xf32, #tpu.memory_space<vmem>>, %arg9: memref<1x32xf32, #tpu.memory_space<vmem>>, %arg10: memref<32x32xf32, #tpu.memory_space<vmem>>, %arg11: memref<1x32xf32, #tpu.memory_space<vmem>>, %arg12: memref<32x32xf32, #tpu.memory_space<vmem>>, %arg13: memref<1x32xf32, #tpu.memory_space<vmem>>, %arg14: memref<32x16xf32, #tpu.memory_space<vmem>>, %arg15: memref<1x16xf32, #tpu.memory_space<vmem>>, %arg16: memref<32x16xf32, #tpu.memory_space<vmem>>, %arg17: memref<1x16xf32, #tpu.memory_space<vmem>>, %arg18: memref<32x10xf32, #tpu.memory_space<vmem>>, %arg19: memref<1x10xf32, #tpu.memory_space<vmem>>, %arg20: memref<16x32xf32, #tpu.memory_space<vmem>>, %arg21: memref<10x32xf32, #tpu.memory_space<vmem>>, %arg22: memref<1x32xf32, #tpu.memory_space<vmem>>, %arg23: memref<32x32xf32, #tpu.memory_space<vmem>>, %arg24: memref<1x32xf32, #tpu.memory_space<vmem>>, %arg25: memref<32x32xf32, #tpu.memory_space<vmem>>, %arg26: memref<1x32xf32, #tpu.memory_space<vmem>>, %arg27: memref<32x32xf32, #tpu.memory_space<vmem>>, %arg28: memref<1x32xf32, #tpu.memory_space<vmem>>, %arg29: memref<32x32xf32, #tpu.memory_space<vmem>>, %arg30: memref<1x32xf32, #tpu.memory_space<vmem>>, %arg31: memref<32x784xf32, #tpu.memory_space<vmem>>, %arg32: memref<1x784xf32, #tpu.memory_space<vmem>>, %arg33: memref<128x784xf32, #tpu.memory_space<vmem>>, %arg34: memref<128x16xf32, #tpu.memory_space<vmem>>, %arg35: memref<128x16xf32, #tpu.memory_space<vmem>>, %arg36: memref<128x10xf32, #tpu.memory_space<vmem>>) attributes {dimension_semantics = [#tpu.dimension_semantics<parallel>], iteration_bounds = array<i64: 2>, scalar_prefetch = 0 : i64, scratch_operands = 0 : i64, tpu.core_type = #tpu.core_type<tc>, window_params = [{transform_indices = @transform_0, window_bounds = array<i64: 128, 784>}, {transform_indices = @transform_1, window_bounds = array<i64: 128, 10>}, {transform_indices = @transform_2, window_bounds = array<i64: 128, 16>}, {pipeline_mode = #tpu.pipeline_mode<synchronous>, transform_indices = @transform_3, window_bounds = array<i64: 784, 32>}, {pipeline_mode = #tpu.pipeline_mode<synchronous>, transform_indices = @transform_4, window_bounds = array<i64: 1, 32>}, {pipeline_mode = #tpu.pipeline_mode<synchronous>, transform_indices = @transform_5, window_bounds = array<i64: 32, 32>}, {pipeline_mode = #tpu.pipeline_mode<synchronous>, transform_indices = @transform_6, window_bounds = array<i64: 1, 32>}, {pipeline_mode = #tpu.pipeline_mode<synchronous>, transform_indices = @transform_7, window_bounds = array<i64: 32, 32>}, {pipeline_mode = #tpu.pipeline_mode<synchronous>, transform_indices = @transform_8, window_bounds = array<i64: 1, 32>}, {pipeline_mode = #tpu.pipeline_mode<synchronous>, transform_indices = @transform_9, window_bounds = array<i64: 32, 32>}, {pipeline_mode = #tpu.pipeline_mode<synchronous>, transform_indices = @transform_10, window_bounds = array<i64: 1, 32>}, {pipeline_mode = #tpu.pipeline_mode<synchronous>, transform_indices = @transform_11, window_bounds = array<i64: 32, 32>}, {pipeline_mode = #tpu.pipeline_mode<synchronous>, transform_indices = @transform_12, window_bounds = array<i64: 1, 32>}, {pipeline_mode = #tpu.pipeline_mode<synchronous>, transform_indices = @transform_13, window_bounds = array<i64: 32, 16>}, {pipeline_mode = #tpu.pipeline_mode<synchronous>, transform_indices = @transform_14, window_bounds = array<i64: 1, 16>}, {pipeline_mode = #tpu.pipeline_mode<synchronous>, transform_indices = @transform_15, window_bounds = array<i64: 32, 16>}, {pipeline_mode = #tpu.pipeline_mode<synchronous>, transform_indices = @transform_16, window_bounds = array<i64: 1, 16>}, {pipeline_mode = #tpu.pipeline_mode<synchronous>, transform_indices = @transform_17, window_bounds = array<i64: 32, 10>}, {pipeline_mode = #tpu.pipeline_mode<synchronous>, transform_indices = @transform_18, window_bounds = array<i64: 1, 10>}, {pipeline_mode = #tpu.pipeline_mode<synchronous>, transform_indices = @transform_19, window_bounds = array<i64: 16, 32>}, {pipeline_mode = #tpu.pipeline_mode<synchronous>, transform_indices = @transform_20, window_bounds = array<i64: 10, 32>}, {pipeline_mode = #tpu.pipeline_mode<synchronous>, transform_indices = @transform_21, window_bounds = array<i64: 1, 32>}, {pipeline_mode = #tpu.pipeline_mode<synchronous>, transform_indices = @transform_22, window_bounds = array<i64: 32, 32>}, {pipeline_mode = #tpu.pipeline_mode<synchronous>, transform_indices = @transform_23, window_bounds = array<i64: 1, 32>}, {pipeline_mode = #tpu.pipeline_mode<synchronous>, transform_indices = @transform_24, window_bounds = array<i64: 32, 32>}, {pipeline_mode = #tpu.pipeline_mode<synchronous>, transform_indices = @transform_25, window_bounds = array<i64: 1, 32>}, {pipeline_mode = #tpu.pipeline_mode<synchronous>, transform_indices = @transform_26, window_bounds = array<i64: 32, 32>}, {pipeline_mode = #tpu.pipeline_mode<synchronous>, transform_indices = @transform_27, window_bounds = array<i64: 1, 32>}, {pipeline_mode = #tpu.pipeline_mode<synchronous>, transform_indices = @transform_28, window_bounds = array<i64: 32, 32>}, {pipeline_mode = #tpu.pipeline_mode<synchronous>, transform_indices = @transform_29, window_bounds = array<i64: 1, 32>}, {pipeline_mode = #tpu.pipeline_mode<synchronous>, transform_indices = @transform_30, window_bounds = array<i64: 32, 784>}, {pipeline_mode = #tpu.pipeline_mode<synchronous>, transform_indices = @transform_31, window_bounds = array<i64: 1, 784>}, {transform_indices = @transform_32, window_bounds = array<i64: 128, 784>}, {transform_indices = @transform_33, window_bounds = array<i64: 128, 16>}, {transform_indices = @transform_34, window_bounds = array<i64: 128, 16>}, {transform_indices = @transform_35, window_bounds = array<i64: 128, 10>}]} {
    %c0 = arith.constant 0 : index
    %c0_0 = arith.constant 0 : index
    %0 = vector.load %arg1[%c0, %c0_0] : memref<128x784xf32, #tpu.memory_space<vmem>>, vector<128x784xf32>
    %1 = arith.truncf %0 : vector<128x784xf32> to vector<128x784xbf16>
    %c0_1 = arith.constant 0 : index
    %c0_2 = arith.constant 0 : index
    %2 = vector.load %arg4[%c0_1, %c0_2] : memref<784x32xf32, #tpu.memory_space<vmem>>, vector<784x32xf32>
    %3 = arith.truncf %2 : vector<784x32xf32> to vector<784x32xbf16>
    %cst = arith.constant dense<0.000000e+00> : vector<128x32xf32>
    %4 = tpu.matmul %1, %3, %cst {dimension_numbers = #tpu.dot_dimension_numbers<[1], [0], [0], [1], [0, 0, 1, 1], [], []>} : vector<128x784xbf16>, vector<784x32xbf16>, vector<128x32xf32> -> vector<128x32xf32>
    %c0_3 = arith.constant 0 : index
    %c0_4 = arith.constant 0 : index
    %5 = vector.load %arg5[%c0_3, %c0_4] : memref<1x32xf32, #tpu.memory_space<vmem>>, vector<1x32xf32>
    %6 = vector.broadcast %5 : vector<1x32xf32> to vector<128x32xf32>
    %7 = arith.addf %4, %6 : vector<128x32xf32>
    %8 = math.tanh %7 : vector<128x32xf32>
    %9 = arith.truncf %8 : vector<128x32xf32> to vector<128x32xbf16>
    %c0_5 = arith.constant 0 : index
    %c0_6 = arith.constant 0 : index
    %10 = vector.load %arg6[%c0_5, %c0_6] : memref<32x32xf32, #tpu.memory_space<vmem>>, vector<32x32xf32>
    %11 = arith.truncf %10 : vector<32x32xf32> to vector<32x32xbf16>
    %cst_7 = arith.constant dense<0.000000e+00> : vector<128x32xf32>
    %12 = tpu.matmul %9, %11, %cst_7 {dimension_numbers = #tpu.dot_dimension_numbers<[1], [0], [0], [1], [0, 0, 1, 1], [], []>} : vector<128x32xbf16>, vector<32x32xbf16>, vector<128x32xf32> -> vector<128x32xf32>
    %c0_8 = arith.constant 0 : index
    %c0_9 = arith.constant 0 : index
    %13 = vector.load %arg7[%c0_8, %c0_9] : memref<1x32xf32, #tpu.memory_space<vmem>>, vector<1x32xf32>
    %14 = vector.broadcast %13 : vector<1x32xf32> to vector<128x32xf32>
    %15 = arith.addf %12, %14 : vector<128x32xf32>
    %16 = math.tanh %15 : vector<128x32xf32>
    %17 = arith.truncf %16 : vector<128x32xf32> to vector<128x32xbf16>
    %c0_10 = arith.constant 0 : index
    %c0_11 = arith.constant 0 : index
    %18 = vector.load %arg8[%c0_10, %c0_11] : memref<32x32xf32, #tpu.memory_space<vmem>>, vector<32x32xf32>
    %19 = arith.truncf %18 : vector<32x32xf32> to vector<32x32xbf16>
    %cst_12 = arith.constant dense<0.000000e+00> : vector<128x32xf32>
    %20 = tpu.matmul %17, %19, %cst_12 {dimension_numbers = #tpu.dot_dimension_numbers<[1], [0], [0], [1], [0, 0, 1, 1], [], []>} : vector<128x32xbf16>, vector<32x32xbf16>, vector<128x32xf32> -> vector<128x32xf32>
    %c0_13 = arith.constant 0 : index
    %c0_14 = arith.constant 0 : index
    %21 = vector.load %arg9[%c0_13, %c0_14] : memref<1x32xf32, #tpu.memory_space<vmem>>, vector<1x32xf32>
    %22 = vector.broadcast %21 : vector<1x32xf32> to vector<128x32xf32>
    %23 = arith.addf %20, %22 : vector<128x32xf32>
    %24 = math.tanh %23 : vector<128x32xf32>
    %25 = arith.truncf %24 : vector<128x32xf32> to vector<128x32xbf16>
    %c0_15 = arith.constant 0 : index
    %c0_16 = arith.constant 0 : index
    %26 = vector.load %arg10[%c0_15, %c0_16] : memref<32x32xf32, #tpu.memory_space<vmem>>, vector<32x32xf32>
    %27 = arith.truncf %26 : vector<32x32xf32> to vector<32x32xbf16>
    %cst_17 = arith.constant dense<0.000000e+00> : vector<128x32xf32>
    %28 = tpu.matmul %25, %27, %cst_17 {dimension_numbers = #tpu.dot_dimension_numbers<[1], [0], [0], [1], [0, 0, 1, 1], [], []>} : vector<128x32xbf16>, vector<32x32xbf16>, vector<128x32xf32> -> vector<128x32xf32>
    %c0_18 = arith.constant 0 : index
    %c0_19 = arith.constant 0 : index
    %29 = vector.load %arg11[%c0_18, %c0_19] : memref<1x32xf32, #tpu.memory_space<vmem>>, vector<1x32xf32>
    %30 = vector.broadcast %29 : vector<1x32xf32> to vector<128x32xf32>
    %31 = arith.addf %28, %30 : vector<128x32xf32>
    %32 = math.tanh %31 : vector<128x32xf32>
    %33 = arith.truncf %32 : vector<128x32xf32> to vector<128x32xbf16>
    %c0_20 = arith.constant 0 : index
    %c0_21 = arith.constant 0 : index
    %34 = vector.load %arg12[%c0_20, %c0_21] : memref<32x32xf32, #tpu.memory_space<vmem>>, vector<32x32xf32>
    %35 = arith.truncf %34 : vector<32x32xf32> to vector<32x32xbf16>
    %cst_22 = arith.constant dense<0.000000e+00> : vector<128x32xf32>
    %36 = tpu.matmul %33, %35, %cst_22 {dimension_numbers = #tpu.dot_dimension_numbers<[1], [0], [0], [1], [0, 0, 1, 1], [], []>} : vector<128x32xbf16>, vector<32x32xbf16>, vector<128x32xf32> -> vector<128x32xf32>
    %c0_23 = arith.constant 0 : index
    %c0_24 = arith.constant 0 : index
    %37 = vector.load %arg13[%c0_23, %c0_24] : memref<1x32xf32, #tpu.memory_space<vmem>>, vector<1x32xf32>
    %38 = vector.broadcast %37 : vector<1x32xf32> to vector<128x32xf32>
    %39 = arith.addf %36, %38 : vector<128x32xf32>
    %40 = math.tanh %39 : vector<128x32xf32>
    %41 = arith.truncf %40 : vector<128x32xf32> to vector<128x32xbf16>
    %c0_25 = arith.constant 0 : index
    %c0_26 = arith.constant 0 : index
    %42 = vector.load %arg14[%c0_25, %c0_26] : memref<32x16xf32, #tpu.memory_space<vmem>>, vector<32x16xf32>
    %43 = arith.truncf %42 : vector<32x16xf32> to vector<32x16xbf16>
    %cst_27 = arith.constant dense<0.000000e+00> : vector<128x16xf32>
    %44 = tpu.matmul %41, %43, %cst_27 {dimension_numbers = #tpu.dot_dimension_numbers<[1], [0], [0], [1], [0, 0, 1, 1], [], []>} : vector<128x32xbf16>, vector<32x16xbf16>, vector<128x16xf32> -> vector<128x16xf32>
    %c0_28 = arith.constant 0 : index
    %c0_29 = arith.constant 0 : index
    %45 = vector.load %arg15[%c0_28, %c0_29] : memref<1x16xf32, #tpu.memory_space<vmem>>, vector<1x16xf32>
    %46 = vector.broadcast %45 : vector<1x16xf32> to vector<128x16xf32>
    %47 = arith.addf %44, %46 : vector<128x16xf32>
    %48 = math.tanh %47 : vector<128x16xf32>
    %49 = arith.truncf %40 : vector<128x32xf32> to vector<128x32xbf16>
    %c0_30 = arith.constant 0 : index
    %c0_31 = arith.constant 0 : index
    %50 = vector.load %arg16[%c0_30, %c0_31] : memref<32x16xf32, #tpu.memory_space<vmem>>, vector<32x16xf32>
    %51 = arith.truncf %50 : vector<32x16xf32> to vector<32x16xbf16>
    %cst_32 = arith.constant dense<0.000000e+00> : vector<128x16xf32>
    %52 = tpu.matmul %49, %51, %cst_32 {dimension_numbers = #tpu.dot_dimension_numbers<[1], [0], [0], [1], [0, 0, 1, 1], [], []>} : vector<128x32xbf16>, vector<32x16xbf16>, vector<128x16xf32> -> vector<128x16xf32>
    %c0_33 = arith.constant 0 : index
    %c0_34 = arith.constant 0 : index
    %53 = vector.load %arg17[%c0_33, %c0_34] : memref<1x16xf32, #tpu.memory_space<vmem>>, vector<1x16xf32>
    %54 = vector.broadcast %53 : vector<1x16xf32> to vector<128x16xf32>
    %55 = arith.addf %52, %54 : vector<128x16xf32>
    %56 = math.tanh %55 : vector<128x16xf32>
    %57 = arith.truncf %40 : vector<128x32xf32> to vector<128x32xbf16>
    %c0_35 = arith.constant 0 : index
    %c0_36 = arith.constant 0 : index
    %58 = vector.load %arg18[%c0_35, %c0_36] : memref<32x10xf32, #tpu.memory_space<vmem>>, vector<32x10xf32>
    %59 = arith.truncf %58 : vector<32x10xf32> to vector<32x10xbf16>
    %cst_37 = arith.constant dense<0.000000e+00> : vector<128x10xf32>
    %60 = tpu.matmul %57, %59, %cst_37 {dimension_numbers = #tpu.dot_dimension_numbers<[1], [0], [0], [1], [0, 0, 1, 1], [], []>} : vector<128x32xbf16>, vector<32x10xbf16>, vector<128x10xf32> -> vector<128x10xf32>
    %c0_38 = arith.constant 0 : index
    %c0_39 = arith.constant 0 : index
    %61 = vector.load %arg19[%c0_38, %c0_39] : memref<1x10xf32, #tpu.memory_space<vmem>>, vector<1x10xf32>
    %62 = vector.broadcast %61 : vector<1x10xf32> to vector<128x10xf32>
    %63 = arith.addf %60, %62 : vector<128x10xf32>
    %cst_40 = arith.constant dense<0xFF800000> : vector<128xf32>
    %64 = vector.multi_reduction <maximumf>, %63, %cst_40 [1] : vector<128x10xf32> to vector<128xf32>
    %65 = vector.shape_cast %64 : vector<128xf32> to vector<128x1xf32>
    %66 = vector.broadcast %65 : vector<128x1xf32> to vector<128x10xf32>
    %67 = arith.subf %63, %66 : vector<128x10xf32>
    %68 = math.exp %67 : vector<128x10xf32>
    %cst_41 = arith.constant dense<0.000000e+00> : vector<128xf32>
    %69 = vector.multi_reduction <add>, %68, %cst_41 [1] : vector<128x10xf32> to vector<128xf32>
    %70 = vector.shape_cast %69 : vector<128xf32> to vector<128x1xf32>
    %71 = tpu.reciprocal %70 {approx = true} : vector<128x1xf32> -> vector<128x1xf32>
    %72 = vector.broadcast %71 : vector<128x1xf32> to vector<128x10xf32>
    %73 = arith.mulf %68, %72 : vector<128x10xf32>
    %cst_42 = arith.constant 5.000000e-01 : f32
    %74 = vector.broadcast %cst_42 : f32 to vector<128x16xf32>
    %75 = arith.mulf %74, %56 : vector<128x16xf32>
    %76 = math.exp %75 : vector<128x16xf32>
    %c0_43 = arith.constant 0 : index
    %c0_44 = arith.constant 0 : index
    %77 = vector.load %arg3[%c0_43, %c0_44] : memref<128x16xf32, #tpu.memory_space<vmem>>, vector<128x16xf32>
    %78 = arith.mulf %76, %77 : vector<128x16xf32>
    %79 = arith.addf %48, %78 : vector<128x16xf32>
    %c0_45 = arith.constant 0 : index
    %c0_46 = arith.constant 0 : index
    %80 = vector.load %arg2[%c0_45, %c0_46] : memref<128x10xf32, #tpu.memory_space<vmem>>, vector<128x10xf32>
    %81 = arith.truncf %79 : vector<128x16xf32> to vector<128x16xbf16>
    %c0_47 = arith.constant 0 : index
    %c0_48 = arith.constant 0 : index
    %82 = vector.load %arg20[%c0_47, %c0_48] : memref<16x32xf32, #tpu.memory_space<vmem>>, vector<16x32xf32>
    %83 = arith.truncf %82 : vector<16x32xf32> to vector<16x32xbf16>
    %cst_49 = arith.constant dense<0.000000e+00> : vector<128x32xf32>
    %84 = tpu.matmul %81, %83, %cst_49 {dimension_numbers = #tpu.dot_dimension_numbers<[1], [0], [0], [1], [0, 0, 1, 1], [], []>} : vector<128x16xbf16>, vector<16x32xbf16>, vector<128x32xf32> -> vector<128x32xf32>
    %85 = arith.truncf %80 : vector<128x10xf32> to vector<128x10xbf16>
    %c0_50 = arith.constant 0 : index
    %c0_51 = arith.constant 0 : index
    %86 = vector.load %arg21[%c0_50, %c0_51] : memref<10x32xf32, #tpu.memory_space<vmem>>, vector<10x32xf32>
    %87 = arith.truncf %86 : vector<10x32xf32> to vector<10x32xbf16>
    %cst_52 = arith.constant dense<0.000000e+00> : vector<128x32xf32>
    %88 = tpu.matmul %85, %87, %cst_52 {dimension_numbers = #tpu.dot_dimension_numbers<[1], [0], [0], [1], [0, 0, 1, 1], [], []>} : vector<128x10xbf16>, vector<10x32xbf16>, vector<128x32xf32> -> vector<128x32xf32>
    %89 = arith.addf %84, %88 : vector<128x32xf32>
    %c0_53 = arith.constant 0 : index
    %c0_54 = arith.constant 0 : index
    %90 = vector.load %arg22[%c0_53, %c0_54] : memref<1x32xf32, #tpu.memory_space<vmem>>, vector<1x32xf32>
    %91 = vector.broadcast %90 : vector<1x32xf32> to vector<128x32xf32>
    %92 = arith.addf %89, %91 : vector<128x32xf32>
    %93 = math.tanh %92 : vector<128x32xf32>
    %94 = arith.truncf %93 : vector<128x32xf32> to vector<128x32xbf16>
    %c0_55 = arith.constant 0 : index
    %c0_56 = arith.constant 0 : index
    %95 = vector.load %arg23[%c0_55, %c0_56] : memref<32x32xf32, #tpu.memory_space<vmem>>, vector<32x32xf32>
    %96 = arith.truncf %95 : vector<32x32xf32> to vector<32x32xbf16>
    %cst_57 = arith.constant dense<0.000000e+00> : vector<128x32xf32>
    %97 = tpu.matmul %94, %96, %cst_57 {dimension_numbers = #tpu.dot_dimension_numbers<[1], [0], [0], [1], [0, 0, 1, 1], [], []>} : vector<128x32xbf16>, vector<32x32xbf16>, vector<128x32xf32> -> vector<128x32xf32>
    %c0_58 = arith.constant 0 : index
    %c0_59 = arith.constant 0 : index
    %98 = vector.load %arg24[%c0_58, %c0_59] : memref<1x32xf32, #tpu.memory_space<vmem>>, vector<1x32xf32>
    %99 = vector.broadcast %98 : vector<1x32xf32> to vector<128x32xf32>
    %100 = arith.addf %97, %99 : vector<128x32xf32>
    %101 = math.tanh %100 : vector<128x32xf32>
    %102 = arith.truncf %101 : vector<128x32xf32> to vector<128x32xbf16>
    %c0_60 = arith.constant 0 : index
    %c0_61 = arith.constant 0 : index
    %103 = vector.load %arg25[%c0_60, %c0_61] : memref<32x32xf32, #tpu.memory_space<vmem>>, vector<32x32xf32>
    %104 = arith.truncf %103 : vector<32x32xf32> to vector<32x32xbf16>
    %cst_62 = arith.constant dense<0.000000e+00> : vector<128x32xf32>
    %105 = tpu.matmul %102, %104, %cst_62 {dimension_numbers = #tpu.dot_dimension_numbers<[1], [0], [0], [1], [0, 0, 1, 1], [], []>} : vector<128x32xbf16>, vector<32x32xbf16>, vector<128x32xf32> -> vector<128x32xf32>
    %c0_63 = arith.constant 0 : index
    %c0_64 = arith.constant 0 : index
    %106 = vector.load %arg26[%c0_63, %c0_64] : memref<1x32xf32, #tpu.memory_space<vmem>>, vector<1x32xf32>
    %107 = vector.broadcast %106 : vector<1x32xf32> to vector<128x32xf32>
    %108 = arith.addf %105, %107 : vector<128x32xf32>
    %109 = math.tanh %108 : vector<128x32xf32>
    %110 = arith.truncf %109 : vector<128x32xf32> to vector<128x32xbf16>
    %c0_65 = arith.constant 0 : index
    %c0_66 = arith.constant 0 : index
    %111 = vector.load %arg27[%c0_65, %c0_66] : memref<32x32xf32, #tpu.memory_space<vmem>>, vector<32x32xf32>
    %112 = arith.truncf %111 : vector<32x32xf32> to vector<32x32xbf16>
    %cst_67 = arith.constant dense<0.000000e+00> : vector<128x32xf32>
    %113 = tpu.matmul %110, %112, %cst_67 {dimension_numbers = #tpu.dot_dimension_numbers<[1], [0], [0], [1], [0, 0, 1, 1], [], []>} : vector<128x32xbf16>, vector<32x32xbf16>, vector<128x32xf32> -> vector<128x32xf32>
    %c0_68 = arith.constant 0 : index
    %c0_69 = arith.constant 0 : index
    %114 = vector.load %arg28[%c0_68, %c0_69] : memref<1x32xf32, #tpu.memory_space<vmem>>, vector<1x32xf32>
    %115 = vector.broadcast %114 : vector<1x32xf32> to vector<128x32xf32>
    %116 = arith.addf %113, %115 : vector<128x32xf32>
    %117 = math.tanh %116 : vector<128x32xf32>
    %118 = arith.truncf %117 : vector<128x32xf32> to vector<128x32xbf16>
    %c0_70 = arith.constant 0 : index
    %c0_71 = arith.constant 0 : index
    %119 = vector.load %arg29[%c0_70, %c0_71] : memref<32x32xf32, #tpu.memory_space<vmem>>, vector<32x32xf32>
    %120 = arith.truncf %119 : vector<32x32xf32> to vector<32x32xbf16>
    %cst_72 = arith.constant dense<0.000000e+00> : vector<128x32xf32>
    %121 = tpu.matmul %118, %120, %cst_72 {dimension_numbers = #tpu.dot_dimension_numbers<[1], [0], [0], [1], [0, 0, 1, 1], [], []>} : vector<128x32xbf16>, vector<32x32xbf16>, vector<128x32xf32> -> vector<128x32xf32>
    %c0_73 = arith.constant 0 : index
    %c0_74 = arith.constant 0 : index
    %122 = vector.load %arg30[%c0_73, %c0_74] : memref<1x32xf32, #tpu.memory_space<vmem>>, vector<1x32xf32>
    %123 = vector.broadcast %122 : vector<1x32xf32> to vector<128x32xf32>
    %124 = arith.addf %121, %123 : vector<128x32xf32>
    %125 = math.tanh %124 : vector<128x32xf32>
    %126 = arith.truncf %125 : vector<128x32xf32> to vector<128x32xbf16>
    %c0_75 = arith.constant 0 : index
    %c0_76 = arith.constant 0 : index
    %127 = vector.load %arg31[%c0_75, %c0_76] : memref<32x784xf32, #tpu.memory_space<vmem>>, vector<32x784xf32>
    %128 = arith.truncf %127 : vector<32x784xf32> to vector<32x784xbf16>
    %cst_77 = arith.constant dense<0.000000e+00> : vector<128x784xf32>
    %129 = tpu.matmul %126, %128, %cst_77 {dimension_numbers = #tpu.dot_dimension_numbers<[1], [0], [0], [1], [0, 0, 1, 1], [], []>} : vector<128x32xbf16>, vector<32x784xbf16>, vector<128x784xf32> -> vector<128x784xf32>
    %c0_78 = arith.constant 0 : index
    %c0_79 = arith.constant 0 : index
    %130 = vector.load %arg32[%c0_78, %c0_79] : memref<1x784xf32, #tpu.memory_space<vmem>>, vector<1x784xf32>
    %131 = vector.broadcast %130 : vector<1x784xf32> to vector<128x784xf32>
    %132 = arith.addf %129, %131 : vector<128x784xf32>
    %cst_80 = arith.constant 0.000000e+00 : f32
    %133 = vector.broadcast %cst_80 : f32 to vector<128x784xf32>
    %134 = arith.subf %133, %132 : vector<128x784xf32>
    %135 = math.exp %134 : vector<128x784xf32>
    %cst_81 = arith.constant 1.000000e+00 : f32
    %136 = vector.broadcast %cst_81 : f32 to vector<128x784xf32>
    %137 = arith.addf %136, %135 : vector<128x784xf32>
    %138 = tpu.reciprocal %137 {approx = true} : vector<128x784xf32> -> vector<128x784xf32>
    %c0_82 = arith.constant 0 : index
    %c0_83 = arith.constant 0 : index
    %139 = vector.load %arg33[%c0_82, %c0_83] : memref<128x784xf32, #tpu.memory_space<vmem>>, vector<128x784xf32>
    tpu.vector_store %arg33[%c0_82, %c0_83], %138 {strides = array<i32>} : memref<128x784xf32, #tpu.memory_space<vmem>>, vector<128x784xf32>,
    %c0_84 = arith.constant 0 : index
    %c0_85 = arith.constant 0 : index
    %140 = vector.load %arg34[%c0_84, %c0_85] : memref<128x16xf32, #tpu.memory_space<vmem>>, vector<128x16xf32>
    tpu.vector_store %arg34[%c0_84, %c0_85], %48 {strides = array<i32>} : memref<128x16xf32, #tpu.memory_space<vmem>>, vector<128x16xf32>,
    %c0_86 = arith.constant 0 : index
    %c0_87 = arith.constant 0 : index
    %141 = vector.load %arg35[%c0_86, %c0_87] : memref<128x16xf32, #tpu.memory_space<vmem>>, vector<128x16xf32>
    tpu.vector_store %arg35[%c0_86, %c0_87], %56 {strides = array<i32>} : memref<128x16xf32, #tpu.memory_space<vmem>>, vector<128x16xf32>,
    %c0_88 = arith.constant 0 : index
    %c0_89 = arith.constant 0 : index
    %142 = vector.load %arg36[%c0_88, %c0_89] : memref<128x10xf32, #tpu.memory_space<vmem>>, vector<128x10xf32>
    tpu.vector_store %arg36[%c0_88, %c0_89], %73 {strides = array<i32>} : memref<128x10xf32, #tpu.memory_space<vmem>>, vector<128x10xf32>,
    return
  }
  func.func @transform_0(%arg0: i32) -> (i32, i32) {
    %c0_i32 = arith.constant 0 : i32
    %c0_i32_0 = arith.constant 0 : i32
    return %arg0, %c0_i32 : i32, i32
  }
  func.func @transform_1(%arg0: i32) -> (i32, i32) {
    %c0_i32 = arith.constant 0 : i32
    %c0_i32_0 = arith.constant 0 : i32
    return %arg0, %c0_i32 : i32, i32
  }
  func.func @transform_2(%arg0: i32) -> (i32, i32) {
    %c0_i32 = arith.constant 0 : i32
    %c0_i32_0 = arith.constant 0 : i32
    return %arg0, %c0_i32 : i32, i32
  }
  func.func @transform_3(%arg0: i32) -> (i32, i32) {
    %c0_i32 = arith.constant 0 : i32
    %c0_i32_0 = arith.constant 0 : i32
    %c0_i32_1 = arith.constant 0 : i32
    return %c0_i32, %c0_i32_0 : i32, i32
  }
  func.func @transform_4(%arg0: i32) -> (i32, i32) {
    %c0_i32 = arith.constant 0 : i32
    %c0_i32_0 = arith.constant 0 : i32
    %c0_i32_1 = arith.constant 0 : i32
    return %c0_i32, %c0_i32_0 : i32, i32
  }
  func.func @transform_5(%arg0: i32) -> (i32, i32) {
    %c0_i32 = arith.constant 0 : i32
    %c0_i32_0 = arith.constant 0 : i32
    %c0_i32_1 = arith.constant 0 : i32
    return %c0_i32, %c0_i32_0 : i32, i32
  }
  func.func @transform_6(%arg0: i32) -> (i32, i32) {
    %c0_i32 = arith.constant 0 : i32
    %c0_i32_0 = arith.constant 0 : i32
    %c0_i32_1 = arith.constant 0 : i32
    return %c0_i32, %c0_i32_0 : i32, i32
  }
  func.func @transform_7(%arg0: i32) -> (i32, i32) {
    %c0_i32 = arith.constant 0 : i32
    %c0_i32_0 = arith.constant 0 : i32
    %c0_i32_1 = arith.constant 0 : i32
    return %c0_i32, %c0_i32_0 : i32, i32
  }
  func.func @transform_8(%arg0: i32) -> (i32, i32) {
    %c0_i32 = arith.constant 0 : i32
    %c0_i32_0 = arith.constant 0 : i32
    %c0_i32_1 = arith.constant 0 : i32
    return %c0_i32, %c0_i32_0 : i32, i32
  }
  func.func @transform_9(%arg0: i32) -> (i32, i32) {
    %c0_i32 = arith.constant 0 : i32
    %c0_i32_0 = arith.constant 0 : i32
    %c0_i32_1 = arith.constant 0 : i32
    return %c0_i32, %c0_i32_0 : i32, i32
  }
  func.func @transform_10(%arg0: i32) -> (i32, i32) {
    %c0_i32 = arith.constant 0 : i32
    %c0_i32_0 = arith.constant 0 : i32
    %c0_i32_1 = arith.constant 0 : i32
    return %c0_i32, %c0_i32_0 : i32, i32
  }
  func.func @transform_11(%arg0: i32) -> (i32, i32) {
    %c0_i32 = arith.constant 0 : i32
    %c0_i32_0 = arith.constant 0 : i32
    %c0_i32_1 = arith.constant 0 : i32
    return %c0_i32, %c0_i32_0 : i32, i32
  }
  func.func @transform_12(%arg0: i32) -> (i32, i32) {
    %c0_i32 = arith.constant 0 : i32
    %c0_i32_0 = arith.constant 0 : i32
    %c0_i32_1 = arith.constant 0 : i32
    return %c0_i32, %c0_i32_0 : i32, i32
  }
  func.func @transform_13(%arg0: i32) -> (i32, i32) {
    %c0_i32 = arith.constant 0 : i32
    %c0_i32_0 = arith.constant 0 : i32
    %c0_i32_1 = arith.constant 0 : i32
    return %c0_i32, %c0_i32_0 : i32, i32
  }
  func.func @transform_14(%arg0: i32) -> (i32, i32) {
    %c0_i32 = arith.constant 0 : i32
    %c0_i32_0 = arith.constant 0 : i32
    %c0_i32_1 = arith.constant 0 : i32
    return %c0_i32, %c0_i32_0 : i32, i32
  }
  func.func @transform_15(%arg0: i32) -> (i32, i32) {
    %c0_i32 = arith.constant 0 : i32
    %c0_i32_0 = arith.constant 0 : i32
    %c0_i32_1 = arith.constant 0 : i32
    return %c0_i32, %c0_i32_0 : i32, i32
  }
  func.func @transform_16(%arg0: i32) -> (i32, i32) {
    %c0_i32 = arith.constant 0 : i32
    %c0_i32_0 = arith.constant 0 : i32
    %c0_i32_1 = arith.constant 0 : i32
    return %c0_i32, %c0_i32_0 : i32, i32
  }
  func.func @transform_17(%arg0: i32) -> (i32, i32) {
    %c0_i32 = arith.constant 0 : i32
    %c0_i32_0 = arith.constant 0 : i32
    %c0_i32_1 = arith.constant 0 : i32
    return %c0_i32, %c0_i32_0 : i32, i32
  }
  func.func @transform_18(%arg0: i32) -> (i32, i32) {
    %c0_i32 = arith.constant 0 : i32
    %c0_i32_0 = arith.constant 0 : i32
    %c0_i32_1 = arith.constant 0 : i32
    return %c0_i32, %c0_i32_0 : i32, i32
  }
  func.func @transform_19(%arg0: i32) -> (i32, i32) {
    %c0_i32 = arith.constant 0 : i32
    %c0_i32_0 = arith.constant 0 : i32
    %c0_i32_1 = arith.constant 0 : i32
    return %c0_i32, %c0_i32_0 : i32, i32
  }
  func.func @transform_20(%arg0: i32) -> (i32, i32) {
    %c0_i32 = arith.constant 0 : i32
    %c0_i32_0 = arith.constant 0 : i32
    %c0_i32_1 = arith.constant 0 : i32
    return %c0_i32, %c0_i32_0 : i32, i32
  }
  func.func @transform_21(%arg0: i32) -> (i32, i32) {
    %c0_i32 = arith.constant 0 : i32
    %c0_i32_0 = arith.constant 0 : i32
    %c0_i32_1 = arith.constant 0 : i32
    return %c0_i32, %c0_i32_0 : i32, i32
  }
  func.func @transform_22(%arg0: i32) -> (i32, i32) {
    %c0_i32 = arith.constant 0 : i32
    %c0_i32_0 = arith.constant 0 : i32
    %c0_i32_1 = arith.constant 0 : i32
    return %c0_i32, %c0_i32_0 : i32, i32
  }
  func.func @transform_23(%arg0: i32) -> (i32, i32) {
    %c0_i32 = arith.constant 0 : i32
    %c0_i32_0 = arith.constant 0 : i32
    %c0_i32_1 = arith.constant 0 : i32
    return %c0_i32, %c0_i32_0 : i32, i32
  }
  func.func @transform_24(%arg0: i32) -> (i32, i32) {
    %c0_i32 = arith.constant 0 : i32
    %c0_i32_0 = arith.constant 0 : i32
    %c0_i32_1 = arith.constant 0 : i32
    return %c0_i32, %c0_i32_0 : i32, i32
  }
  func.func @transform_25(%arg0: i32) -> (i32, i32) {
    %c0_i32 = arith.constant 0 : i32
    %c0_i32_0 = arith.constant 0 : i32
    %c0_i32_1 = arith.constant 0 : i32
    return %c0_i32, %c0_i32_0 : i32, i32
  }
  func.func @transform_26(%arg0: i32) -> (i32, i32) {
    %c0_i32 = arith.constant 0 : i32
    %c0_i32_0 = arith.constant 0 : i32
    %c0_i32_1 = arith.constant 0 : i32
    return %c0_i32, %c0_i32_0 : i32, i32
  }
  func.func @transform_27(%arg0: i32) -> (i32, i32) {
    %c0_i32 = arith.constant 0 : i32
    %c0_i32_0 = arith.constant 0 : i32
    %c0_i32_1 = arith.constant 0 : i32
    return %c0_i32, %c0_i32_0 : i32, i32
  }
  func.func @transform_28(%arg0: i32) -> (i32, i32) {
    %c0_i32 = arith.constant 0 : i32
    %c0_i32_0 = arith.constant 0 : i32
    %c0_i32_1 = arith.constant 0 : i32
    return %c0_i32, %c0_i32_0 : i32, i32
  }
  func.func @transform_29(%arg0: i32) -> (i32, i32) {
    %c0_i32 = arith.constant 0 : i32
    %c0_i32_0 = arith.constant 0 : i32
    %c0_i32_1 = arith.constant 0 : i32
    return %c0_i32, %c0_i32_0 : i32, i32
  }
  func.func @transform_30(%arg0: i32) -> (i32, i32) {
    %c0_i32 = arith.constant 0 : i32
    %c0_i32_0 = arith.constant 0 : i32
    %c0_i32_1 = arith.constant 0 : i32
    return %c0_i32, %c0_i32_0 : i32, i32
  }
  func.func @transform_31(%arg0: i32) -> (i32, i32) {
    %c0_i32 = arith.constant 0 : i32
    %c0_i32_0 = arith.constant 0 : i32
    %c0_i32_1 = arith.constant 0 : i32
    return %c0_i32, %c0_i32_0 : i32, i32
  }
  func.func @transform_32(%arg0: i32) -> (i32, i32) {
    %c0_i32 = arith.constant 0 : i32
    %c0_i32_0 = arith.constant 0 : i32
    return %arg0, %c0_i32 : i32, i32
  }
  func.func @transform_33(%arg0: i32) -> (i32, i32) {
    %c0_i32 = arith.constant 0 : i32
    %c0_i32_0 = arith.constant 0 : i32
    return %arg0, %c0_i32 : i32, i32
  }
  func.func @transform_34(%arg0: i32) -> (i32, i32) {
    %c0_i32 = arith.constant 0 : i32
    %c0_i32_0 = arith.constant 0 : i32
    return %arg0, %c0_i32 : i32, i32
  }
  func.func @transform_35(%arg0: i32) -> (i32, i32) {
    %c0_i32 = arith.constant 0 : i32
    %c0_i32_0 = arith.constant 0 : i32
    return %arg0, %c0_i32 : i32, i32
  }
}

</mosaic_0001>

<llo_original>
// kernel: m2_forward.1
$region0: #{m2_forward.1}
  #allocation0 [shape = 'u32[]', space=smem, size = 0x4, offset = 0x4, fixed_abs, tag = 'smem constant byte address 0x4 - core index']
  #allocation1 [shape = 'u32[144,128]{1,0:T(1,128)}', space=vmem, size = 0x12000, scoped, tag = 'internal scratch']
  %s0 = inlined_call_operand.smem [shape: u32[36], index: -1, kind: input, shape index: {}]
  %s1 = sld [smem:[%s0]]
  %s2 = scalar_lea.smem %s0, 1
  %s3 = sld [smem:[%s2]]
  %s4 = scalar_lea.smem %s0, 2
  %s5 = sld [smem:[%s4]]
  %s6 = scalar_lea.smem %s0, 3
  %s7 = sld [smem:[%s6]]
  %s8 = scalar_lea.smem %s0, 4
  %s9 = sld [smem:[%s8]]
  %s10 = scalar_lea.smem %s0, 5
  %s11 = sld [smem:[%s10]]
  %s12 = scalar_lea.smem %s0, 6
  %s13 = sld [smem:[%s12]]
  %s14 = scalar_lea.smem %s0, 7
  %s15 = sld [smem:[%s14]]
  %s16 = scalar_lea.smem %s0, 8
  %s17 = sld [smem:[%s16]]
  %s18 = scalar_lea.smem %s0, 9
  %s19 = sld [smem:[%s18]]
  %s20 = scalar_lea.smem %s0, 10
  %s21 = sld [smem:[%s20]]
  %s22 = scalar_lea.smem %s0, 11
  %s23 = sld [smem:[%s22]]
  %s24 = scalar_lea.smem %s0, 12
  %s25 = sld [smem:[%s24]]
  %s26 = scalar_lea.smem %s0, 13
  %s27 = sld [smem:[%s26]]
  %s28 = scalar_lea.smem %s0, 14
  %s29 = sld [smem:[%s28]]
  %s30 = scalar_lea.smem %s0, 15
  %s31 = sld [smem:[%s30]]
  %s32 = scalar_lea.smem %s0, 16
  %s33 = sld [smem:[%s32]]
  %s34 = scalar_lea.smem %s0, 17
  %s35 = sld [smem:[%s34]]
  %s36 = scalar_lea.smem %s0, 18
  %s37 = sld [smem:[%s36]]
  %s38 = scalar_lea.smem %s0, 19
  %s39 = sld [smem:[%s38]]
  %s40 = scalar_lea.smem %s0, 20
  %s41 = sld [smem:[%s40]]
  %s42 = scalar_lea.smem %s0, 21
  %s43 = sld [smem:[%s42]]
  %s44 = scalar_lea.smem %s0, 22
  %s45 = sld [smem:[%s44]]
  %s46 = scalar_lea.smem %s0, 23
  %s47 = sld [smem:[%s46]]
  %s48 = scalar_lea.smem %s0, 24
  %s49 = sld [smem:[%s48]]
  %s50 = scalar_lea.smem %s0, 25
  %s51 = sld [smem:[%s50]]
  %s52 = scalar_lea.smem %s0, 26
  %s53 = sld [smem:[%s52]]
  %s54 = scalar_lea.smem %s0, 27
  %s55 = sld [smem:[%s54]]
  %s56 = scalar_lea.smem %s0, 28
  %s57 = sld [smem:[%s56]]
  %s58 = scalar_lea.smem %s0, 29
  %s59 = sld [smem:[%s58]]
  %s60 = scalar_lea.smem %s0, 30
  %s61 = sld [smem:[%s60]]
  %s62 = scalar_lea.smem %s0, 31
  %s63 = sld [smem:[%s62]]
  %s64 = scalar_lea.smem %s0, 32
  %s65 = sld [smem:[%s64]]
  %s66 = scalar_lea.smem %s0, 33
  %s67 = sld [smem:[%s66]]
  %s68 = scalar_lea.smem %s0, 34
  %s69 = sld [smem:[%s68]]
  %s70 = scalar_lea.smem %s0, 35
  %s71 = sld [smem:[%s70]]
  %72 = xla_tuple %s65, %s67, %s69, %s71
  %s73 = sld [smem:[#allocation0]]
  $region185: #{m2_forward.1} parent=0
    _
  %s75 = ssub.s32 1, %s73
  %s76 = scalar_select 0, %s75, %s73
  loop: start=0, step=1, limit=4
  $region2: #{m2_forward.1} parent=0 // loop_pre_header
    _
  $region3: #{m2_forward.1} parent=0 // loop_header
    %s78 = sphi 0, %s82
    %p79 = scmp.ge.s32.totalorder %s78, 4
    %s88 = sphi 0, %s90
    %s91 = sphi 0, %s88
    %s92 = sphi 0, %s91
    %s108 = sphi 0, %s92
    %s114 = sphi 0, %s116
    %s117 = sphi 0, %s114
    %s118 = sphi 0, %s117
    %s134 = sphi 0, %s118
    %s140 = sphi 0, %s142
    %s143 = sphi 0, %s140
    %s144 = sphi 0, %s143
    %s160 = sphi 0, %s144
    %s164 = sphi 0, %s164
    %s166 = sphi 0, %s164
    %s167 = sphi 0, %s166
    %s181 = sphi 0, %s167
    %s185 = sphi 0, %s185
    %s187 = sphi 0, %s185
    %s188 = sphi 0, %s187
    %s202 = sphi 0, %s188
    %s206 = sphi 0, %s206
    %s208 = sphi 0, %s206
    %s209 = sphi 0, %s208
    %s223 = sphi 0, %s209
    %s227 = sphi 0, %s227
    %s229 = sphi 0, %s227
    %s230 = sphi 0, %s229
    %s244 = sphi 0, %s230
    %s248 = sphi 0, %s248
    %s250 = sphi 0, %s248
    %s251 = sphi 0, %s250
    %s265 = sphi 0, %s251
    %s269 = sphi 0, %s269
    %s271 = sphi 0, %s269
    %s272 = sphi 0, %s271
    %s286 = sphi 0, %s272
    %s290 = sphi 0, %s290
    %s292 = sphi 0, %s290
    %s293 = sphi 0, %s292
    %s307 = sphi 0, %s293
    %s311 = sphi 0, %s311
    %s313 = sphi 0, %s311
    %s314 = sphi 0, %s313
    %s328 = sphi 0, %s314
    %s332 = sphi 0, %s332
    %s334 = sphi 0, %s332
    %s335 = sphi 0, %s334
    %s349 = sphi 0, %s335
    %s353 = sphi 0, %s353
    %s355 = sphi 0, %s353
    %s356 = sphi 0, %s355
    %s370 = sphi 0, %s356
    %s374 = sphi 0, %s374
    %s376 = sphi 0, %s374
    %s377 = sphi 0, %s376
    %s391 = sphi 0, %s377
    %s395 = sphi 0, %s395
    %s397 = sphi 0, %s395
    %s398 = sphi 0, %s397
    %s412 = sphi 0, %s398
    %s416 = sphi 0, %s416
    %s418 = sphi 0, %s416
    %s419 = sphi 0, %s418
    %s433 = sphi 0, %s419
    %s437 = sphi 0, %s437
    %s439 = sphi 0, %s437
    %s440 = sphi 0, %s439
    %s454 = sphi 0, %s440
    %s458 = sphi 0, %s458
    %s460 = sphi 0, %s458
    %s461 = sphi 0, %s460
    %s475 = sphi 0, %s461
    %s479 = sphi 0, %s479
    %s481 = sphi 0, %s479
    %s482 = sphi 0, %s481
    %s496 = sphi 0, %s482
    %s500 = sphi 0, %s500
    %s502 = sphi 0, %s500
    %s503 = sphi 0, %s502
    %s517 = sphi 0, %s503
    %s521 = sphi 0, %s521
    %s523 = sphi 0, %s521
    %s524 = sphi 0, %s523
    %s538 = sphi 0, %s524
    %s542 = sphi 0, %s542
    %s544 = sphi 0, %s542
    %s545 = sphi 0, %s544
    %s559 = sphi 0, %s545
    %s563 = sphi 0, %s563
    %s565 = sphi 0, %s563
    %s566 = sphi 0, %s565
    %s580 = sphi 0, %s566
    %s584 = sphi 0, %s584
    %s586 = sphi 0, %s584
    %s587 = sphi 0, %s586
    %s601 = sphi 0, %s587
    %s605 = sphi 0, %s605
    %s607 = sphi 0, %s605
    %s608 = sphi 0, %s607
    %s622 = sphi 0, %s608
    %s626 = sphi 0, %s626
    %s628 = sphi 0, %s626
    %s629 = sphi 0, %s628
    %s643 = sphi 0, %s629
    %s647 = sphi 0, %s647
    %s649 = sphi 0, %s647
    %s650 = sphi 0, %s649
    %s664 = sphi 0, %s650
    %s668 = sphi 0, %s668
    %s670 = sphi 0, %s668
    %s671 = sphi 0, %s670
    %s685 = sphi 0, %s671
    %s689 = sphi 0, %s689
    %s691 = sphi 0, %s689
    %s692 = sphi 0, %s691
    %s706 = sphi 0, %s692
    %s710 = sphi 0, %s710
    %s712 = sphi 0, %s710
    %s713 = sphi 0, %s712
    %s727 = sphi 0, %s713
    %s731 = sphi 0, %s731
    %s733 = sphi 0, %s731
    %s734 = sphi 0, %s733
    %s748 = sphi 0, %s734
    %s752 = sphi 0, %s752
    %s754 = sphi 0, %s752
    %s755 = sphi 0, %s754
    %s769 = sphi 0, %s755
    %s775 = sphi 0, %s777
    %s778 = sphi 0, %s775
    %s779 = sphi 0, %s778
    %s795 = sphi 0, %s779
    %s801 = sphi 0, %s803
    %s804 = sphi 0, %s801
    %s805 = sphi 0, %s804
    %s821 = sphi 0, %s805
    %s827 = sphi 0, %s829
    %s830 = sphi 0, %s827
    %s831 = sphi 0, %s830
    %s847 = sphi 0, %s831
    %s853 = sphi 0, %s855
    %s856 = sphi 0, %s853
    %s857 = sphi 0, %s856
    %s873 = sphi 0, %s857
  $region4: #{m2_forward.1} parent=0 // loop_header_branch
    %81 = sbr.rel (%p79) target = $region8
  $region5: #{m2_forward.1} parent=0 // loop_body
    %s83 = ssub.s32 %s78, 1
    %s84 = ssub.s32 %s78, 2
    %s85 = sadd.s32 %s78, 1
    %s86 = ssub.s32 %s78, %s85
    %p87 = scmp.eq.s32.totalorder %s86, 0
    %s89 = sadd.s32 %s88, 1
    %s90 = scalar_select %p87, %s88, %s89
    %p93 = pneg %p87
    %p94 = scmp.eq.s32.totalorder %s78, 1
    %p95 = por %p93, %p94
    %p96 = scmp.ne.s32.totalorder %s88, %s91
    %p97 = scmp.eq.s32.totalorder %s78, 0
    %p98 = por %p96, %p97
    %p99 = scmp.ne.s32.totalorder %s88, %s91
    %p100 = scmp.eq.s32.totalorder %s83, 1
    %p101 = por %p99, %p100
    %p102 = scmp.ne.s32.totalorder %s91, %s92
    %p103 = scmp.eq.s32.totalorder %s83, 0
    %p104 = por %p102, %p103
    %p105 = scmp.ne.s32.totalorder %s91, %s92
    %p106 = scmp.eq.s32.totalorder %s84, 1
    %p107 = por %p105, %p106
    %p109 = scmp.ne.s32.totalorder %s92, %s108
    %p110 = scmp.eq.s32.totalorder %s84, 0
    %p111 = por %p109, %p110
    %s112 = ssub.s32 %s78, %s85
    %p113 = scmp.eq.s32.totalorder %s112, 0
    %s115 = sadd.s32 %s114, 1
    %s116 = scalar_select %p113, %s114, %s115
    %p119 = pneg %p113
    %p120 = scmp.eq.s32.totalorder %s78, 1
    %p121 = por %p119, %p120
    %p122 = scmp.ne.s32.totalorder %s114, %s117
    %p123 = scmp.eq.s32.totalorder %s78, 0
    %p124 = por %p122, %p123
    %p125 = scmp.ne.s32.totalorder %s114, %s117
    %p126 = scmp.eq.s32.totalorder %s83, 1
    %p127 = por %p125, %p126
    %p128 = scmp.ne.s32.totalorder %s117, %s118
    %p129 = scmp.eq.s32.totalorder %s83, 0
    %p130 = por %p128, %p129
    %p131 = scmp.ne.s32.totalorder %s117, %s118
    %p132 = scmp.eq.s32.totalorder %s84, 1
    %p133 = por %p131, %p132
    %p135 = scmp.ne.s32.totalorder %s118, %s134
    %p136 = scmp.eq.s32.totalorder %s84, 0
    %p137 = por %p135, %p136
    %s138 = ssub.s32 %s78, %s85
    %p139 = scmp.eq.s32.totalorder %s138, 0
    %s141 = sadd.s32 %s140, 1
    %s142 = scalar_select %p139, %s140, %s141
    %p145 = pneg %p139
    %p146 = scmp.eq.s32.totalorder %s78, 1
    %p147 = por %p145, %p146
    %p148 = scmp.ne.s32.totalorder %s140, %s143
    %p149 = scmp.eq.s32.totalorder %s78, 0
    %p150 = por %p148, %p149
    %p151 = scmp.ne.s32.totalorder %s140, %s143
    %p152 = scmp.eq.s32.totalorder %s83, 1
    %p153 = por %p151, %p152
    %p154 = scmp.ne.s32.totalorder %s143, %s144
    %p155 = scmp.eq.s32.totalorder %s83, 0
    %p156 = por %p154, %p155
    %p157 = scmp.ne.s32.totalorder %s143, %s144
    %p158 = scmp.eq.s32.totalorder %s84, 1
    %p159 = por %p157, %p158
    %p161 = scmp.ne.s32.totalorder %s144, %s160
    %p162 = scmp.eq.s32.totalorder %s84, 0
    %p163 = por %p161, %p162
    %s165 = sadd.s32 %s164, 1
    %p168 = scmp.eq.s32.totalorder %s78, 1
    %p169 = scmp.ne.s32.totalorder %s164, %s166
    %p170 = scmp.eq.s32.totalorder %s78, 0
    %p171 = por %p169, %p170
    %p172 = scmp.ne.s32.totalorder %s164, %s166
    %p173 = scmp.eq.s32.totalorder %s83, 1
    %p174 = por %p172, %p173
    %p175 = scmp.ne.s32.totalorder %s166, %s167
    %p176 = scmp.eq.s32.totalorder %s83, 0
    %p177 = por %p175, %p176
    %p178 = scmp.ne.s32.totalorder %s166, %s167
    %p179 = scmp.eq.s32.totalorder %s84, 1
    %p180 = por %p178, %p179
    %p182 = scmp.ne.s32.totalorder %s167, %s181
    %p183 = scmp.eq.s32.totalorder %s84, 0
    %p184 = por %p182, %p183
    %s186 = sadd.s32 %s185, 1
    %p189 = scmp.eq.s32.totalorder %s78, 1
    %p190 = scmp.ne.s32.totalorder %s185, %s187
    %p191 = scmp.eq.s32.totalorder %s78, 0
    %p192 = por %p190, %p191
    %p193 = scmp.ne.s32.totalorder %s185, %s187
    %p194 = scmp.eq.s32.totalorder %s83, 1
    %p195 = por %p193, %p194
    %p196 = scmp.ne.s32.totalorder %s187, %s188
    %p197 = scmp.eq.s32.totalorder %s83, 0
    %p198 = por %p196, %p197
    %p199 = scmp.ne.s32.totalorder %s187, %s188
    %p200 = scmp.eq.s32.totalorder %s84, 1
    %p201 = por %p199, %p200
    %p203 = scmp.ne.s32.totalorder %s188, %s202
    %p204 = scmp.eq.s32.totalorder %s84, 0
    %p205 = por %p203, %p204
    %s207 = sadd.s32 %s206, 1
    %p210 = scmp.eq.s32.totalorder %s78, 1
    %p211 = scmp.ne.s32.totalorder %s206, %s208
    %p212 = scmp.eq.s32.totalorder %s78, 0
    %p213 = por %p211, %p212
    %p214 = scmp.ne.s32.totalorder %s206, %s208
    %p215 = scmp.eq.s32.totalorder %s83, 1
    %p216 = por %p214, %p215
    %p217 = scmp.ne.s32.totalorder %s208, %s209
    %p218 = scmp.eq.s32.totalorder %s83, 0
    %p219 = por %p217, %p218
    %p220 = scmp.ne.s32.totalorder %s208, %s209
    %p221 = scmp.eq.s32.totalorder %s84, 1
    %p222 = por %p220, %p221
    %p224 = scmp.ne.s32.totalorder %s209, %s223
    %p225 = scmp.eq.s32.totalorder %s84, 0
    %p226 = por %p224, %p225
    %s228 = sadd.s32 %s227, 1
    %p231 = scmp.eq.s32.totalorder %s78, 1
    %p232 = scmp.ne.s32.totalorder %s227, %s229
    %p233 = scmp.eq.s32.totalorder %s78, 0
    %p234 = por %p232, %p233
    %p235 = scmp.ne.s32.totalorder %s227, %s229
    %p236 = scmp.eq.s32.totalorder %s83, 1
    %p237 = por %p235, %p236
    %p238 = scmp.ne.s32.totalorder %s229, %s230
    %p239 = scmp.eq.s32.totalorder %s83, 0
    %p240 = por %p238, %p239
    %p241 = scmp.ne.s32.totalorder %s229, %s230
    %p242 = scmp.eq.s32.totalorder %s84, 1
    %p243 = por %p241, %p242
    %p245 = scmp.ne.s32.totalorder %s230, %s244
    %p246 = scmp.eq.s32.totalorder %s84, 0
    %p247 = por %p245, %p246
    %s249 = sadd.s32 %s248, 1
    %p252 = scmp.eq.s32.totalorder %s78, 1
    %p253 = scmp.ne.s32.totalorder %s248, %s250
    %p254 = scmp.eq.s32.totalorder %s78, 0
    %p255 = por %p253, %p254
    %p256 = scmp.ne.s32.totalorder %s248, %s250
    %p257 = scmp.eq.s32.totalorder %s83, 1
    %p258 = por %p256, %p257
    %p259 = scmp.ne.s32.totalorder %s250, %s251
    %p260 = scmp.eq.s32.totalorder %s83, 0
    %p261 = por %p259, %p260
    %p262 = scmp.ne.s32.totalorder %s250, %s251
    %p263 = scmp.eq.s32.totalorder %s84, 1
    %p264 = por %p262, %p263
    %p266 = scmp.ne.s32.totalorder %s251, %s265
    %p267 = scmp.eq.s32.totalorder %s84, 0
    %p268 = por %p266, %p267
    %s270 = sadd.s32 %s269, 1
    %p273 = scmp.eq.s32.totalorder %s78, 1
    %p274 = scmp.ne.s32.totalorder %s269, %s271
    %p275 = scmp.eq.s32.totalorder %s78, 0
    %p276 = por %p274, %p275
    %p277 = scmp.ne.s32.totalorder %s269, %s271
    %p278 = scmp.eq.s32.totalorder %s83, 1
    %p279 = por %p277, %p278
    %p280 = scmp.ne.s32.totalorder %s271, %s272
    %p281 = scmp.eq.s32.totalorder %s83, 0
    %p282 = por %p280, %p281
    %p283 = scmp.ne.s32.totalorder %s271, %s272
    %p284 = scmp.eq.s32.totalorder %s84, 1
    %p285 = por %p283, %p284
    %p287 = scmp.ne.s32.totalorder %s272, %s286
    %p288 = scmp.eq.s32.totalorder %s84, 0
    %p289 = por %p287, %p288
    %s291 = sadd.s32 %s290, 1
    %p294 = scmp.eq.s32.totalorder %s78, 1
    %p295 = scmp.ne.s32.totalorder %s290, %s292
    %p296 = scmp.eq.s32.totalorder %s78, 0
    %p297 = por %p295, %p296
    %p298 = scmp.ne.s32.totalorder %s290, %s292
    %p299 = scmp.eq.s32.totalorder %s83, 1
    %p300 = por %p298, %p299
    %p301 = scmp.ne.s32.totalorder %s292, %s293
    %p302 = scmp.eq.s32.totalorder %s83, 0
    %p303 = por %p301, %p302
    %p304 = scmp.ne.s32.totalorder %s292, %s293
    %p305 = scmp.eq.s32.totalorder %s84, 1
    %p306 = por %p304, %p305
    %p308 = scmp.ne.s32.totalorder %s293, %s307
    %p309 = scmp.eq.s32.totalorder %s84, 0
    %p310 = por %p308, %p309
    %s312 = sadd.s32 %s311, 1
    %p315 = scmp.eq.s32.totalorder %s78, 1
    %p316 = scmp.ne.s32.totalorder %s311, %s313
    %p317 = scmp.eq.s32.totalorder %s78, 0
    %p318 = por %p316, %p317
    %p319 = scmp.ne.s32.totalorder %s311, %s313
    %p320 = scmp.eq.s32.totalorder %s83, 1
    %p321 = por %p319, %p320
    %p322 = scmp.ne.s32.totalorder %s313, %s314
    %p323 = scmp.eq.s32.totalorder %s83, 0
    %p324 = por %p322, %p323
    %p325 = scmp.ne.s32.totalorder %s313, %s314
    %p326 = scmp.eq.s32.totalorder %s84, 1
    %p327 = por %p325, %p326
    %p329 = scmp.ne.s32.totalorder %s314, %s328
    %p330 = scmp.eq.s32.totalorder %s84, 0
    %p331 = por %p329, %p330
    %s333 = sadd.s32 %s332, 1
    %p336 = scmp.eq.s32.totalorder %s78, 1
    %p337 = scmp.ne.s32.totalorder %s332, %s334
    %p338 = scmp.eq.s32.totalorder %s78, 0
    %p339 = por %p337, %p338
    %p340 = scmp.ne.s32.totalorder %s332, %s334
    %p341 = scmp.eq.s32.totalorder %s83, 1
    %p342 = por %p340, %p341
    %p343 = scmp.ne.s32.totalorder %s334, %s335
    %p344 = scmp.eq.s32.totalorder %s83, 0
    %p345 = por %p343, %p344
    %p346 = scmp.ne.s32.totalorder %s334, %s335
    %p347 = scmp.eq.s32.totalorder %s84, 1
    %p348 = por %p346, %p347
    %p350 = scmp.ne.s32.totalorder %s335, %s349
    %p351 = scmp.eq.s32.totalorder %s84, 0
    %p352 = por %p350, %p351
    %s354 = sadd.s32 %s353, 1
    %p357 = scmp.eq.s32.totalorder %s78, 1
    %p358 = scmp.ne.s32.totalorder %s353, %s355
    %p359 = scmp.eq.s32.totalorder %s78, 0
    %p360 = por %p358, %p359
    %p361 = scmp.ne.s32.totalorder %s353, %s355
    %p362 = scmp.eq.s32.totalorder %s83, 1
    %p363 = por %p361, %p362
    %p364 = scmp.ne.s32.totalorder %s355, %s356
    %p365 = scmp.eq.s32.totalorder %s83, 0
    %p366 = por %p364, %p365
    %p367 = scmp.ne.s32.totalorder %s355, %s356
    %p368 = scmp.eq.s32.totalorder %s84, 1
    %p369 = por %p367, %p368
    %p371 = scmp.ne.s32.totalorder %s356, %s370
    %p372 = scmp.eq.s32.totalorder %s84, 0
    %p373 = por %p371, %p372
    %s375 = sadd.s32 %s374, 1
    %p378 = scmp.eq.s32.totalorder %s78, 1
    %p379 = scmp.ne.s32.totalorder %s374, %s376
    %p380 = scmp.eq.s32.totalorder %s78, 0
    %p381 = por %p379, %p380
    %p382 = scmp.ne.s32.totalorder %s374, %s376
    %p383 = scmp.eq.s32.totalorder %s83, 1
    %p384 = por %p382, %p383
    %p385 = scmp.ne.s32.totalorder %s376, %s377
    %p386 = scmp.eq.s32.totalorder %s83, 0
    %p387 = por %p385, %p386
    %p388 = scmp.ne.s32.totalorder %s376, %s377
    %p389 = scmp.eq.s32.totalorder %s84, 1
    %p390 = por %p388, %p389
    %p392 = scmp.ne.s32.totalorder %s377, %s391
    %p393 = scmp.eq.s32.totalorder %s84, 0
    %p394 = por %p392, %p393
    %s396 = sadd.s32 %s395, 1
    %p399 = scmp.eq.s32.totalorder %s78, 1
    %p400 = scmp.ne.s32.totalorder %s395, %s397
    %p401 = scmp.eq.s32.totalorder %s78, 0
    %p402 = por %p400, %p401
    %p403 = scmp.ne.s32.totalorder %s395, %s397
    %p404 = scmp.eq.s32.totalorder %s83, 1
    %p405 = por %p403, %p404
    %p406 = scmp.ne.s32.totalorder %s397, %s398
    %p407 = scmp.eq.s32.totalorder %s83, 0
    %p408 = por %p406, %p407
    %p409 = scmp.ne.s32.totalorder %s397, %s398
    %p410 = scmp.eq.s32.totalorder %s84, 1
    %p411 = por %p409, %p410
    %p413 = scmp.ne.s32.totalorder %s398, %s412
    %p414 = scmp.eq.s32.totalorder %s84, 0
    %p415 = por %p413, %p414
    %s417 = sadd.s32 %s416, 1
    %p420 = scmp.eq.s32.totalorder %s78, 1
    %p421 = scmp.ne.s32.totalorder %s416, %s418
    %p422 = scmp.eq.s32.totalorder %s78, 0
    %p423 = por %p421, %p422
    %p424 = scmp.ne.s32.totalorder %s416, %s418
    %p425 = scmp.eq.s32.totalorder %s83, 1
    %p426 = por %p424, %p425
    %p427 = scmp.ne.s32.totalorder %s418, %s419
    %p428 = scmp.eq.s32.totalorder %s83, 0
    %p429 = por %p427, %p428
    %p430 = scmp.ne.s32.totalorder %s418, %s419
    %p431 = scmp.eq.s32.totalorder %s84, 1
    %p432 = por %p430, %p431
    %p434 = scmp.ne.s32.totalorder %s419, %s433
    %p435 = scmp.eq.s32.totalorder %s84, 0
    %p436 = por %p434, %p435
    %s438 = sadd.s32 %s437, 1
    %p441 = scmp.eq.s32.totalorder %s78, 1
    %p442 = scmp.ne.s32.totalorder %s437, %s439
    %p443 = scmp.eq.s32.totalorder %s78, 0
    %p444 = por %p442, %p443
    %p445 = scmp.ne.s32.totalorder %s437, %s439
    %p446 = scmp.eq.s32.totalorder %s83, 1
    %p447 = por %p445, %p446
    %p448 = scmp.ne.s32.totalorder %s439, %s440
    %p449 = scmp.eq.s32.totalorder %s83, 0
    %p450 = por %p448, %p449
    %p451 = scmp.ne.s32.totalorder %s439, %s440
    %p452 = scmp.eq.s32.totalorder %s84, 1
    %p453 = por %p451, %p452
    %p455 = scmp.ne.s32.totalorder %s440, %s454
    %p456 = scmp.eq.s32.totalorder %s84, 0
    %p457 = por %p455, %p456
    %s459 = sadd.s32 %s458, 1
    %p462 = scmp.eq.s32.totalorder %s78, 1
    %p463 = scmp.ne.s32.totalorder %s458, %s460
    %p464 = scmp.eq.s32.totalorder %s78, 0
    %p465 = por %p463, %p464
    %p466 = scmp.ne.s32.totalorder %s458, %s460
    %p467 = scmp.eq.s32.totalorder %s83, 1
    %p468 = por %p466, %p467
    %p469 = scmp.ne.s32.totalorder %s460, %s461
    %p470 = scmp.eq.s32.totalorder %s83, 0
    %p471 = por %p469, %p470
    %p472 = scmp.ne.s32.totalorder %s460, %s461
    %p473 = scmp.eq.s32.totalorder %s84, 1
    %p474 = por %p472, %p473
    %p476 = scmp.ne.s32.totalorder %s461, %s475
    %p477 = scmp.eq.s32.totalorder %s84, 0
    %p478 = por %p476, %p477
    %s480 = sadd.s32 %s479, 1
    %p483 = scmp.eq.s32.totalorder %s78, 1
    %p484 = scmp.ne.s32.totalorder %s479, %s481
    %p485 = scmp.eq.s32.totalorder %s78, 0
    %p486 = por %p484, %p485
    %p487 = scmp.ne.s32.totalorder %s479, %s481
    %p488 = scmp.eq.s32.totalorder %s83, 1
    %p489 = por %p487, %p488
    %p490 = scmp.ne.s32.totalorder %s481, %s482
    %p491 = scmp.eq.s32.totalorder %s83, 0
    %p492 = por %p490, %p491
    %p493 = scmp.ne.s32.totalorder %s481, %s482
    %p494 = scmp.eq.s32.totalorder %s84, 1
    %p495 = por %p493, %p494
    %p497 = scmp.ne.s32.totalorder %s482, %s496
    %p498 = scmp.eq.s32.totalorder %s84, 0
    %p499 = por %p497, %p498
    %s501 = sadd.s32 %s500, 1
    %p504 = scmp.eq.s32.totalorder %s78, 1
    %p505 = scmp.ne.s32.totalorder %s500, %s502
    %p506 = scmp.eq.s32.totalorder %s78, 0
    %p507 = por %p505, %p506
    %p508 = scmp.ne.s32.totalorder %s500, %s502
    %p509 = scmp.eq.s32.totalorder %s83, 1
    %p510 = por %p508, %p509
    %p511 = scmp.ne.s32.totalorder %s502, %s503
    %p512 = scmp.eq.s32.totalorder %s83, 0
    %p513 = por %p511, %p512
    %p514 = scmp.ne.s32.totalorder %s502, %s503
    %p515 = scmp.eq.s32.totalorder %s84, 1
    %p516 = por %p514, %p515
    %p518 = scmp.ne.s32.totalorder %s503, %s517
    %p519 = scmp.eq.s32.totalorder %s84, 0
    %p520 = por %p518, %p519
    %s522 = sadd.s32 %s521, 1
    %p525 = scmp.eq.s32.totalorder %s78, 1
    %p526 = scmp.ne.s32.totalorder %s521, %s523
    %p527 = scmp.eq.s32.totalorder %s78, 0
    %p528 = por %p526, %p527
    %p529 = scmp.ne.s32.totalorder %s521, %s523
    %p530 = scmp.eq.s32.totalorder %s83, 1
    %p531 = por %p529, %p530
    %p532 = scmp.ne.s32.totalorder %s523, %s524
    %p533 = scmp.eq.s32.totalorder %s83, 0
    %p534 = por %p532, %p533
    %p535 = scmp.ne.s32.totalorder %s523, %s524
    %p536 = scmp.eq.s32.totalorder %s84, 1
    %p537 = por %p535, %p536
    %p539 = scmp.ne.s32.totalorder %s524, %s538
    %p540 = scmp.eq.s32.totalorder %s84, 0
    %p541 = por %p539, %p540
    %s543 = sadd.s32 %s542, 1
    %p546 = scmp.eq.s32.totalorder %s78, 1
    %p547 = scmp.ne.s32.totalorder %s542, %s544
    %p548 = scmp.eq.s32.totalorder %s78, 0
    %p549 = por %p547, %p548
    %p550 = scmp.ne.s32.totalorder %s542, %s544
    %p551 = scmp.eq.s32.totalorder %s83, 1
    %p552 = por %p550, %p551
    %p553 = scmp.ne.s32.totalorder %s544, %s545
    %p554 = scmp.eq.s32.totalorder %s83, 0
    %p555 = por %p553, %p554
    %p556 = scmp.ne.s32.totalorder %s544, %s545
    %p557 = scmp.eq.s32.totalorder %s84, 1
    %p558 = por %p556, %p557
    %p560 = scmp.ne.s32.totalorder %s545, %s559
    %p561 = scmp.eq.s32.totalorder %s84, 0
    %p562 = por %p560, %p561
    %s564 = sadd.s32 %s563, 1
    %p567 = scmp.eq.s32.totalorder %s78, 1
    %p568 = scmp.ne.s32.totalorder %s563, %s565
    %p569 = scmp.eq.s32.totalorder %s78, 0
    %p570 = por %p568, %p569
    %p571 = scmp.ne.s32.totalorder %s563, %s565
    %p572 = scmp.eq.s32.totalorder %s83, 1
    %p573 = por %p571, %p572
    %p574 = scmp.ne.s32.totalorder %s565, %s566
    %p575 = scmp.eq.s32.totalorder %s83, 0
    %p576 = por %p574, %p575
    %p577 = scmp.ne.s32.totalorder %s565, %s566
    %p578 = scmp.eq.s32.totalorder %s84, 1
    %p579 = por %p577, %p578
    %p581 = scmp.ne.s32.totalorder %s566, %s580
    %p582 = scmp.eq.s32.totalorder %s84, 0
    %p583 = por %p581, %p582
    %s585 = sadd.s32 %s584, 1
    %p588 = scmp.eq.s32.totalorder %s78, 1
    %p589 = scmp.ne.s32.totalorder %s584, %s586
    %p590 = scmp.eq.s32.totalorder %s78, 0
    %p591 = por %p589, %p590
    %p592 = scmp.ne.s32.totalorder %s584, %s586
    %p593 = scmp.eq.s32.totalorder %s83, 1
    %p594 = por %p592, %p593
    %p595 = scmp.ne.s32.totalorder %s586, %s587
    %p596 = scmp.eq.s32.totalorder %s83, 0
    %p597 = por %p595, %p596
    %p598 = scmp.ne.s32.totalorder %s586, %s587
    %p599 = scmp.eq.s32.totalorder %s84, 1
    %p600 = por %p598, %p599
    %p602 = scmp.ne.s32.totalorder %s587, %s601
    %p603 = scmp.eq.s32.totalorder %s84, 0
    %p604 = por %p602, %p603
    %s606 = sadd.s32 %s605, 1
    %p609 = scmp.eq.s32.totalorder %s78, 1
    %p610 = scmp.ne.s32.totalorder %s605, %s607
    %p611 = scmp.eq.s32.totalorder %s78, 0
    %p612 = por %p610, %p611
    %p613 = scmp.ne.s32.totalorder %s605, %s607
    %p614 = scmp.eq.s32.totalorder %s83, 1
    %p615 = por %p613, %p614
    %p616 = scmp.ne.s32.totalorder %s607, %s608
    %p617 = scmp.eq.s32.totalorder %s83, 0
    %p618 = por %p616, %p617
    %p619 = scmp.ne.s32.totalorder %s607, %s608
    %p620 = scmp.eq.s32.totalorder %s84, 1
    %p621 = por %p619, %p620
    %p623 = scmp.ne.s32.totalorder %s608, %s622
    %p624 = scmp.eq.s32.totalorder %s84, 0
    %p625 = por %p623, %p624
    %s627 = sadd.s32 %s626, 1
    %p630 = scmp.eq.s32.totalorder %s78, 1
    %p631 = scmp.ne.s32.totalorder %s626, %s628
    %p632 = scmp.eq.s32.totalorder %s78, 0
    %p633 = por %p631, %p632
    %p634 = scmp.ne.s32.totalorder %s626, %s628
    %p635 = scmp.eq.s32.totalorder %s83, 1
    %p636 = por %p634, %p635
    %p637 = scmp.ne.s32.totalorder %s628, %s629
    %p638 = scmp.eq.s32.totalorder %s83, 0
    %p639 = por %p637, %p638
    %p640 = scmp.ne.s32.totalorder %s628, %s629
    %p641 = scmp.eq.s32.totalorder %s84, 1
    %p642 = por %p640, %p641
    %p644 = scmp.ne.s32.totalorder %s629, %s643
    %p645 = scmp.eq.s32.totalorder %s84, 0
    %p646 = por %p644, %p645
    %s648 = sadd.s32 %s647, 1
    %p651 = scmp.eq.s32.totalorder %s78, 1
    %p652 = scmp.ne.s32.totalorder %s647, %s649
    %p653 = scmp.eq.s32.totalorder %s78, 0
    %p654 = por %p652, %p653
    %p655 = scmp.ne.s32.totalorder %s647, %s649
    %p656 = scmp.eq.s32.totalorder %s83, 1
    %p657 = por %p655, %p656
    %p658 = scmp.ne.s32.totalorder %s649, %s650
    %p659 = scmp.eq.s32.totalorder %s83, 0
    %p660 = por %p658, %p659
    %p661 = scmp.ne.s32.totalorder %s649, %s650
    %p662 = scmp.eq.s32.totalorder %s84, 1
    %p663 = por %p661, %p662
    %p665 = scmp.ne.s32.totalorder %s650, %s664
    %p666 = scmp.eq.s32.totalorder %s84, 0
    %p667 = por %p665, %p666
    %s669 = sadd.s32 %s668, 1
    %p672 = scmp.eq.s32.totalorder %s78, 1
    %p673 = scmp.ne.s32.totalorder %s668, %s670
    %p674 = scmp.eq.s32.totalorder %s78, 0
    %p675 = por %p673, %p674
    %p676 = scmp.ne.s32.totalorder %s668, %s670
    %p677 = scmp.eq.s32.totalorder %s83, 1
    %p678 = por %p676, %p677
    %p679 = scmp.ne.s32.totalorder %s670, %s671
    %p680 = scmp.eq.s32.totalorder %s83, 0
    %p681 = por %p679, %p680
    %p682 = scmp.ne.s32.totalorder %s670, %s671
    %p683 = scmp.eq.s32.totalorder %s84, 1
    %p684 = por %p682, %p683
    %p686 = scmp.ne.s32.totalorder %s671, %s685
    %p687 = scmp.eq.s32.totalorder %s84, 0
    %p688 = por %p686, %p687
    %s690 = sadd.s32 %s689, 1
    %p693 = scmp.eq.s32.totalorder %s78, 1
    %p694 = scmp.ne.s32.totalorder %s689, %s691
    %p695 = scmp.eq.s32.totalorder %s78, 0
    %p696 = por %p694, %p695
    %p697 = scmp.ne.s32.totalorder %s689, %s691
    %p698 = scmp.eq.s32.totalorder %s83, 1
    %p699 = por %p697, %p698
    %p700 = scmp.ne.s32.totalorder %s691, %s692
    %p701 = scmp.eq.s32.totalorder %s83, 0
    %p702 = por %p700, %p701
    %p703 = scmp.ne.s32.totalorder %s691, %s692
    %p704 = scmp.eq.s32.totalorder %s84, 1
    %p705 = por %p703, %p704
    %p707 = scmp.ne.s32.totalorder %s692, %s706
    %p708 = scmp.eq.s32.totalorder %s84, 0
    %p709 = por %p707, %p708
    %s711 = sadd.s32 %s710, 1
    %p714 = scmp.eq.s32.totalorder %s78, 1
    %p715 = scmp.ne.s32.totalorder %s710, %s712
    %p716 = scmp.eq.s32.totalorder %s78, 0
    %p717 = por %p715, %p716
    %p718 = scmp.ne.s32.totalorder %s710, %s712
    %p719 = scmp.eq.s32.totalorder %s83, 1
    %p720 = por %p718, %p719
    %p721 = scmp.ne.s32.totalorder %s712, %s713
    %p722 = scmp.eq.s32.totalorder %s83, 0
    %p723 = por %p721, %p722
    %p724 = scmp.ne.s32.totalorder %s712, %s713
    %p725 = scmp.eq.s32.totalorder %s84, 1
    %p726 = por %p724, %p725
    %p728 = scmp.ne.s32.totalorder %s713, %s727
    %p729 = scmp.eq.s32.totalorder %s84, 0
    %p730 = por %p728, %p729
    %s732 = sadd.s32 %s731, 1
    %p735 = scmp.eq.s32.totalorder %s78, 1
    %p736 = scmp.ne.s32.totalorder %s731, %s733
    %p737 = scmp.eq.s32.totalorder %s78, 0
    %p738 = por %p736, %p737
    %p739 = scmp.ne.s32.totalorder %s731, %s733
    %p740 = scmp.eq.s32.totalorder %s83, 1
    %p741 = por %p739, %p740
    %p742 = scmp.ne.s32.totalorder %s733, %s734
    %p743 = scmp.eq.s32.totalorder %s83, 0
    %p744 = por %p742, %p743
    %p745 = scmp.ne.s32.totalorder %s733, %s734
    %p746 = scmp.eq.s32.totalorder %s84, 1
    %p747 = por %p745, %p746
    %p749 = scmp.ne.s32.totalorder %s734, %s748
    %p750 = scmp.eq.s32.totalorder %s84, 0
    %p751 = por %p749, %p750
    %s753 = sadd.s32 %s752, 1
    %p756 = scmp.eq.s32.totalorder %s78, 1
    %p757 = scmp.ne.s32.totalorder %s752, %s754
    %p758 = scmp.eq.s32.totalorder %s78, 0
    %p759 = por %p757, %p758
    %p760 = scmp.ne.s32.totalorder %s752, %s754
    %p761 = scmp.eq.s32.totalorder %s83, 1
    %p762 = por %p760, %p761
    %p763 = scmp.ne.s32.totalorder %s754, %s755
    %p764 = scmp.eq.s32.totalorder %s83, 0
    %p765 = por %p763, %p764
    %p766 = scmp.ne.s32.totalorder %s754, %s755
    %p767 = scmp.eq.s32.totalorder %s84, 1
    %p768 = por %p766, %p767
    %p770 = scmp.ne.s32.totalorder %s755, %s769
    %p771 = scmp.eq.s32.totalorder %s84, 0
    %p772 = por %p770, %p771
    %s773 = ssub.s32 %s78, %s85
    %p774 = scmp.eq.s32.totalorder %s773, 0
    %s776 = sadd.s32 %s775, 1
    %s777 = scalar_select %p774, %s775, %s776
    %p780 = pneg %p774
    %p781 = scmp.eq.s32.totalorder %s78, 1
    %p782 = por %p780, %p781
    %p783 = scmp.ne.s32.totalorder %s775, %s778
    %p784 = scmp.eq.s32.totalorder %s78, 0
    %p785 = por %p783, %p784
    %p786 = scmp.ne.s32.totalorder %s775, %s778
    %p787 = scmp.eq.s32.totalorder %s83, 1
    %p788 = por %p786, %p787
    %p789 = scmp.ne.s32.totalorder %s778, %s779
    %p790 = scmp.eq.s32.totalorder %s83, 0
    %p791 = por %p789, %p790
    %p792 = scmp.ne.s32.totalorder %s778, %s779
    %p793 = scmp.eq.s32.totalorder %s84, 1
    %p794 = por %p792, %p793
    %p796 = scmp.ne.s32.totalorder %s779, %s795
    %p797 = scmp.eq.s32.totalorder %s84, 0
    %p798 = por %p796, %p797
    %s799 = ssub.s32 %s78, %s85
    %p800 = scmp.eq.s32.totalorder %s799, 0
    %s802 = sadd.s32 %s801, 1
    %s803 = scalar_select %p800, %s801, %s802
    %p806 = pneg %p800
    %p807 = scmp.eq.s32.totalorder %s78, 1
    %p808 = por %p806, %p807
    %p809 = scmp.ne.s32.totalorder %s801, %s804
    %p810 = scmp.eq.s32.totalorder %s78, 0
    %p811 = por %p809, %p810
    %p812 = scmp.ne.s32.totalorder %s801, %s804
    %p813 = scmp.eq.s32.totalorder %s83, 1
    %p814 = por %p812, %p813
    %p815 = scmp.ne.s32.totalorder %s804, %s805
    %p816 = scmp.eq.s32.totalorder %s83, 0
    %p817 = por %p815, %p816
    %p818 = scmp.ne.s32.totalorder %s804, %s805
    %p819 = scmp.eq.s32.totalorder %s84, 1
    %p820 = por %p818, %p819
    %p822 = scmp.ne.s32.totalorder %s805, %s821
    %p823 = scmp.eq.s32.totalorder %s84, 0
    %p824 = por %p822, %p823
    %s825 = ssub.s32 %s78, %s85
    %p826 = scmp.eq.s32.totalorder %s825, 0
    %s828 = sadd.s32 %s827, 1
    %s829 = scalar_select %p826, %s827, %s828
    %p832 = pneg %p826
    %p833 = scmp.eq.s32.totalorder %s78, 1
    %p834 = por %p832, %p833
    %p835 = scmp.ne.s32.totalorder %s827, %s830
    %p836 = scmp.eq.s32.totalorder %s78, 0
    %p837 = por %p835, %p836
    %p838 = scmp.ne.s32.totalorder %s827, %s830
    %p839 = scmp.eq.s32.totalorder %s83, 1
    %p840 = por %p838, %p839
    %p841 = scmp.ne.s32.totalorder %s830, %s831
    %p842 = scmp.eq.s32.totalorder %s83, 0
    %p843 = por %p841, %p842
    %p844 = scmp.ne.s32.totalorder %s830, %s831
    %p845 = scmp.eq.s32.totalorder %s84, 1
    %p846 = por %p844, %p845
    %p848 = scmp.ne.s32.totalorder %s831, %s847
    %p849 = scmp.eq.s32.totalorder %s84, 0
    %p850 = por %p848, %p849
    %s851 = ssub.s32 %s78, %s85
    %p852 = scmp.eq.s32.totalorder %s851, 0
    %s854 = sadd.s32 %s853, 1
    %s855 = scalar_select %p852, %s853, %s854
    %p858 = pneg %p852
    %p859 = scmp.eq.s32.totalorder %s78, 1
    %p860 = por %p858, %p859
    %p861 = scmp.ne.s32.totalorder %s853, %s856
    %p862 = scmp.eq.s32.totalorder %s78, 0
    %p863 = por %p861, %p862
    %p864 = scmp.ne.s32.totalorder %s853, %s856
    %p865 = scmp.eq.s32.totalorder %s83, 1
    %p866 = por %p864, %p865
    %p867 = scmp.ne.s32.totalorder %s856, %s857
    %p868 = scmp.eq.s32.totalorder %s83, 0
    %p869 = por %p867, %p868
    %p870 = scmp.ne.s32.totalorder %s856, %s857
    %p871 = scmp.eq.s32.totalorder %s84, 1
    %p872 = por %p870, %p871
    %p874 = scmp.ne.s32.totalorder %s857, %s873
    %p875 = scmp.eq.s32.totalorder %s84, 0
    %p876 = por %p874, %p875
    %p877 = scmp.le.s32.totalorder 1, %s78
    %p878 = scmp.lt.s32.totalorder %s78, 3
    %p879 = pnand %p877, %p878
    %p880 = pneg %p879
    // Predicated region
    $region9: #{m2_forward.1} parent=5 // pred_check
      _
    $region10: #{m2_forward.1} parent=5 // pred_check_branch
      %882 = sbr.rel (%p879) target = $region12
    $region11: #{m2_forward.1} parent=5 // pred_region
      %s883 = ssub.s32 %s78, 1
      // Predicated region
      $region13: #{m2_forward.1} parent=11 // pred_check
        %p884 = pneg %p177
      $region14: #{m2_forward.1} parent=11 // pred_check_branch
        %886 = sbr.rel (%p884) target = $region16
      $region15: #{m2_forward.1} parent=11 // pred_region
        _
      $region16: #{m2_forward.1} parent=11 // pred_fallthru
        _
      // Predicated region
      $region17: #{m2_forward.1} parent=11 // pred_check
        %p887 = pneg %p198
      $region18: #{m2_forward.1} parent=11 // pred_check_branch
        %889 = sbr.rel (%p887) target = $region20
      $region19: #{m2_forward.1} parent=11 // pred_region
        _
      $region20: #{m2_forward.1} parent=11 // pred_fallthru
        _
      // Predicated region
      $region21: #{m2_forward.1} parent=11 // pred_check
        %p890 = pneg %p219
      $region22: #{m2_forward.1} parent=11 // pred_check_branch
        %892 = sbr.rel (%p890) target = $region24
      $region23: #{m2_forward.1} parent=11 // pred_region
        _
      $region24: #{m2_forward.1} parent=11 // pred_fallthru
        _
      // Predicated region
      $region25: #{m2_forward.1} parent=11 // pred_check
        %p893 = pneg %p240
      $region26: #{m2_forward.1} parent=11 // pred_check_branch
        %895 = sbr.rel (%p893) target = $region28
      $region27: #{m2_forward.1} parent=11 // pred_region
        _
      $region28: #{m2_forward.1} parent=11 // pred_fallthru
        _
      // Predicated region
      $region29: #{m2_forward.1} parent=11 // pred_check
        %p896 = pneg %p261
      $region30: #{m2_forward.1} parent=11 // pred_check_branch
        %898 = sbr.rel (%p896) target = $region32
      $region31: #{m2_forward.1} parent=11 // pred_region
        _
      $region32: #{m2_forward.1} parent=11 // pred_fallthru
        _
      // Predicated region
      $region33: #{m2_forward.1} parent=11 // pred_check
        %p899 = pneg %p282
      $region34: #{m2_forward.1} parent=11 // pred_check_branch
        %901 = sbr.rel (%p899) target = $region36
      $region35: #{m2_forward.1} parent=11 // pred_region
        _
      $region36: #{m2_forward.1} parent=11 // pred_fallthru
        _
      // Predicated region
      $region37: #{m2_forward.1} parent=11 // pred_check
        %p902 = pneg %p303
      $region38: #{m2_forward.1} parent=11 // pred_check_branch
        %904 = sbr.rel (%p902) target = $region40
      $region39: #{m2_forward.1} parent=11 // pred_region
        _
      $region40: #{m2_forward.1} parent=11 // pred_fallthru
        _
      // Predicated region
      $region41: #{m2_forward.1} parent=11 // pred_check
        %p905 = pneg %p324
      $region42: #{m2_forward.1} parent=11 // pred_check_branch
        %907 = sbr.rel (%p905) target = $region44
      $region43: #{m2_forward.1} parent=11 // pred_region
        _
      $region44: #{m2_forward.1} parent=11 // pred_fallthru
        _
      // Predicated region
      $region45: #{m2_forward.1} parent=11 // pred_check
        %p908 = pneg %p345
      $region46: #{m2_forward.1} parent=11 // pred_check_branch
        %910 = sbr.rel (%p908) target = $region48
      $region47: #{m2_forward.1} parent=11 // pred_region
        _
      $region48: #{m2_forward.1} parent=11 // pred_fallthru
        _
      // Predicated region
      $region49: #{m2_forward.1} parent=11 // pred_check
        %p911 = pneg %p366
      $region50: #{m2_forward.1} parent=11 // pred_check_branch
        %913 = sbr.rel (%p911) target = $region52
      $region51: #{m2_forward.1} parent=11 // pred_region
        _
      $region52: #{m2_forward.1} parent=11 // pred_fallthru
        _
      // Predicated region
      $region53: #{m2_forward.1} parent=11 // pred_check
        %p914 = pneg %p387
      $region54: #{m2_forward.1} parent=11 // pred_check_branch
        %916 = sbr.rel (%p914) target = $region56
      $region55: #{m2_forward.1} parent=11 // pred_region
        _
      $region56: #{m2_forward.1} parent=11 // pred_fallthru
        _
      // Predicated region
      $region57: #{m2_forward.1} parent=11 // pred_check
        %p917 = pneg %p408
      $region58: #{m2_forward.1} parent=11 // pred_check_branch
        %919 = sbr.rel (%p917) target = $region60
      $region59: #{m2_forward.1} parent=11 // pred_region
        _
      $region60: #{m2_forward.1} parent=11 // pred_fallthru
        _
      // Predicated region
      $region61: #{m2_forward.1} parent=11 // pred_check
        %p920 = pneg %p429
      $region62: #{m2_forward.1} parent=11 // pred_check_branch
        %922 = sbr.rel (%p920) target = $region64
      $region63: #{m2_forward.1} parent=11 // pred_region
        _
      $region64: #{m2_forward.1} parent=11 // pred_fallthru
        _
      // Predicated region
      $region65: #{m2_forward.1} parent=11 // pred_check
        %p923 = pneg %p450
      $region66: #{m2_forward.1} parent=11 // pred_check_branch
        %925 = sbr.rel (%p923) target = $region68
      $region67: #{m2_forward.1} parent=11 // pred_region
        _
      $region68: #{m2_forward.1} parent=11 // pred_fallthru
        _
      // Predicated region
      $region69: #{m2_forward.1} parent=11 // pred_check
        %p926 = pneg %p471
      $region70: #{m2_forward.1} parent=11 // pred_check_branch
        %928 = sbr.rel (%p926) target = $region72
      $region71: #{m2_forward.1} parent=11 // pred_region
        _
      $region72: #{m2_forward.1} parent=11 // pred_fallthru
        _
      // Predicated region
      $region73: #{m2_forward.1} parent=11 // pred_check
        %p929 = pneg %p492
      $region74: #{m2_forward.1} parent=11 // pred_check_branch
        %931 = sbr.rel (%p929) target = $region76
      $region75: #{m2_forward.1} parent=11 // pred_region
        _
      $region76: #{m2_forward.1} parent=11 // pred_fallthru
        _
      // Predicated region
      $region77: #{m2_forward.1} parent=11 // pred_check
        %p932 = pneg %p513
      $region78: #{m2_forward.1} parent=11 // pred_check_branch
        %934 = sbr.rel (%p932) target = $region80
      $region79: #{m2_forward.1} parent=11 // pred_region
        _
      $region80: #{m2_forward.1} parent=11 // pred_fallthru
        _
      // Predicated region
      $region81: #{m2_forward.1} parent=11 // pred_check
        %p935 = pneg %p534
      $region82: #{m2_forward.1} parent=11 // pred_check_branch
        %937 = sbr.rel (%p935) target = $region84
      $region83: #{m2_forward.1} parent=11 // pred_region
        _
      $region84: #{m2_forward.1} parent=11 // pred_fallthru
        _
      // Predicated region
      $region85: #{m2_forward.1} parent=11 // pred_check
        %p938 = pneg %p555
      $region86: #{m2_forward.1} parent=11 // pred_check_branch
        %940 = sbr.rel (%p938) target = $region88
      $region87: #{m2_forward.1} parent=11 // pred_region
        _
      $region88: #{m2_forward.1} parent=11 // pred_fallthru
        _
      // Predicated region
      $region89: #{m2_forward.1} parent=11 // pred_check
        %p941 = pneg %p576
      $region90: #{m2_forward.1} parent=11 // pred_check_branch
        %943 = sbr.rel (%p941) target = $region92
      $region91: #{m2_forward.1} parent=11 // pred_region
        _
      $region92: #{m2_forward.1} parent=11 // pred_fallthru
        _
      // Predicated region
      $region93: #{m2_forward.1} parent=11 // pred_check
        %p944 = pneg %p597
      $region94: #{m2_forward.1} parent=11 // pred_check_branch
        %946 = sbr.rel (%p944) target = $region96
      $region95: #{m2_forward.1} parent=11 // pred_region
        _
      $region96: #{m2_forward.1} parent=11 // pred_fallthru
        _
      // Predicated region
      $region97: #{m2_forward.1} parent=11 // pred_check
        %p947 = pneg %p618
      $region98: #{m2_forward.1} parent=11 // pred_check_branch
        %949 = sbr.rel (%p947) target = $region100
      $region99: #{m2_forward.1} parent=11 // pred_region
        _
      $region100: #{m2_forward.1} parent=11 // pred_fallthru
        _
      // Predicated region
      $region101: #{m2_forward.1} parent=11 // pred_check
        %p950 = pneg %p639
      $region102: #{m2_forward.1} parent=11 // pred_check_branch
        %952 = sbr.rel (%p950) target = $region104
      $region103: #{m2_forward.1} parent=11 // pred_region
        _
      $region104: #{m2_forward.1} parent=11 // pred_fallthru
        _
      // Predicated region
      $region105: #{m2_forward.1} parent=11 // pred_check
        %p953 = pneg %p660
      $region106: #{m2_forward.1} parent=11 // pred_check_branch
        %955 = sbr.rel (%p953) target = $region108
      $region107: #{m2_forward.1} parent=11 // pred_region
        _
      $region108: #{m2_forward.1} parent=11 // pred_fallthru
        _
      // Predicated region
      $region109: #{m2_forward.1} parent=11 // pred_check
        %p956 = pneg %p681
      $region110: #{m2_forward.1} parent=11 // pred_check_branch
        %958 = sbr.rel (%p956) target = $region112
      $region111: #{m2_forward.1} parent=11 // pred_region
        _
      $region112: #{m2_forward.1} parent=11 // pred_fallthru
        _
      // Predicated region
      $region113: #{m2_forward.1} parent=11 // pred_check
        %p959 = pneg %p702
      $region114: #{m2_forward.1} parent=11 // pred_check_branch
        %961 = sbr.rel (%p959) target = $region116
      $region115: #{m2_forward.1} parent=11 // pred_region
        _
      $region116: #{m2_forward.1} parent=11 // pred_fallthru
        _
      // Predicated region
      $region117: #{m2_forward.1} parent=11 // pred_check
        %p962 = pneg %p723
      $region118: #{m2_forward.1} parent=11 // pred_check_branch
        %964 = sbr.rel (%p962) target = $region120
      $region119: #{m2_forward.1} parent=11 // pred_region
        _
      $region120: #{m2_forward.1} parent=11 // pred_fallthru
        _
      // Predicated region
      $region121: #{m2_forward.1} parent=11 // pred_check
        %p965 = pneg %p744
      $region122: #{m2_forward.1} parent=11 // pred_check_branch
        %967 = sbr.rel (%p965) target = $region124
      $region123: #{m2_forward.1} parent=11 // pred_region
        _
      $region124: #{m2_forward.1} parent=11 // pred_fallthru
        _
      // Predicated region
      $region125: #{m2_forward.1} parent=11 // pred_check
        %p968 = pneg %p765
      $region126: #{m2_forward.1} parent=11 // pred_check_branch
        %970 = sbr.rel (%p968) target = $region128
      $region127: #{m2_forward.1} parent=11 // pred_region
        _
      $region128: #{m2_forward.1} parent=11 // pred_fallthru
        _
    $region12: #{m2_forward.1} parent=5 // pred_fallthru
      _
    %p971 = scmp.lt.s32.totalorder %s78, 2
    // Predicated region
    $region129: #{m2_forward.1} parent=5 // pred_check
      %p972 = pneg %p971
    $region130: #{m2_forward.1} parent=5 // pred_check_branch
      %974 = sbr.rel (%p972) target = $region132
    $region131: #{m2_forward.1} parent=5 // pred_region
      // Predicated region
      $region133: #{m2_forward.1} parent=131 // pred_check
        %p975 = pneg %p98
      $region134: #{m2_forward.1} parent=131 // pred_check_branch
        %977 = sbr.rel (%p975) target = $region136
      $region135: #{m2_forward.1} parent=131 // pred_region
        %s978 = smul.u32 16, %s78
        %p979 = scmp.lt.s32.totalorder %s978, 31
        %s980 = scalar_select %p979, %s978, 31
        %s981 = smul.addr %s980, 7
        %s982 = smul.addr %s981, 8
        %s983 = scalar_lea.vmem %s1, %s982
        %s984 = smul.u32 16, %s78
      $region136: #{m2_forward.1} parent=131 // pred_fallthru
        _
      // Predicated region
      $region137: #{m2_forward.1} parent=131 // pred_check
        %p985 = pneg %p124
      $region138: #{m2_forward.1} parent=131 // pred_check_branch
        %987 = sbr.rel (%p985) target = $region140
      $region139: #{m2_forward.1} parent=131 // pred_region
        %s988 = smul.u32 16, %s78
        %p989 = scmp.lt.s32.totalorder %s988, 31
        %s990 = scalar_select %p989, %s988, 31
        %s991 = smul.addr %s990, 8
        %s992 = scalar_lea.vmem %s3, %s991
        %s993 = smul.u32 16, %s78
      $region140: #{m2_forward.1} parent=131 // pred_fallthru
        _
      // Predicated region
      $region141: #{m2_forward.1} parent=131 // pred_check
        %p994 = pneg %p150
      $region142: #{m2_forward.1} parent=131 // pred_check_branch
        %996 = sbr.rel (%p994) target = $region144
      $region143: #{m2_forward.1} parent=131 // pred_region
        %s997 = smul.u32 16, %s78
        %p998 = scmp.lt.s32.totalorder %s997, 31
        %s999 = scalar_select %p998, %s997, 31
        %s1000 = smul.addr %s999, 8
        %s1001 = scalar_lea.vmem %s5, %s1000
        %s1002 = smul.u32 16, %s78
      $region144: #{m2_forward.1} parent=131 // pred_fallthru
        _
    $region132: #{m2_forward.1} parent=5 // pred_fallthru
      _
    %p1003 = scmp.le.s32.totalorder 1, %s78
    %p1004 = scmp.lt.s32.totalorder %s78, 3
    %p1005 = pnand %p1003, %p1004
    %p1006 = pneg %p1005
    // Predicated region
    $region145: #{m2_forward.1} parent=5 // pred_check
      _
    $region146: #{m2_forward.1} parent=5 // pred_check_branch
      %1008 = sbr.rel (%p1005) target = $region148
    $region147: #{m2_forward.1} parent=5 // pred_region
      %s1009 = ssub.s32 %s78, 1
      %s1010 = smul.u32 16, %s83
      %p1011 = scmp.lt.s32.totalorder %s1010, 31
      %s1012 = scalar_select %p1011, %s1010, 31
      %s1013 = smul.addr %s1012, 7
      %s1014 = smul.addr %s1013, 8
      %s1015 = scalar_lea.vmem %s1, %s1014
      %p1016 = pneg %p104
      %p1017 = pneg %p101
      %s1018 = smul.u32 16, %s83
      %p1019 = scmp.lt.s32.totalorder %s1018, 31
      %s1020 = scalar_select %p1019, %s1018, 31
      %s1021 = smul.addr %s1020, 8
      %s1022 = scalar_lea.vmem %s3, %s1021
      %p1023 = pneg %p130
      %p1024 = pneg %p127
      %s1025 = smul.u32 16, %s83
      %p1026 = scmp.lt.s32.totalorder %s1025, 31
      %s1027 = scalar_select %p1026, %s1025, 31
      %s1028 = smul.addr %s1027, 8
      %s1029 = scalar_lea.vmem %s5, %s1028
      %p1030 = pneg %p156
      %p1031 = pneg %p153
      %p1032 = pneg %p177
      %p1033 = pneg %p174
      %p1034 = pneg %p198
      %p1035 = pneg %p195
      %p1036 = pneg %p219
      %p1037 = pneg %p216
      %p1038 = pneg %p240
      %p1039 = pneg %p237
      %p1040 = pneg %p261
      %p1041 = pneg %p258
      %p1042 = pneg %p282
      %p1043 = pneg %p279
      %p1044 = pneg %p303
      %p1045 = pneg %p300
      %p1046 = pneg %p324
      %p1047 = pneg %p321
      %p1048 = pneg %p345
      %p1049 = pneg %p342
      %p1050 = pneg %p366
      %p1051 = pneg %p363
      %p1052 = pneg %p387
      %p1053 = pneg %p384
      %p1054 = pneg %p408
      %p1055 = pneg %p405
      %p1056 = pneg %p429
      %p1057 = pneg %p426
      %p1058 = pneg %p450
      %p1059 = pneg %p447
      %p1060 = pneg %p471
      %p1061 = pneg %p468
      %p1062 = pneg %p492
      %p1063 = pneg %p489
      %p1064 = pneg %p513
      %p1065 = pneg %p510
      %p1066 = pneg %p534
      %p1067 = pneg %p531
      %p1068 = pneg %p555
      %p1069 = pneg %p552
      %p1070 = pneg %p576
      %p1071 = pneg %p573
      %p1072 = pneg %p597
      %p1073 = pneg %p594
      %p1074 = pneg %p618
      %p1075 = pneg %p615
      %p1076 = pneg %p639
      %p1077 = pneg %p636
      %p1078 = pneg %p660
      %p1079 = pneg %p657
      %p1080 = pneg %p681
      %p1081 = pneg %p678
      %p1082 = pneg %p702
      %p1083 = pneg %p699
      %p1084 = pneg %p723
      %p1085 = pneg %p720
      %p1086 = pneg %p744
      %p1087 = pneg %p741
      %p1088 = pneg %p765
      %p1089 = pneg %p762
      %p1090 = pneg %p791
      %p1091 = pneg %p788
      %s1092 = smul.u32 16, %s83
      %p1093 = scmp.lt.s32.totalorder %s1092, 31
      %s1094 = scalar_select %p1093, %s1092, 31
      %s1095 = smul.addr %s1094, 7
      %s1096 = smul.addr %s1095, 8
      %s1097 = scalar_lea.vmem %s65, %s1096
      %p1098 = pneg %p817
      %p1099 = pneg %p814
      %s1100 = smul.u32 16, %s83
      %p1101 = scmp.lt.s32.totalorder %s1100, 31
      %s1102 = scalar_select %p1101, %s1100, 31
      %s1103 = smul.addr %s1102, 8
      %s1104 = scalar_lea.vmem %s67, %s1103
      %p1105 = pneg %p843
      %p1106 = pneg %p840
      %s1107 = smul.u32 16, %s83
      %p1108 = scmp.lt.s32.totalorder %s1107, 31
      %s1109 = scalar_select %p1108, %s1107, 31
      %s1110 = smul.addr %s1109, 8
      %s1111 = scalar_lea.vmem %s69, %s1110
      %p1112 = pneg %p869
      %p1113 = pneg %p866
      %s1114 = smul.u32 16, %s83
      %p1115 = scmp.lt.s32.totalorder %s1114, 31
      %s1116 = scalar_select %p1115, %s1114, 31
      %s1117 = smul.addr %s1116, 8
      %s1118 = scalar_lea.vmem %s71, %s1117
      %s1119 = smul.u32 16, %s83
      %p1120 = scmp.lt.s32.totalorder %s1119, 31
      %s1121 = scalar_select %p1120, %s1119, 31
      %s1122 = smul.addr %s1121, 7
      %s1123 = smul.addr %s1122, 8
      %s1124 = scalar_lea.vmem %s1, %s1123
      %s1125 = smul.u32 16, %s83
      %s1126 = smul.u32 16, %s83
      %p1127 = scmp.lt.s32.totalorder %s1126, 31
      %s1128 = scalar_select %p1127, %s1126, 31
      %s1129 = smul.addr %s1128, 8
      %s1130 = scalar_lea.vmem %s3, %s1129
      %s1131 = smul.u32 16, %s83
      %s1132 = smul.u32 16, %s83
      %p1133 = scmp.lt.s32.totalorder %s1132, 31
      %s1134 = scalar_select %p1133, %s1132, 31
      %s1135 = smul.addr %s1134, 8
      %s1136 = scalar_lea.vmem %s5, %s1135
      %s1137 = smul.u32 16, %s83
      %s1138 = smul.u32 16, %s83
      %p1139 = scmp.lt.s32.totalorder %s1138, 31
      %s1140 = scalar_select %p1139, %s1138, 31
      %s1141 = smul.addr %s1140, 7
      %s1142 = smul.addr %s1141, 8
      %s1143 = scalar_lea.vmem %s65, %s1142
      %s1144 = smul.u32 16, %s83
      %s1145 = smul.u32 16, %s83
      %p1146 = scmp.lt.s32.totalorder %s1145, 31
      %s1147 = scalar_select %p1146, %s1145, 31
      %s1148 = smul.addr %s1147, 8
      %s1149 = scalar_lea.vmem %s67, %s1148
      %s1150 = smul.u32 16, %s83
      %s1151 = smul.u32 16, %s83
      %p1152 = scmp.lt.s32.totalorder %s1151, 31
      %s1153 = scalar_select %p1152, %s1151, 31
      %s1154 = smul.addr %s1153, 8
      %s1155 = scalar_lea.vmem %s69, %s1154
      %s1156 = smul.u32 16, %s83
      %s1157 = smul.u32 16, %s83
      %p1158 = scmp.lt.s32.totalorder %s1157, 31
      %s1159 = scalar_select %p1158, %s1157, 31
      %s1160 = smul.addr %s1159, 8
      %s1161 = scalar_lea.vmem %s71, %s1160
      %s1162 = smul.u32 16, %s83
      %v1164 = vld [vmem:[%s1124] sm:$0xff]
      %v1165 = vld [vmem:[%s1124 + $0x8] sm:$0xff]
      %v1166 = vld [vmem:[%s1124 + $0x10] sm:$0xff]
      %v1167 = vld [vmem:[%s1124 + $0x18] sm:$0xff]
      %v1168 = vld [vmem:[%s1124 + $0x20] sm:$0xff]
      %v1169 = vld [vmem:[%s1124 + $0x28] sm:$0xff]
      %v1170 = vld [vmem:[%s1124 + $0x30] sm:$0xff]
      %v1171 = vld [vmem:[%s1124 + $0x38] sm:$0xff]
      %v1172 = vld [vmem:[%s1124 + $0x40] sm:$0xff]
      %v1173 = vld [vmem:[%s1124 + $0x48] sm:$0xff]
      %v1174 = vld [vmem:[%s1124 + $0x50] sm:$0xff]
      %v1175 = vld [vmem:[%s1124 + $0x58] sm:$0xff]
      %v1176 = vld [vmem:[%s1124 + $0x60] sm:$0xff]
      %v1177 = vld [vmem:[%s1124 + $0x68] sm:$0xff]
      %v1178 = vld [vmem:[%s1124 + $0x70] sm:$0xff]
      %v1179 = vld [vmem:[%s1124 + $0x78] sm:$0xff]
      %v1180 = vld [vmem:[%s1124 + $0x80] sm:$0xff]
      %v1181 = vld [vmem:[%s1124 + $0x88] sm:$0xff]
      %v1182 = vld [vmem:[%s1124 + $0x90] sm:$0xff]
      %v1183 = vld [vmem:[%s1124 + $0x98] sm:$0xff]
      %v1184 = vld [vmem:[%s1124 + $0xa0] sm:$0xff]
      %v1185 = vld [vmem:[%s1124 + $0xa8] sm:$0xff]
      %v1186 = vld [vmem:[%s1124 + $0xb0] sm:$0xff]
      %v1187 = vld [vmem:[%s1124 + $0xb8] sm:$0xff]
      %v1188 = vld [vmem:[%s1124 + $0xc0] sm:$0xff]
      %v1189 = vld [vmem:[%s1124 + $0xc8] sm:$0xff]
      %v1190 = vld [vmem:[%s1124 + $0xd0] sm:$0xff]
      %v1191 = vld [vmem:[%s1124 + $0xd8] sm:$0xff]
      %v1192 = vld [vmem:[%s1124 + $0xe0] sm:$0xff]
      %v1193 = vld [vmem:[%s1124 + $0xe8] sm:$0xff]
      %v1194 = vld [vmem:[%s1124 + $0xf0] sm:$0xff]
      %v1195 = vld [vmem:[%s1124 + $0xf8] sm:$0xff]
      %v1196 = vld [vmem:[%s1124 + $0x100] sm:$0xff]
      %v1197 = vld [vmem:[%s1124 + $0x108] sm:$0xff]
      %v1198 = vld [vmem:[%s1124 + $0x110] sm:$0xff]
      %v1199 = vld [vmem:[%s1124 + $0x118] sm:$0xff]
      %v1200 = vld [vmem:[%s1124 + $0x120] sm:$0xff]
      %v1201 = vld [vmem:[%s1124 + $0x128] sm:$0xff]
      %v1202 = vld [vmem:[%s1124 + $0x130] sm:$0xff]
      %v1203 = vld [vmem:[%s1124 + $0x138] sm:$0xff]
      %v1204 = vld [vmem:[%s1124 + $0x140] sm:$0xff]
      %v1205 = vld [vmem:[%s1124 + $0x148] sm:$0xff]
      %v1206 = vld [vmem:[%s1124 + $0x150] sm:$0xff]
      %v1207 = vld [vmem:[%s1124 + $0x158] sm:$0xff]
      %v1208 = vld [vmem:[%s1124 + $0x160] sm:$0xff]
      %v1209 = vld [vmem:[%s1124 + $0x168] sm:$0xff]
      %v1210 = vld [vmem:[%s1124 + $0x170] sm:$0xff]
      %v1211 = vld [vmem:[%s1124 + $0x178] sm:$0xff]
      %v1212 = vld [vmem:[%s1124 + $0x180] sm:$0xff]
      %v1213 = vld [vmem:[%s1124 + $0x188] sm:$0xff]
      %v1214 = vld [vmem:[%s1124 + $0x190] sm:$0xff]
      %v1215 = vld [vmem:[%s1124 + $0x198] sm:$0xff]
      %v1216 = vld [vmem:[%s1124 + $0x1a0] sm:$0xff]
      %v1217 = vld [vmem:[%s1124 + $0x1a8] sm:$0xff]
      %v1218 = vld [vmem:[%s1124 + $0x1b0] sm:$0xff]
      %v1219 = vld [vmem:[%s1124 + $0x1b8] sm:$0xff]
      %v1220 = vld [vmem:[%s1124 + $0x1c0] sm:$0xff]
      %v1221 = vld [vmem:[%s1124 + $0x1c8] sm:$0xff]
      %v1222 = vld [vmem:[%s1124 + $0x1d0] sm:$0xff]
      %v1223 = vld [vmem:[%s1124 + $0x1d8] sm:$0xff]
      %v1224 = vld [vmem:[%s1124 + $0x1e0] sm:$0xff]
      %v1225 = vld [vmem:[%s1124 + $0x1e8] sm:$0xff]
      %v1226 = vld [vmem:[%s1124 + $0x1f0] sm:$0xff]
      %v1227 = vld [vmem:[%s1124 + $0x1f8] sm:$0xff]
      %v1228 = vld [vmem:[%s1124 + $0x200] sm:$0xff]
      %v1229 = vld [vmem:[%s1124 + $0x208] sm:$0xff]
      %v1230 = vld [vmem:[%s1124 + $0x210] sm:$0xff]
      %v1231 = vld [vmem:[%s1124 + $0x218] sm:$0xff]
      %v1232 = vld [vmem:[%s1124 + $0x220] sm:$0xff]
      %v1233 = vld [vmem:[%s1124 + $0x228] sm:$0xff]
      %v1234 = vld [vmem:[%s1124 + $0x230] sm:$0xff]
      %v1235 = vld [vmem:[%s1124 + $0x238] sm:$0xff]
      %v1236 = vld [vmem:[%s1124 + $0x240] sm:$0xff]
      %v1237 = vld [vmem:[%s1124 + $0x248] sm:$0xff]
      %v1238 = vld [vmem:[%s1124 + $0x250] sm:$0xff]
      %v1239 = vld [vmem:[%s1124 + $0x258] sm:$0xff]
      %v1240 = vld [vmem:[%s1124 + $0x260] sm:$0xff]
      %v1241 = vld [vmem:[%s1124 + $0x268] sm:$0xff]
      %v1242 = vld [vmem:[%s1124 + $0x270] sm:$0xff]
      %v1243 = vld [vmem:[%s1124 + $0x278] sm:$0xff]
      %v1244 = vld [vmem:[%s1124 + $0x280] sm:$0xff]
      %v1245 = vld [vmem:[%s1124 + $0x288] sm:$0xff]
      %v1246 = vld [vmem:[%s1124 + $0x290] sm:$0xff]
      %v1247 = vld [vmem:[%s1124 + $0x298] sm:$0xff]
      %v1248 = vld [vmem:[%s1124 + $0x2a0] sm:$0xff]
      %v1249 = vld [vmem:[%s1124 + $0x2a8] sm:$0xff]
      %v1250 = vld [vmem:[%s1124 + $0x2b0] sm:$0xff]
      %v1251 = vld [vmem:[%s1124 + $0x2b8] sm:$0xff]
      %v1252 = vld [vmem:[%s1124 + $0x2c0] sm:$0xff]
      %v1253 = vld [vmem:[%s1124 + $0x2c8] sm:$0xff]
      %v1254 = vld [vmem:[%s1124 + $0x2d0] sm:$0xff]
      %v1255 = vld [vmem:[%s1124 + $0x2d8] sm:$0xff]
      %v1256 = vld [vmem:[%s1124 + $0x2e0] sm:$0xff]
      %v1257 = vld [vmem:[%s1124 + $0x2e8] sm:$0xff]
      %v1258 = vld [vmem:[%s1124 + $0x2f0] sm:$0xff]
      %v1259 = vld [vmem:[%s1124 + $0x2f8] sm:$0xff]
      %v1260 = vld [vmem:[%s1124 + $0x300] sm:$0xff]
      %v1261 = vld [vmem:[%s1124 + $0x308] sm:$0xff]
      %v1262 = vld [vmem:[%s1124 + $0x310] sm:$0xff]
      %v1263 = vld [vmem:[%s1124 + $0x318] sm:$0xff]
      %v1264 = vld [vmem:[%s1124 + $0x320] sm:$0xff]
      %v1265 = vld [vmem:[%s1124 + $0x328] sm:$0xff]
      %v1266 = vld [vmem:[%s1124 + $0x330] sm:$0xff]
      %v1267 = vld [vmem:[%s1124 + $0x338] sm:$0xff]
      %v1268 = vld [vmem:[%s1124 + $0x340] sm:$0xff]
      %v1269 = vld [vmem:[%s1124 + $0x348] sm:$0xff]
      %v1270 = vld [vmem:[%s1124 + $0x350] sm:$0xff]
      %v1271 = vld [vmem:[%s1124 + $0x358] sm:$0xff]
      %v1272 = vld [vmem:[%s1124 + $0x360] sm:$0xff]
      %v1273 = vld [vmem:[%s1124 + $0x368] sm:$0xff]
      %v1274 = vld [vmem:[%s1124 + $0x370] sm:$0xff]
      %v1275 = vld [vmem:[%s1124 + $0x378] sm:$0xff]
      %v1276 = vpack.c.bf16 %v1171, %v1164
      %v1277 = vpack.c.bf16 %v1172, %v1165
      %v1278 = vpack.c.bf16 %v1173, %v1166
      %v1279 = vpack.c.bf16 %v1174, %v1167
      %v1280 = vpack.c.bf16 %v1175, %v1168
      %v1281 = vpack.c.bf16 %v1176, %v1169
      %v1282 = vpack.c.bf16 %v1177, %v1170
      %v1283 = vpack.c.bf16 %v1185, %v1178
      %v1284 = vpack.c.bf16 %v1186, %v1179
      %v1285 = vpack.c.bf16 %v1187, %v1180
      %v1286 = vpack.c.bf16 %v1188, %v1181
      %v1287 = vpack.c.bf16 %v1189, %v1182
      %v1288 = vpack.c.bf16 %v1190, %v1183
      %v1289 = vpack.c.bf16 %v1191, %v1184
      %v1290 = vpack.c.bf16 %v1199, %v1192
      %v1291 = vpack.c.bf16 %v1200, %v1193
      %v1292 = vpack.c.bf16 %v1201, %v1194
      %v1293 = vpack.c.bf16 %v1202, %v1195
      %v1294 = vpack.c.bf16 %v1203, %v1196
      %v1295 = vpack.c.bf16 %v1204, %v1197
      %v1296 = vpack.c.bf16 %v1205, %v1198
      %v1297 = vpack.c.bf16 %v1213, %v1206
      %v1298 = vpack.c.bf16 %v1214, %v1207
      %v1299 = vpack.c.bf16 %v1215, %v1208
      %v1300 = vpack.c.bf16 %v1216, %v1209
      %v1301 = vpack.c.bf16 %v1217, %v1210
      %v1302 = vpack.c.bf16 %v1218, %v1211
      %v1303 = vpack.c.bf16 %v1219, %v1212
      %v1304 = vpack.c.bf16 %v1227, %v1220
      %v1305 = vpack.c.bf16 %v1228, %v1221
      %v1306 = vpack.c.bf16 %v1229, %v1222
      %v1307 = vpack.c.bf16 %v1230, %v1223
      %v1308 = vpack.c.bf16 %v1231, %v1224
      %v1309 = vpack.c.bf16 %v1232, %v1225
      %v1310 = vpack.c.bf16 %v1233, %v1226
      %v1311 = vpack.c.bf16 %v1241, %v1234
      %v1312 = vpack.c.bf16 %v1242, %v1235
      %v1313 = vpack.c.bf16 %v1243, %v1236
      %v1314 = vpack.c.bf16 %v1244, %v1237
      %v1315 = vpack.c.bf16 %v1245, %v1238
      %v1316 = vpack.c.bf16 %v1246, %v1239
      %v1317 = vpack.c.bf16 %v1247, %v1240
      %v1318 = vpack.c.bf16 %v1255, %v1248
      %v1319 = vpack.c.bf16 %v1256, %v1249
      %v1320 = vpack.c.bf16 %v1257, %v1250
      %v1321 = vpack.c.bf16 %v1258, %v1251
      %v1322 = vpack.c.bf16 %v1259, %v1252
      %v1323 = vpack.c.bf16 %v1260, %v1253
      %v1324 = vpack.c.bf16 %v1261, %v1254
      %v1325 = vpack.c.bf16 %v1269, %v1262
      %v1326 = vpack.c.bf16 %v1270, %v1263
      %v1327 = vpack.c.bf16 %v1271, %v1264
      %v1328 = vpack.c.bf16 %v1272, %v1265
      %v1329 = vpack.c.bf16 %v1273, %v1266
      %v1330 = vpack.c.bf16 %v1274, %v1267
      %v1331 = vpack.c.bf16 %v1275, %v1268
      %v1332 = vld [vmem:[%s7] sm:$0xff]
      %v1333 = vld [vmem:[%s7 + $0x8] sm:$0xff]
      %v1334 = vld [vmem:[%s7 + $0x10] sm:$0xff]
      %v1335 = vld [vmem:[%s7 + $0x18] sm:$0xff]
      %v1336 = vld [vmem:[%s7 + $0x20] sm:$0xff]
      %v1337 = vld [vmem:[%s7 + $0x28] sm:$0xff]
      %v1338 = vld [vmem:[%s7 + $0x30] sm:$0xff]
      %v1339 = vld [vmem:[%s7 + $0x38] sm:$0xff]
      %v1340 = vld [vmem:[%s7 + $0x40] sm:$0xff]
      %v1341 = vld [vmem:[%s7 + $0x48] sm:$0xff]
      %v1342 = vld [vmem:[%s7 + $0x50] sm:$0xff]
      %v1343 = vld [vmem:[%s7 + $0x58] sm:$0xff]
      %v1344 = vld [vmem:[%s7 + $0x60] sm:$0xff]
      %v1345 = vld [vmem:[%s7 + $0x68] sm:$0xff]
      %v1346 = vld [vmem:[%s7 + $0x70] sm:$0xff]
      %v1347 = vld [vmem:[%s7 + $0x78] sm:$0xff]
      %v1348 = vld [vmem:[%s7 + $0x80] sm:$0xff]
      %v1349 = vld [vmem:[%s7 + $0x88] sm:$0xff]
      %v1350 = vld [vmem:[%s7 + $0x90] sm:$0xff]
      %v1351 = vld [vmem:[%s7 + $0x98] sm:$0xff]
      %v1352 = vld [vmem:[%s7 + $0xa0] sm:$0xff]
      %v1353 = vld [vmem:[%s7 + $0xa8] sm:$0xff]
      %v1354 = vld [vmem:[%s7 + $0xb0] sm:$0xff]
      %v1355 = vld [vmem:[%s7 + $0xb8] sm:$0xff]
      %v1356 = vld [vmem:[%s7 + $0xc0] sm:$0xff]
      %v1357 = vld [vmem:[%s7 + $0xc8] sm:$0xff]
      %v1358 = vld [vmem:[%s7 + $0xd0] sm:$0xff]
      %v1359 = vld [vmem:[%s7 + $0xd8] sm:$0xff]
      %v1360 = vld [vmem:[%s7 + $0xe0] sm:$0xff]
      %v1361 = vld [vmem:[%s7 + $0xe8] sm:$0xff]
      %v1362 = vld [vmem:[%s7 + $0xf0] sm:$0xff]
      %v1363 = vld [vmem:[%s7 + $0xf8] sm:$0xff]
      %v1364 = vld [vmem:[%s7 + $0x100] sm:$0xff]
      %v1365 = vld [vmem:[%s7 + $0x108] sm:$0xff]
      %v1366 = vld [vmem:[%s7 + $0x110] sm:$0xff]
      %v1367 = vld [vmem:[%s7 + $0x118] sm:$0xff]
      %v1368 = vld [vmem:[%s7 + $0x120] sm:$0xff]
      %v1369 = vld [vmem:[%s7 + $0x128] sm:$0xff]
      %v1370 = vld [vmem:[%s7 + $0x130] sm:$0xff]
      %v1371 = vld [vmem:[%s7 + $0x138] sm:$0xff]
      %v1372 = vld [vmem:[%s7 + $0x140] sm:$0xff]
      %v1373 = vld [vmem:[%s7 + $0x148] sm:$0xff]
      %v1374 = vld [vmem:[%s7 + $0x150] sm:$0xff]
      %v1375 = vld [vmem:[%s7 + $0x158] sm:$0xff]
      %v1376 = vld [vmem:[%s7 + $0x160] sm:$0xff]
      %v1377 = vld [vmem:[%s7 + $0x168] sm:$0xff]
      %v1378 = vld [vmem:[%s7 + $0x170] sm:$0xff]
      %v1379 = vld [vmem:[%s7 + $0x178] sm:$0xff]
      %v1380 = vld [vmem:[%s7 + $0x180] sm:$0xff]
      %v1381 = vld [vmem:[%s7 + $0x188] sm:$0xff]
      %v1382 = vld [vmem:[%s7 + $0x190] sm:$0xff]
      %v1383 = vld [vmem:[%s7 + $0x198] sm:$0xff]
      %v1384 = vld [vmem:[%s7 + $0x1a0] sm:$0xff]
      %v1385 = vld [vmem:[%s7 + $0x1a8] sm:$0xff]
      %v1386 = vld [vmem:[%s7 + $0x1b0] sm:$0xff]
      %v1387 = vld [vmem:[%s7 + $0x1b8] sm:$0xff]
      %v1388 = vld [vmem:[%s7 + $0x1c0] sm:$0xff]
      %v1389 = vld [vmem:[%s7 + $0x1c8] sm:$0xff]
      %v1390 = vld [vmem:[%s7 + $0x1d0] sm:$0xff]
      %v1391 = vld [vmem:[%s7 + $0x1d8] sm:$0xff]
      %v1392 = vld [vmem:[%s7 + $0x1e0] sm:$0xff]
      %v1393 = vld [vmem:[%s7 + $0x1e8] sm:$0xff]
      %v1394 = vld [vmem:[%s7 + $0x1f0] sm:$0xff]
      %v1395 = vld [vmem:[%s7 + $0x1f8] sm:$0xff]
      %v1396 = vld [vmem:[%s7 + $0x200] sm:$0xff]
      %v1397 = vld [vmem:[%s7 + $0x208] sm:$0xff]
      %v1398 = vld [vmem:[%s7 + $0x210] sm:$0xff]
      %v1399 = vld [vmem:[%s7 + $0x218] sm:$0xff]
      %v1400 = vld [vmem:[%s7 + $0x220] sm:$0xff]
      %v1401 = vld [vmem:[%s7 + $0x228] sm:$0xff]
      %v1402 = vld [vmem:[%s7 + $0x230] sm:$0xff]
      %v1403 = vld [vmem:[%s7 + $0x238] sm:$0xff]
      %v1404 = vld [vmem:[%s7 + $0x240] sm:$0xff]
      %v1405 = vld [vmem:[%s7 + $0x248] sm:$0xff]
      %v1406 = vld [vmem:[%s7 + $0x250] sm:$0xff]
      %v1407 = vld [vmem:[%s7 + $0x258] sm:$0xff]
      %v1408 = vld [vmem:[%s7 + $0x260] sm:$0xff]
      %v1409 = vld [vmem:[%s7 + $0x268] sm:$0xff]
      %v1410 = vld [vmem:[%s7 + $0x270] sm:$0xff]
      %v1411 = vld [vmem:[%s7 + $0x278] sm:$0xff]
      %v1412 = vld [vmem:[%s7 + $0x280] sm:$0xff]
      %v1413 = vld [vmem:[%s7 + $0x288] sm:$0xff]
      %v1414 = vld [vmem:[%s7 + $0x290] sm:$0xff]
      %v1415 = vld [vmem:[%s7 + $0x298] sm:$0xff]
      %v1416 = vld [vmem:[%s7 + $0x2a0] sm:$0xff]
      %v1417 = vld [vmem:[%s7 + $0x2a8] sm:$0xff]
      %v1418 = vld [vmem:[%s7 + $0x2b0] sm:$0xff]
      %v1419 = vld [vmem:[%s7 + $0x2b8] sm:$0xff]
      %v1420 = vld [vmem:[%s7 + $0x2c0] sm:$0xff]
      %v1421 = vld [vmem:[%s7 + $0x2c8] sm:$0xff]
      %v1422 = vld [vmem:[%s7 + $0x2d0] sm:$0xff]
      %v1423 = vld [vmem:[%s7 + $0x2d8] sm:$0xff]
      %v1424 = vld [vmem:[%s7 + $0x2e0] sm:$0xff]
      %v1425 = vld [vmem:[%s7 + $0x2e8] sm:$0xff]
      %v1426 = vld [vmem:[%s7 + $0x2f0] sm:$0xff]
      %v1427 = vld [vmem:[%s7 + $0x2f8] sm:$0xff]
      %v1428 = vld [vmem:[%s7 + $0x300] sm:$0xff]
      %v1429 = vld [vmem:[%s7 + $0x308] sm:$0xff]
      %v1430 = vpack.c.bf16 %v1333, %v1332
      %v1431 = vpack.c.bf16 %v1335, %v1334
      %v1432 = vpack.c.bf16 %v1337, %v1336
      %v1433 = vpack.c.bf16 %v1339, %v1338
      %v1434 = vpack.c.bf16 %v1341, %v1340
      %v1435 = vpack.c.bf16 %v1343, %v1342
      %v1436 = vpack.c.bf16 %v1345, %v1344
      %v1437 = vpack.c.bf16 %v1347, %v1346
      %v1438 = vpack.c.bf16 %v1349, %v1348
      %v1439 = vpack.c.bf16 %v1351, %v1350
      %v1440 = vpack.c.bf16 %v1353, %v1352
      %v1441 = vpack.c.bf16 %v1355, %v1354
      %v1442 = vpack.c.bf16 %v1357, %v1356
      %v1443 = vpack.c.bf16 %v1359, %v1358
      %v1444 = vpack.c.bf16 %v1361, %v1360
      %v1445 = vpack.c.bf16 %v1363, %v1362
      %v1446 = vpack.c.bf16 %v1365, %v1364
      %v1447 = vpack.c.bf16 %v1367, %v1366
      %v1448 = vpack.c.bf16 %v1369, %v1368
      %v1449 = vpack.c.bf16 %v1371, %v1370
      %v1450 = vpack.c.bf16 %v1373, %v1372
      %v1451 = vpack.c.bf16 %v1375, %v1374
      %v1452 = vpack.c.bf16 %v1377, %v1376
      %v1453 = vpack.c.bf16 %v1379, %v1378
      %v1454 = vpack.c.bf16 %v1381, %v1380
      %v1455 = vpack.c.bf16 %v1383, %v1382
      %v1456 = vpack.c.bf16 %v1385, %v1384
      %v1457 = vpack.c.bf16 %v1387, %v1386
      %v1458 = vpack.c.bf16 %v1389, %v1388
      %v1459 = vpack.c.bf16 %v1391, %v1390
      %v1460 = vpack.c.bf16 %v1393, %v1392
      %v1461 = vpack.c.bf16 %v1395, %v1394
      %v1462 = vpack.c.bf16 %v1397, %v1396
      %v1463 = vpack.c.bf16 %v1399, %v1398
      %v1464 = vpack.c.bf16 %v1401, %v1400
      %v1465 = vpack.c.bf16 %v1403, %v1402
      %v1466 = vpack.c.bf16 %v1405, %v1404
      %v1467 = vpack.c.bf16 %v1407, %v1406
      %v1468 = vpack.c.bf16 %v1409, %v1408
      %v1469 = vpack.c.bf16 %v1411, %v1410
      %v1470 = vpack.c.bf16 %v1413, %v1412
      %v1471 = vpack.c.bf16 %v1415, %v1414
      %v1472 = vpack.c.bf16 %v1417, %v1416
      %v1473 = vpack.c.bf16 %v1419, %v1418
      %v1474 = vpack.c.bf16 %v1421, %v1420
      %v1475 = vpack.c.bf16 %v1423, %v1422
      %v1476 = vpack.c.bf16 %v1425, %v1424
      %v1477 = vpack.c.bf16 %v1427, %v1426
      %v1478 = vpack.c.bf16 %v1429, %v1428
      %v1479 = vld [vmem:[%s9] sm:$0x1]
      %v1481 = vlaneseq
      %v1482 = vshrl.u32 %v1481, 7
      %v1483 = vsub.s32 0, %v1482
      %v1484 = vrot.slane %v1479, %v1483
      %vm1486 = vcmask 130048
      %v1488 = vsel %vm1486, %v1282, 0
      %v1491 = vsel %vm1486, %v1289, 0
      %v1494 = vsel %vm1486, %v1296, 0
      %v1497 = vsel %vm1486, %v1303, 0
      %v1500 = vsel %vm1486, %v1310, 0
      %v1503 = vsel %vm1486, %v1317, 0
      %v1506 = vsel %vm1486, %v1324, 0
      %v1509 = vsel %vm1486, %v1331, 0
      %1511 = vmatprep.subr.bf16.mxu0 0
      %1512 = vmatpush1.bf16.msra.mxu0 %v1437
      %1513 = vmatprep.subr.bf16.mxu0 0
      %1514 = vmatpush1.bf16.msra.mxu0 %v1436
      %1515 = vmatprep.subr.bf16.mxu0 0
      %1516 = vmatpush1.bf16.msra.mxu0 %v1435
      %1517 = vmatprep.subr.bf16.mxu0 0
      %1518 = vmatpush1.bf16.msra.mxu0 %v1434
      %1519 = vmatprep.subr.bf16.mxu0 0
      %1520 = vmatpush1.bf16.msra.mxu0 %v1433
      %1521 = vmatprep.subr.bf16.mxu0 0
      %1522 = vmatpush1.bf16.msra.mxu0 %v1432
      %1523 = vmatprep.subr.bf16.mxu0 0
      %1524 = vmatpush1.bf16.msra.mxu0 %v1431
      %1525 = vmatprep.subr.bf16.mxu0 0
      %1526 = vmatpush1.bf16.msra.mxu0 %v1430
      %1527 = vmatprep.subr.bf16.mxu0 0
      %1528 = vmatpush2.bf16.msra.mxu0 %v1445
      %1529 = vmatprep.subr.bf16.mxu0 0
      %1530 = vmatpush2.bf16.msra.mxu0 %v1444
      %1531 = vmatprep.subr.bf16.mxu0 0
      %1532 = vmatpush2.bf16.msra.mxu0 %v1443
      %1533 = vmatprep.subr.bf16.mxu0 0
      %1534 = vmatpush2.bf16.msra.mxu0 %v1442
      %1535 = vmatprep.subr.bf16.mxu0 0
      %1536 = vmatpush2.bf16.msra.mxu0 %v1441
      %1537 = vmatprep.subr.bf16.mxu0 0
      %1538 = vmatpush2.bf16.msra.mxu0 %v1440
      %1539 = vmatprep.subr.bf16.mxu0 0
      %1540 = vmatpush2.bf16.msra.mxu0 %v1439
      %1541 = vmatprep.subr.bf16.mxu0 0
      %1542 = vmatpush2.bf16.msra.mxu0 %v1438
      %1543 = vmatprep.mubr.bf16.mxu0 %v1277
      %1544 = vmatmul.mubr.bf16.gmra.mxu0 %v1276
      %v1545 = vpop.f32.mrf.mxu0
      %v1546 = vadd.f32 %v1484, %v1545
      %v1547 = vpop.f32.mrf.mxu0
      %v1548 = vpop.f32.mrf.mxu0
      %v1549 = vadd.f32 %v1484, %v1548
      %v1550 = vpop.f32.mrf.mxu0
      %1551 = vmatprep.mubr.bf16.mxu0 %v1284
      %1552 = vmatmul.mubr.bf16.gmra.mxu0 %v1283
      %v1553 = vpop.f32.mrf.mxu0
      %v1554 = vadd.f32 %v1484, %v1553
      %v1555 = vpop.f32.mrf.mxu0
      %v1556 = vpop.f32.mrf.mxu0
      %v1557 = vadd.f32 %v1484, %v1556
      %v1558 = vpop.f32.mrf.mxu0
      %1559 = vmatprep.mubr.bf16.mxu0 %v1291
      %1560 = vmatmul.mubr.bf16.gmra.mxu0 %v1290
      %v1561 = vpop.f32.mrf.mxu0
      %v1562 = vadd.f32 %v1484, %v1561
      %v1563 = vpop.f32.mrf.mxu0
      %v1564 = vpop.f32.mrf.mxu0
      %v1565 = vadd.f32 %v1484, %v1564
      %v1566 = vpop.f32.mrf.mxu0
      %1567 = vmatprep.mubr.bf16.mxu0 %v1298
      %1568 = vmatmul.mubr.bf16.gmra.mxu0 %v1297
      %v1569 = vpop.f32.mrf.mxu0
      %v1570 = vadd.f32 %v1484, %v1569
      %v1571 = vpop.f32.mrf.mxu0
      %v1572 = vpop.f32.mrf.mxu0
      %v1573 = vadd.f32 %v1484, %v1572
      %v1574 = vpop.f32.mrf.mxu0
      %1575 = vmatprep.mubr.bf16.mxu0 %v1305
      %1576 = vmatmul.mubr.bf16.gmra.mxu0 %v1304
      %v1577 = vpop.f32.mrf.mxu0
      %v1578 = vadd.f32 %v1484, %v1577
      %v1579 = vpop.f32.mrf.mxu0
      %v1580 = vpop.f32.mrf.mxu0
      %v1581 = vadd.f32 %v1484, %v1580
      %v1582 = vpop.f32.mrf.mxu0
      %1583 = vmatprep.mubr.bf16.mxu0 %v1312
      %1584 = vmatmul.mubr.bf16.gmra.mxu0 %v1311
      %v1585 = vpop.f32.mrf.mxu0
      %v1586 = vadd.f32 %v1484, %v1585
      %v1587 = vpop.f32.mrf.mxu0
      %v1588 = vpop.f32.mrf.mxu0
      %v1589 = vadd.f32 %v1484, %v1588
      %v1590 = vpop.f32.mrf.mxu0
      %1591 = vmatprep.mubr.bf16.mxu0 %v1319
      %1592 = vmatmul.mubr.bf16.gmra.mxu0 %v1318
      %v1593 = vpop.f32.mrf.mxu0
      %v1594 = vadd.f32 %v1484, %v1593
      %v1595 = vpop.f32.mrf.mxu0
      %v1596 = vpop.f32.mrf.mxu0
      %v1597 = vadd.f32 %v1484, %v1596
      %v1598 = vpop.f32.mrf.mxu0
      %1599 = vmatprep.mubr.bf16.mxu0 %v1326
      %1600 = vmatmul.mubr.bf16.gmra.mxu0 %v1325
      %v1601 = vpop.f32.mrf.mxu0
      %v1602 = vadd.f32 %v1484, %v1601
      %v1603 = vpop.f32.mrf.mxu0
      %v1604 = vpop.f32.mrf.mxu0
      %v1605 = vadd.f32 %v1484, %v1604
      %v1606 = vpop.f32.mrf.mxu0
      %1607 = vdwg.mxu0
      %1608 = vmatprep.subr.bf16.mxu0 0
      %1609 = vmatpush1.bf16.msra.mxu0 %v1453
      %1610 = vmatprep.subr.bf16.mxu0 0
      %1611 = vmatpush1.bf16.msra.mxu0 %v1452
      %1612 = vmatprep.subr.bf16.mxu0 0
      %1613 = vmatpush1.bf16.msra.mxu0 %v1451
      %1614 = vmatprep.subr.bf16.mxu0 0
      %1615 = vmatpush1.bf16.msra.mxu0 %v1450
      %1616 = vmatprep.subr.bf16.mxu0 0
      %1617 = vmatpush1.bf16.msra.mxu0 %v1449
      %1618 = vmatprep.subr.bf16.mxu0 0
      %1619 = vmatpush1.bf16.msra.mxu0 %v1448
      %1620 = vmatprep.subr.bf16.mxu0 0
      %1621 = vmatpush1.bf16.msra.mxu0 %v1447
      %1622 = vmatprep.subr.bf16.mxu0 0
      %1623 = vmatpush1.bf16.msra.mxu0 %v1446
      %1624 = vmatprep.subr.bf16.mxu0 0
      %1625 = vmatpush2.bf16.msra.mxu0 %v1461
      %1626 = vmatprep.subr.bf16.mxu0 0
      %1627 = vmatpush2.bf16.msra.mxu0 %v1460
      %1628 = vmatprep.subr.bf16.mxu0 0
      %1629 = vmatpush2.bf16.msra.mxu0 %v1459
      %1630 = vmatprep.subr.bf16.mxu0 0
      %1631 = vmatpush2.bf16.msra.mxu0 %v1458
      %1632 = vmatprep.subr.bf16.mxu0 0
      %1633 = vmatpush2.bf16.msra.mxu0 %v1457
      %1634 = vmatprep.subr.bf16.mxu0 0
      %1635 = vmatpush2.bf16.msra.mxu0 %v1456
      %1636 = vmatprep.subr.bf16.mxu0 0
      %1637 = vmatpush2.bf16.msra.mxu0 %v1455
      %1638 = vmatprep.subr.bf16.mxu0 0
      %1639 = vmatpush2.bf16.msra.mxu0 %v1454
      %1640 = vmatprep.mubr.bf16.mxu0 %v1279
      %1641 = vmatmul.mubr.bf16.gmra.mxu0 %v1278
      %v1642 = vpop.f32.mrf.mxu0
      %v1643 = vadd.f32 %v1546, %v1642
      %v1644 = vpop.f32.mrf.mxu0
      %v1645 = vpop.f32.mrf.mxu0
      %v1646 = vadd.f32 %v1549, %v1645
      %v1647 = vpop.f32.mrf.mxu0
      %1648 = vmatprep.mubr.bf16.mxu0 %v1286
      %1649 = vmatmul.mubr.bf16.gmra.mxu0 %v1285
      %v1650 = vpop.f32.mrf.mxu0
      %v1651 = vadd.f32 %v1554, %v1650
      %v1652 = vpop.f32.mrf.mxu0
      %v1653 = vpop.f32.mrf.mxu0
      %v1654 = vadd.f32 %v1557, %v1653
      %v1655 = vpop.f32.mrf.mxu0
      %1656 = vmatprep.mubr.bf16.mxu0 %v1293
      %1657 = vmatmul.mubr.bf16.gmra.mxu0 %v1292
      %v1658 = vpop.f32.mrf.mxu0
      %v1659 = vadd.f32 %v1562, %v1658
      %v1660 = vpop.f32.mrf.mxu0
      %v1661 = vpop.f32.mrf.mxu0
      %v1662 = vadd.f32 %v1565, %v1661
      %v1663 = vpop.f32.mrf.mxu0
      %1664 = vmatprep.mubr.bf16.mxu0 %v1300
      %1665 = vmatmul.mubr.bf16.gmra.mxu0 %v1299
      %v1666 = vpop.f32.mrf.mxu0
      %v1667 = vadd.f32 %v1570, %v1666
      %v1668 = vpop.f32.mrf.mxu0
      %v1669 = vpop.f32.mrf.mxu0
      %v1670 = vadd.f32 %v1573, %v1669
      %v1671 = vpop.f32.mrf.mxu0
      %1672 = vmatprep.mubr.bf16.mxu0 %v1307
      %1673 = vmatmul.mubr.bf16.gmra.mxu0 %v1306
      %v1674 = vpop.f32.mrf.mxu0
      %v1675 = vadd.f32 %v1578, %v1674
      %v1676 = vpop.f32.mrf.mxu0
      %v1677 = vpop.f32.mrf.mxu0
      %v1678 = vadd.f32 %v1581, %v1677
      %v1679 = vpop.f32.mrf.mxu0
      %1680 = vmatprep.mubr.bf16.mxu0 %v1314
      %1681 = vmatmul.mubr.bf16.gmra.mxu0 %v1313
      %v1682 = vpop.f32.mrf.mxu0
      %v1683 = vadd.f32 %v1586, %v1682
      %v1684 = vpop.f32.mrf.mxu0
      %v1685 = vpop.f32.mrf.mxu0
      %v1686 = vadd.f32 %v1589, %v1685
      %v1687 = vpop.f32.mrf.mxu0
      %1688 = vmatprep.mubr.bf16.mxu0 %v1321
      %1689 = vmatmul.mubr.bf16.gmra.mxu0 %v1320
      %v1690 = vpop.f32.mrf.mxu0
      %v1691 = vadd.f32 %v1594, %v1690
      %v1692 = vpop.f32.mrf.mxu0
      %v1693 = vpop.f32.mrf.mxu0
      %v1694 = vadd.f32 %v1597, %v1693
      %v1695 = vpop.f32.mrf.mxu0
      %1696 = vmatprep.mubr.bf16.mxu0 %v1328
      %1697 = vmatmul.mubr.bf16.gmra.mxu0 %v1327
      %v1698 = vpop.f32.mrf.mxu0
      %v1699 = vadd.f32 %v1602, %v1698
      %v1700 = vpop.f32.mrf.mxu0
      %v1701 = vpop.f32.mrf.mxu0
      %v1702 = vadd.f32 %v1605, %v1701
      %v1703 = vpop.f32.mrf.mxu0
      %1704 = vdwg.mxu0
      %1705 = vmatprep.subr.bf16.mxu0 0
      %1706 = vmatpush1.bf16.msra.mxu0 %v1469
      %1707 = vmatprep.subr.bf16.mxu0 0
      %1708 = vmatpush1.bf16.msra.mxu0 %v1468
      %1709 = vmatprep.subr.bf16.mxu0 0
      %1710 = vmatpush1.bf16.msra.mxu0 %v1467
      %1711 = vmatprep.subr.bf16.mxu0 0
      %1712 = vmatpush1.bf16.msra.mxu0 %v1466
      %1713 = vmatprep.subr.bf16.mxu0 0
      %1714 = vmatpush1.bf16.msra.mxu0 %v1465
      %1715 = vmatprep.subr.bf16.mxu0 0
      %1716 = vmatpush1.bf16.msra.mxu0 %v1464
      %1717 = vmatprep.subr.bf16.mxu0 0
      %1718 = vmatpush1.bf16.msra.mxu0 %v1463
      %1719 = vmatprep.subr.bf16.mxu0 0
      %1720 = vmatpush1.bf16.msra.mxu0 %v1462
      %1721 = vmatprep.subr.bf16.mxu0 0
      %1722 = vmatpush2.bf16.msra.mxu0 %v1477
      %1723 = vmatprep.subr.bf16.mxu0 0
      %1724 = vmatpush2.bf16.msra.mxu0 %v1476
      %1725 = vmatprep.subr.bf16.mxu0 0
      %1726 = vmatpush2.bf16.msra.mxu0 %v1475
      %1727 = vmatprep.subr.bf16.mxu0 0
      %1728 = vmatpush2.bf16.msra.mxu0 %v1474
      %1729 = vmatprep.subr.bf16.mxu0 0
      %1730 = vmatpush2.bf16.msra.mxu0 %v1473
      %1731 = vmatprep.subr.bf16.mxu0 0
      %1732 = vmatpush2.bf16.msra.mxu0 %v1472
      %1733 = vmatprep.subr.bf16.mxu0 0
      %1734 = vmatpush2.bf16.msra.mxu0 %v1471
      %1735 = vmatprep.subr.bf16.mxu0 0
      %1736 = vmatpush2.bf16.msra.mxu0 %v1470
      %1737 = vmatprep.mubr.bf16.mxu0 %v1281
      %1738 = vmatmul.mubr.bf16.gmra.mxu0 %v1280
      %v1739 = vpop.f32.mrf.mxu0
      %v1740 = vadd.f32 %v1643, %v1739
      %v1741 = vpop.f32.mrf.mxu0
      %v1742 = vpop.f32.mrf.mxu0
      %v1743 = vadd.f32 %v1646, %v1742
      %v1744 = vpop.f32.mrf.mxu0
      %1745 = vmatprep.mubr.bf16.mxu0 %v1288
      %1746 = vmatmul.mubr.bf16.gmra.mxu0 %v1287
      %v1747 = vpop.f32.mrf.mxu0
      %v1748 = vadd.f32 %v1651, %v1747
      %v1749 = vpop.f32.mrf.mxu0
      %v1750 = vpop.f32.mrf.mxu0
      %v1751 = vadd.f32 %v1654, %v1750
      %v1752 = vpop.f32.mrf.mxu0
      %1753 = vmatprep.mubr.bf16.mxu0 %v1295
      %1754 = vmatmul.mubr.bf16.gmra.mxu0 %v1294
      %v1755 = vpop.f32.mrf.mxu0
      %v1756 = vadd.f32 %v1659, %v1755
      %v1757 = vpop.f32.mrf.mxu0
      %v1758 = vpop.f32.mrf.mxu0
      %v1759 = vadd.f32 %v1662, %v1758
      %v1760 = vpop.f32.mrf.mxu0
      %1761 = vmatprep.mubr.bf16.mxu0 %v1302
      %1762 = vmatmul.mubr.bf16.gmra.mxu0 %v1301
      %v1763 = vpop.f32.mrf.mxu0
      %v1764 = vadd.f32 %v1667, %v1763
      %v1765 = vpop.f32.mrf.mxu0
      %v1766 = vpop.f32.mrf.mxu0
      %v1767 = vadd.f32 %v1670, %v1766
      %v1768 = vpop.f32.mrf.mxu0
      %1769 = vmatprep.mubr.bf16.mxu0 %v1309
      %1770 = vmatmul.mubr.bf16.gmra.mxu0 %v1308
      %v1771 = vpop.f32.mrf.mxu0
      %v1772 = vadd.f32 %v1675, %v1771
      %v1773 = vpop.f32.mrf.mxu0
      %v1774 = vpop.f32.mrf.mxu0
      %v1775 = vadd.f32 %v1678, %v1774
      %v1776 = vpop.f32.mrf.mxu0
      %1777 = vmatprep.mubr.bf16.mxu0 %v1316
      %1778 = vmatmul.mubr.bf16.gmra.mxu0 %v1315
      %v1779 = vpop.f32.mrf.mxu0
      %v1780 = vadd.f32 %v1683, %v1779
      %v1781 = vpop.f32.mrf.mxu0
      %v1782 = vpop.f32.mrf.mxu0
      %v1783 = vadd.f32 %v1686, %v1782
      %v1784 = vpop.f32.mrf.mxu0
      %1785 = vmatprep.mubr.bf16.mxu0 %v1323
      %1786 = vmatmul.mubr.bf16.gmra.mxu0 %v1322
      %v1787 = vpop.f32.mrf.mxu0
      %v1788 = vadd.f32 %v1691, %v1787
      %v1789 = vpop.f32.mrf.mxu0
      %v1790 = vpop.f32.mrf.mxu0
      %v1791 = vadd.f32 %v1694, %v1790
      %v1792 = vpop.f32.mrf.mxu0
      %1793 = vmatprep.mubr.bf16.mxu0 %v1330
      %1794 = vmatmul.mubr.bf16.gmra.mxu0 %v1329
      %v1795 = vpop.f32.mrf.mxu0
      %v1796 = vadd.f32 %v1699, %v1795
      %v1797 = vpop.f32.mrf.mxu0
      %v1798 = vpop.f32.mrf.mxu0
      %v1799 = vadd.f32 %v1702, %v1798
      %v1800 = vpop.f32.mrf.mxu0
      %1801 = vdwg.mxu0
      %1802 = vmatprep.subr.bf16.mxu0 0
      %1803 = vmatpush1.bf16.msra.mxu0 0
      %1804 = vmatprep.subr.bf16.mxu0 0
      %1805 = vmatpush1.bf16.msra.mxu0 0
      %1806 = vmatprep.subr.bf16.mxu0 0
      %1807 = vmatpush1.bf16.msra.mxu0 0
      %1808 = vmatprep.subr.bf16.mxu0 0
      %1809 = vmatpush1.bf16.msra.mxu0 0
      %1810 = vmatprep.subr.bf16.mxu0 0
      %1811 = vmatpush1.bf16.msra.mxu0 0
      %1812 = vmatprep.subr.bf16.mxu0 0
      %1813 = vmatpush1.bf16.msra.mxu0 0
      %1814 = vmatprep.subr.bf16.mxu0 0
      %1815 = vmatpush1.bf16.msra.mxu0 0
      %1816 = vmatprep.subr.bf16.mxu0 0
      %1817 = vmatpush1.bf16.msra.mxu0 %v1478
      %1818 = vmatprep.subr.bf16.mxu0 0
      %1819 = vmatpush2.bf16.msra.mxu0 0
      %1820 = vmatprep.subr.bf16.mxu0 0
      %1821 = vmatpush2.bf16.msra.mxu0 0
      %1822 = vmatprep.subr.bf16.mxu0 0
      %1823 = vmatpush2.bf16.msra.mxu0 0
      %1824 = vmatprep.subr.bf16.mxu0 0
      %1825 = vmatpush2.bf16.msra.mxu0 0
      %1826 = vmatprep.subr.bf16.mxu0 0
      %1827 = vmatpush2.bf16.msra.mxu0 0
      %1828 = vmatprep.subr.bf16.mxu0 0
      %1829 = vmatpush2.bf16.msra.mxu0 0
      %1830 = vmatprep.subr.bf16.mxu0 0
      %1831 = vmatpush2.bf16.msra.mxu0 0
      %1832 = vmatprep.subr.bf16.mxu0 0
      %1833 = vmatpush2.bf16.msra.mxu0 0
      %1834 = vmatprep.mubr.bf16.mxu0 0
      %1835 = vmatmul.mubr.bf16.gmra.mxu0 %v1488
      %v1836 = vpop.f32.mrf.mxu0
      %v1837 = vadd.f32 %v1740, %v1836
      %v1838 = vpop.f32.mrf.mxu0
      %v1839 = vpop.f32.mrf.mxu0
      %v1840 = vadd.f32 %v1743, %v1839
      %v1841 = vpop.f32.mrf.mxu0
      %1842 = vmatprep.mubr.bf16.mxu0 0
      %1843 = vmatmul.mubr.bf16.gmra.mxu0 %v1491
      %v1844 = vpop.f32.mrf.mxu0
      %v1845 = vadd.f32 %v1748, %v1844
      %v1846 = vpop.f32.mrf.mxu0
      %v1847 = vpop.f32.mrf.mxu0
      %v1848 = vadd.f32 %v1751, %v1847
      %v1849 = vpop.f32.mrf.mxu0
      %1850 = vmatprep.mubr.bf16.mxu0 0
      %1851 = vmatmul.mubr.bf16.gmra.mxu0 %v1494
      %v1852 = vpop.f32.mrf.mxu0
      %v1853 = vadd.f32 %v1756, %v1852
      %v1854 = vpop.f32.mrf.mxu0
      %v1855 = vpop.f32.mrf.mxu0
      %v1856 = vadd.f32 %v1759, %v1855
      %v1857 = vpop.f32.mrf.mxu0
      %1858 = vmatprep.mubr.bf16.mxu0 0
      %1859 = vmatmul.mubr.bf16.gmra.mxu0 %v1497
      %v1860 = vpop.f32.mrf.mxu0
      %v1861 = vadd.f32 %v1764, %v1860
      %v1862 = vpop.f32.mrf.mxu0
      %v1863 = vpop.f32.mrf.mxu0
      %v1864 = vadd.f32 %v1767, %v1863
      %v1865 = vpop.f32.mrf.mxu0
      %1866 = vmatprep.mubr.bf16.mxu0 0
      %1867 = vmatmul.mubr.bf16.gmra.mxu0 %v1500
      %v1868 = vpop.f32.mrf.mxu0
      %v1869 = vadd.f32 %v1772, %v1868
      %v1870 = vpop.f32.mrf.mxu0
      %v1871 = vpop.f32.mrf.mxu0
      %v1872 = vadd.f32 %v1775, %v1871
      %v1873 = vpop.f32.mrf.mxu0
      %1874 = vmatprep.mubr.bf16.mxu0 0
      %1875 = vmatmul.mubr.bf16.gmra.mxu0 %v1503
      %v1876 = vpop.f32.mrf.mxu0
      %v1877 = vadd.f32 %v1780, %v1876
      %v1878 = vpop.f32.mrf.mxu0
      %v1879 = vpop.f32.mrf.mxu0
      %v1880 = vadd.f32 %v1783, %v1879
      %v1881 = vpop.f32.mrf.mxu0
      %1882 = vmatprep.mubr.bf16.mxu0 0
      %1883 = vmatmul.mubr.bf16.gmra.mxu0 %v1506
      %v1884 = vpop.f32.mrf.mxu0
      %v1885 = vadd.f32 %v1788, %v1884
      %v1886 = vpop.f32.mrf.mxu0
      %v1887 = vpop.f32.mrf.mxu0
      %v1888 = vadd.f32 %v1791, %v1887
      %v1889 = vpop.f32.mrf.mxu0
      %1890 = vmatprep.mubr.bf16.mxu0 0
      %1891 = vmatmul.mubr.bf16.gmra.mxu0 %v1509
      %v1892 = vpop.f32.mrf.mxu0
      %v1893 = vadd.f32 %v1796, %v1892
      %v1894 = vpop.f32.mrf.mxu0
      %v1895 = vpop.f32.mrf.mxu0
      %v1896 = vadd.f32 %v1799, %v1895
      %v1897 = vpop.f32.mrf.mxu0
      %1898 = vdwg.mxu0
      %v1899 = vtanh.pop %v1837
      %v1900 = vtanh.pop %v1840
      %v1901 = vtanh.pop %v1845
      %v1902 = vtanh.pop %v1848
      %v1903 = vtanh.pop %v1853
      %v1904 = vtanh.pop %v1856
      %v1905 = vtanh.pop %v1861
      %v1906 = vtanh.pop %v1864
      %v1907 = vtanh.pop %v1869
      %v1908 = vtanh.pop %v1872
      %v1909 = vtanh.pop %v1877
      %v1910 = vtanh.pop %v1880
      %v1911 = vtanh.pop %v1885
      %v1912 = vtanh.pop %v1888
      %v1913 = vtanh.pop %v1893
      %v1914 = vtanh.pop %v1896
      %v1915 = vpack.c.bf16 %v1900, %v1899
      %v1916 = vpack.c.bf16 %v1902, %v1901
      %v1917 = vpack.c.bf16 %v1904, %v1903
      %v1918 = vpack.c.bf16 %v1906, %v1905
      %v1919 = vpack.c.bf16 %v1908, %v1907
      %v1920 = vpack.c.bf16 %v1910, %v1909
      %v1921 = vpack.c.bf16 %v1912, %v1911
      %v1922 = vpack.c.bf16 %v1914, %v1913
      %v1923 = vld [vmem:[%s11] sm:$0xff]
      %v1924 = vld [vmem:[%s11 + $0x8] sm:$0xff]
      %v1925 = vld [vmem:[%s11 + $0x10] sm:$0xff]
      %v1926 = vld [vmem:[%s11 + $0x18] sm:$0xff]
      %v1927 = vpack.c.bf16 %v1924, %v1923
      %v1928 = vpack.c.bf16 %v1926, %v1925
      %v1929 = vld [vmem:[%s13] sm:$0x1]
      %v1931 = vlaneseq
      %v1932 = vshrl.u32 %v1931, 7
      %v1933 = vsub.s32 0, %v1932
      %v1934 = vrot.slane %v1929, %v1933
      %vm1936 = vcmask 261120
      %v1938 = vsel %vm1936, %v1915, 0
      %v1941 = vsel %vm1936, %v1916, 0
      %v1944 = vsel %vm1936, %v1917, 0
      %v1947 = vsel %vm1936, %v1918, 0
      %v1950 = vsel %vm1936, %v1919, 0
      %v1953 = vsel %vm1936, %v1920, 0
      %v1956 = vsel %vm1936, %v1921, 0
      %v1959 = vsel %vm1936, %v1922, 0
      %1961 = vmatprep.subr.bf16.mxu0 0
      %1962 = vmatpush1.bf16.msra.mxu0 0
      %1963 = vmatprep.subr.bf16.mxu0 0
      %1964 = vmatpush1.bf16.msra.mxu0 0
      %1965 = vmatprep.subr.bf16.mxu0 0
      %1966 = vmatpush1.bf16.msra.mxu0 0
      %1967 = vmatprep.subr.bf16.mxu0 0
      %1968 = vmatpush1.bf16.msra.mxu0 0
      %1969 = vmatprep.subr.bf16.mxu0 0
      %1970 = vmatpush1.bf16.msra.mxu0 0
      %1971 = vmatprep.subr.bf16.mxu0 0
      %1972 = vmatpush1.bf16.msra.mxu0 0
      %1973 = vmatprep.subr.bf16.mxu0 0
      %1974 = vmatpush1.bf16.msra.mxu0 %v1928
      %1975 = vmatprep.subr.bf16.mxu0 0
      %1976 = vmatpush1.bf16.msra.mxu0 %v1927
      %1977 = vmatprep.subr.bf16.mxu0 0
      %1978 = vmatpush2.bf16.msra.mxu0 0
      %1979 = vmatprep.subr.bf16.mxu0 0
      %1980 = vmatpush2.bf16.msra.mxu0 0
      %1981 = vmatprep.subr.bf16.mxu0 0
      %1982 = vmatpush2.bf16.msra.mxu0 0
      %1983 = vmatprep.subr.bf16.mxu0 0
      %1984 = vmatpush2.bf16.msra.mxu0 0
      %1985 = vmatprep.subr.bf16.mxu0 0
      %1986 = vmatpush2.bf16.msra.mxu0 0
      %1987 = vmatprep.subr.bf16.mxu0 0
      %1988 = vmatpush2.bf16.msra.mxu0 0
      %1989 = vmatprep.subr.bf16.mxu0 0
      %1990 = vmatpush2.bf16.msra.mxu0 0
      %1991 = vmatprep.subr.bf16.mxu0 0
      %1992 = vmatpush2.bf16.msra.mxu0 0
      %1993 = vmatprep.mubr.bf16.mxu0 0
      %1994 = vmatmul.mubr.bf16.gmra.mxu0 %v1938
      %v1995 = vpop.f32.mrf.mxu0
      %v1996 = vadd.f32 %v1934, %v1995
      %v1997 = vpop.f32.mrf.mxu0
      %v1998 = vpop.f32.mrf.mxu0
      %v1999 = vadd.f32 %v1934, %v1998
      %v2000 = vpop.f32.mrf.mxu0
      %2001 = vmatprep.mubr.bf16.mxu0 0
      %2002 = vmatmul.mubr.bf16.gmra.mxu0 %v1941
      %v2003 = vpop.f32.mrf.mxu0
      %v2004 = vadd.f32 %v1934, %v2003
      %v2005 = vpop.f32.mrf.mxu0
      %v2006 = vpop.f32.mrf.mxu0
      %v2007 = vadd.f32 %v1934, %v2006
      %v2008 = vpop.f32.mrf.mxu0
      %2009 = vmatprep.mubr.bf16.mxu0 0
      %2010 = vmatmul.mubr.bf16.gmra.mxu0 %v1944
      %v2011 = vpop.f32.mrf.mxu0
      %v2012 = vadd.f32 %v1934, %v2011
      %v2013 = vpop.f32.mrf.mxu0
      %v2014 = vpop.f32.mrf.mxu0
      %v2015 = vadd.f32 %v1934, %v2014
      %v2016 = vpop.f32.mrf.mxu0
      %2017 = vmatprep.mubr.bf16.mxu0 0
      %2018 = vmatmul.mubr.bf16.gmra.mxu0 %v1947
      %v2019 = vpop.f32.mrf.mxu0
      %v2020 = vadd.f32 %v1934, %v2019
      %v2021 = vpop.f32.mrf.mxu0
      %v2022 = vpop.f32.mrf.mxu0
      %v2023 = vadd.f32 %v1934, %v2022
      %v2024 = vpop.f32.mrf.mxu0
      %2025 = vmatprep.mubr.bf16.mxu0 0
      %2026 = vmatmul.mubr.bf16.gmra.mxu0 %v1950
      %v2027 = vpop.f32.mrf.mxu0
      %v2028 = vadd.f32 %v1934, %v2027
      %v2029 = vpop.f32.mrf.mxu0
      %v2030 = vpop.f32.mrf.mxu0
      %v2031 = vadd.f32 %v1934, %v2030
      %v2032 = vpop.f32.mrf.mxu0
      %2033 = vmatprep.mubr.bf16.mxu0 0
      %2034 = vmatmul.mubr.bf16.gmra.mxu0 %v1953
      %v2035 = vpop.f32.mrf.mxu0
      %v2036 = vadd.f32 %v1934, %v2035
      %v2037 = vpop.f32.mrf.mxu0
      %v2038 = vpop.f32.mrf.mxu0
      %v2039 = vadd.f32 %v1934, %v2038
      %v2040 = vpop.f32.mrf.mxu0
      %2041 = vmatprep.mubr.bf16.mxu0 0
      %2042 = vmatmul.mubr.bf16.gmra.mxu0 %v1956
      %v2043 = vpop.f32.mrf.mxu0
      %v2044 = vadd.f32 %v1934, %v2043
      %v2045 = vpop.f32.mrf.mxu0
      %v2046 = vpop.f32.mrf.mxu0
      %v2047 = vadd.f32 %v1934, %v2046
      %v2048 = vpop.f32.mrf.mxu0
      %2049 = vmatprep.mubr.bf16.mxu0 0
      %2050 = vmatmul.mubr.bf16.gmra.mxu0 %v1959
      %v2051 = vpop.f32.mrf.mxu0
      %v2052 = vadd.f32 %v1934, %v2051
      %v2053 = vpop.f32.mrf.mxu0
      %v2054 = vpop.f32.mrf.mxu0
      %v2055 = vadd.f32 %v1934, %v2054
      %v2056 = vpop.f32.mrf.mxu0
      %2057 = vdwg.mxu0
      %v2058 = vtanh.pop %v1996
      %v2059 = vtanh.pop %v1999
      %v2060 = vtanh.pop %v2004
      %v2061 = vtanh.pop %v2007
      %v2062 = vtanh.pop %v2012
      %v2063 = vtanh.pop %v2015
      %v2064 = vtanh.pop %v2020
      %v2065 = vtanh.pop %v2023
      %v2066 = vtanh.pop %v2028
      %v2067 = vtanh.pop %v2031
      %v2068 = vtanh.pop %v2036
      %v2069 = vtanh.pop %v2039
      %v2070 = vtanh.pop %v2044
      %v2071 = vtanh.pop %v2047
      %v2072 = vtanh.pop %v2052
      %v2073 = vtanh.pop %v2055
      %v2074 = vpack.c.bf16 %v2059, %v2058
      %v2075 = vpack.c.bf16 %v2061, %v2060
      %v2076 = vpack.c.bf16 %v2063, %v2062
      %v2077 = vpack.c.bf16 %v2065, %v2064
      %v2078 = vpack.c.bf16 %v2067, %v2066
      %v2079 = vpack.c.bf16 %v2069, %v2068
      %v2080 = vpack.c.bf16 %v2071, %v2070
      %v2081 = vpack.c.bf16 %v2073, %v2072
      %v2082 = vld [vmem:[%s15] sm:$0xff]
      %v2083 = vld [vmem:[%s15 + $0x8] sm:$0xff]
      %v2084 = vld [vmem:[%s15 + $0x10] sm:$0xff]
      %v2085 = vld [vmem:[%s15 + $0x18] sm:$0xff]
      %v2086 = vpack.c.bf16 %v2083, %v2082
      %v2087 = vpack.c.bf16 %v2085, %v2084
      %v2088 = vld [vmem:[%s17] sm:$0x1]
      %v2090 = vlaneseq
      %v2091 = vshrl.u32 %v2090, 7
      %v2092 = vsub.s32 0, %v2091
      %v2093 = vrot.slane %v2088, %v2092
      %v2096 = vsel %vm1936, %v2074, 0
      %v2099 = vsel %vm1936, %v2075, 0
      %v2102 = vsel %vm1936, %v2076, 0
      %v2105 = vsel %vm1936, %v2077, 0
      %v2108 = vsel %vm1936, %v2078, 0
      %v2111 = vsel %vm1936, %v2079, 0
      %v2114 = vsel %vm1936, %v2080, 0
      %v2117 = vsel %vm1936, %v2081, 0
      %2119 = vmatprep.subr.bf16.mxu0 0
      %2120 = vmatpush1.bf16.msra.mxu0 0
      %2121 = vmatprep.subr.bf16.mxu0 0
      %2122 = vmatpush1.bf16.msra.mxu0 0
      %2123 = vmatprep.subr.bf16.mxu0 0
      %2124 = vmatpush1.bf16.msra.mxu0 0
      %2125 = vmatprep.subr.bf16.mxu0 0
      %2126 = vmatpush1.bf16.msra.mxu0 0
      %2127 = vmatprep.subr.bf16.mxu0 0
      %2128 = vmatpush1.bf16.msra.mxu0 0
      %2129 = vmatprep.subr.bf16.mxu0 0
      %2130 = vmatpush1.bf16.msra.mxu0 0
      %2131 = vmatprep.subr.bf16.mxu0 0
      %2132 = vmatpush1.bf16.msra.mxu0 %v2087
      %2133 = vmatprep.subr.bf16.mxu0 0
      %2134 = vmatpush1.bf16.msra.mxu0 %v2086
      %2135 = vmatprep.subr.bf16.mxu0 0
      %2136 = vmatpush2.bf16.msra.mxu0 0
      %2137 = vmatprep.subr.bf16.mxu0 0
      %2138 = vmatpush2.bf16.msra.mxu0 0
      %2139 = vmatprep.subr.bf16.mxu0 0
      %2140 = vmatpush2.bf16.msra.mxu0 0
      %2141 = vmatprep.subr.bf16.mxu0 0
      %2142 = vmatpush2.bf16.msra.mxu0 0
      %2143 = vmatprep.subr.bf16.mxu0 0
      %2144 = vmatpush2.bf16.msra.mxu0 0
      %2145 = vmatprep.subr.bf16.mxu0 0
      %2146 = vmatpush2.bf16.msra.mxu0 0
      %2147 = vmatprep.subr.bf16.mxu0 0
      %2148 = vmatpush2.bf16.msra.mxu0 0
      %2149 = vmatprep.subr.bf16.mxu0 0
      %2150 = vmatpush2.bf16.msra.mxu0 0
      %2151 = vmatprep.mubr.bf16.mxu0 0
      %2152 = vmatmul.mubr.bf16.gmra.mxu0 %v2096
      %v2153 = vpop.f32.mrf.mxu0
      %v2154 = vadd.f32 %v2093, %v2153
      %v2155 = vpop.f32.mrf.mxu0
      %v2156 = vpop.f32.mrf.mxu0
      %v2157 = vadd.f32 %v2093, %v2156
      %v2158 = vpop.f32.mrf.mxu0
      %2159 = vmatprep.mubr.bf16.mxu0 0
      %2160 = vmatmul.mubr.bf16.gmra.mxu0 %v2099
      %v2161 = vpop.f32.mrf.mxu0
      %v2162 = vadd.f32 %v2093, %v2161
      %v2163 = vpop.f32.mrf.mxu0
      %v2164 = vpop.f32.mrf.mxu0
      %v2165 = vadd.f32 %v2093, %v2164
      %v2166 = vpop.f32.mrf.mxu0
      %2167 = vmatprep.mubr.bf16.mxu0 0
      %2168 = vmatmul.mubr.bf16.gmra.mxu0 %v2102
      %v2169 = vpop.f32.mrf.mxu0
      %v2170 = vadd.f32 %v2093, %v2169
      %v2171 = vpop.f32.mrf.mxu0
      %v2172 = vpop.f32.mrf.mxu0
      %v2173 = vadd.f32 %v2093, %v2172
      %v2174 = vpop.f32.mrf.mxu0
      %2175 = vmatprep.mubr.bf16.mxu0 0
      %2176 = vmatmul.mubr.bf16.gmra.mxu0 %v2105
      %v2177 = vpop.f32.mrf.mxu0
      %v2178 = vadd.f32 %v2093, %v2177
      %v2179 = vpop.f32.mrf.mxu0
      %v2180 = vpop.f32.mrf.mxu0
      %v2181 = vadd.f32 %v2093, %v2180
      %v2182 = vpop.f32.mrf.mxu0
      %2183 = vmatprep.mubr.bf16.mxu0 0
      %2184 = vmatmul.mubr.bf16.gmra.mxu0 %v2108
      %v2185 = vpop.f32.mrf.mxu0
      %v2186 = vadd.f32 %v2093, %v2185
      %v2187 = vpop.f32.mrf.mxu0
      %v2188 = vpop.f32.mrf.mxu0
      %v2189 = vadd.f32 %v2093, %v2188
      %v2190 = vpop.f32.mrf.mxu0
      %2191 = vmatprep.mubr.bf16.mxu0 0
      %2192 = vmatmul.mubr.bf16.gmra.mxu0 %v2111
      %v2193 = vpop.f32.mrf.mxu0
      %v2194 = vadd.f32 %v2093, %v2193
      %v2195 = vpop.f32.mrf.mxu0
      %v2196 = vpop.f32.mrf.mxu0
      %v2197 = vadd.f32 %v2093, %v2196
      %v2198 = vpop.f32.mrf.mxu0
      %2199 = vmatprep.mubr.bf16.mxu0 0
      %2200 = vmatmul.mubr.bf16.gmra.mxu0 %v2114
      %v2201 = vpop.f32.mrf.mxu0
      %v2202 = vadd.f32 %v2093, %v2201
      %v2203 = vpop.f32.mrf.mxu0
      %v2204 = vpop.f32.mrf.mxu0
      %v2205 = vadd.f32 %v2093, %v2204
      %v2206 = vpop.f32.mrf.mxu0
      %2207 = vmatprep.mubr.bf16.mxu0 0
      %2208 = vmatmul.mubr.bf16.gmra.mxu0 %v2117
      %v2209 = vpop.f32.mrf.mxu0
      %v2210 = vadd.f32 %v2093, %v2209
      %v2211 = vpop.f32.mrf.mxu0
      %v2212 = vpop.f32.mrf.mxu0
      %v2213 = vadd.f32 %v2093, %v2212
      %v2214 = vpop.f32.mrf.mxu0
      %2215 = vdwg.mxu0
      %v2216 = vtanh.pop %v2154
      %v2217 = vtanh.pop %v2157
      %v2218 = vtanh.pop %v2162
      %v2219 = vtanh.pop %v2165
      %v2220 = vtanh.pop %v2170
      %v2221 = vtanh.pop %v2173
      %v2222 = vtanh.pop %v2178
      %v2223 = vtanh.pop %v2181
      %v2224 = vtanh.pop %v2186
      %v2225 = vtanh.pop %v2189
      %v2226 = vtanh.pop %v2194
      %v2227 = vtanh.pop %v2197
      %v2228 = vtanh.pop %v2202
      %v2229 = vtanh.pop %v2205
      %v2230 = vtanh.pop %v2210
      %v2231 = vtanh.pop %v2213
      %v2232 = vpack.c.bf16 %v2217, %v2216
      %v2233 = vpack.c.bf16 %v2219, %v2218
      %v2234 = vpack.c.bf16 %v2221, %v2220
      %v2235 = vpack.c.bf16 %v2223, %v2222
      %v2236 = vpack.c.bf16 %v2225, %v2224
      %v2237 = vpack.c.bf16 %v2227, %v2226
      %v2238 = vpack.c.bf16 %v2229, %v2228
      %v2239 = vpack.c.bf16 %v2231, %v2230
      %v2240 = vld [vmem:[%s19] sm:$0xff]
      %v2241 = vld [vmem:[%s19 + $0x8] sm:$0xff]
      %v2242 = vld [vmem:[%s19 + $0x10] sm:$0xff]
      %v2243 = vld [vmem:[%s19 + $0x18] sm:$0xff]
      %v2244 = vpack.c.bf16 %v2241, %v2240
      %v2245 = vpack.c.bf16 %v2243, %v2242
      %v2246 = vld [vmem:[%s21] sm:$0x1]
      %v2248 = vlaneseq
      %v2249 = vshrl.u32 %v2248, 7
      %v2250 = vsub.s32 0, %v2249
      %v2251 = vrot.slane %v2246, %v2250
      %v2254 = vsel %vm1936, %v2232, 0
      %v2257 = vsel %vm1936, %v2233, 0
      %v2260 = vsel %vm1936, %v2234, 0
      %v2263 = vsel %vm1936, %v2235, 0
      %v2266 = vsel %vm1936, %v2236, 0
      %v2269 = vsel %vm1936, %v2237, 0
      %v2272 = vsel %vm1936, %v2238, 0
      %v2275 = vsel %vm1936, %v2239, 0
      %2277 = vmatprep.subr.bf16.mxu0 0
      %2278 = vmatpush1.bf16.msra.mxu0 0
      %2279 = vmatprep.subr.bf16.mxu0 0
      %2280 = vmatpush1.bf16.msra.mxu0 0
      %2281 = vmatprep.subr.bf16.mxu0 0
      %2282 = vmatpush1.bf16.msra.mxu0 0
      %2283 = vmatprep.subr.bf16.mxu0 0
      %2284 = vmatpush1.bf16.msra.mxu0 0
      %2285 = vmatprep.subr.bf16.mxu0 0
      %2286 = vmatpush1.bf16.msra.mxu0 0
      %2287 = vmatprep.subr.bf16.mxu0 0
      %2288 = vmatpush1.bf16.msra.mxu0 0
      %2289 = vmatprep.subr.bf16.mxu0 0
      %2290 = vmatpush1.bf16.msra.mxu0 %v2245
      %2291 = vmatprep.subr.bf16.mxu0 0
      %2292 = vmatpush1.bf16.msra.mxu0 %v2244
      %2293 = vmatprep.subr.bf16.mxu0 0
      %2294 = vmatpush2.bf16.msra.mxu0 0
      %2295 = vmatprep.subr.bf16.mxu0 0
      %2296 = vmatpush2.bf16.msra.mxu0 0
      %2297 = vmatprep.subr.bf16.mxu0 0
      %2298 = vmatpush2.bf16.msra.mxu0 0
      %2299 = vmatprep.subr.bf16.mxu0 0
      %2300 = vmatpush2.bf16.msra.mxu0 0
      %2301 = vmatprep.subr.bf16.mxu0 0
      %2302 = vmatpush2.bf16.msra.mxu0 0
      %2303 = vmatprep.subr.bf16.mxu0 0
      %2304 = vmatpush2.bf16.msra.mxu0 0
      %2305 = vmatprep.subr.bf16.mxu0 0
      %2306 = vmatpush2.bf16.msra.mxu0 0
      %2307 = vmatprep.subr.bf16.mxu0 0
      %2308 = vmatpush2.bf16.msra.mxu0 0
      %2309 = vmatprep.mubr.bf16.mxu0 0
      %2310 = vmatmul.mubr.bf16.gmra.mxu0 %v2254
      %v2311 = vpop.f32.mrf.mxu0
      %v2312 = vadd.f32 %v2251, %v2311
      %v2313 = vpop.f32.mrf.mxu0
      %v2314 = vpop.f32.mrf.mxu0
      %v2315 = vadd.f32 %v2251, %v2314
      %v2316 = vpop.f32.mrf.mxu0
      %2317 = vmatprep.mubr.bf16.mxu0 0
      %2318 = vmatmul.mubr.bf16.gmra.mxu0 %v2257
      %v2319 = vpop.f32.mrf.mxu0
      %v2320 = vadd.f32 %v2251, %v2319
      %v2321 = vpop.f32.mrf.mxu0
      %v2322 = vpop.f32.mrf.mxu0
      %v2323 = vadd.f32 %v2251, %v2322
      %v2324 = vpop.f32.mrf.mxu0
      %2325 = vmatprep.mubr.bf16.mxu0 0
      %2326 = vmatmul.mubr.bf16.gmra.mxu0 %v2260
      %v2327 = vpop.f32.mrf.mxu0
      %v2328 = vadd.f32 %v2251, %v2327
      %v2329 = vpop.f32.mrf.mxu0
      %v2330 = vpop.f32.mrf.mxu0
      %v2331 = vadd.f32 %v2251, %v2330
      %v2332 = vpop.f32.mrf.mxu0
      %2333 = vmatprep.mubr.bf16.mxu0 0
      %2334 = vmatmul.mubr.bf16.gmra.mxu0 %v2263
      %v2335 = vpop.f32.mrf.mxu0
      %v2336 = vadd.f32 %v2251, %v2335
      %v2337 = vpop.f32.mrf.mxu0
      %v2338 = vpop.f32.mrf.mxu0
      %v2339 = vadd.f32 %v2251, %v2338
      %v2340 = vpop.f32.mrf.mxu0
      %2341 = vmatprep.mubr.bf16.mxu0 0
      %2342 = vmatmul.mubr.bf16.gmra.mxu0 %v2266
      %v2343 = vpop.f32.mrf.mxu0
      %v2344 = vadd.f32 %v2251, %v2343
      %v2345 = vpop.f32.mrf.mxu0
      %v2346 = vpop.f32.mrf.mxu0
      %v2347 = vadd.f32 %v2251, %v2346
      %v2348 = vpop.f32.mrf.mxu0
      %2349 = vmatprep.mubr.bf16.mxu0 0
      %2350 = vmatmul.mubr.bf16.gmra.mxu0 %v2269
      %v2351 = vpop.f32.mrf.mxu0
      %v2352 = vadd.f32 %v2251, %v2351
      %v2353 = vpop.f32.mrf.mxu0
      %v2354 = vpop.f32.mrf.mxu0
      %v2355 = vadd.f32 %v2251, %v2354
      %v2356 = vpop.f32.mrf.mxu0
      %2357 = vmatprep.mubr.bf16.mxu0 0
      %2358 = vmatmul.mubr.bf16.gmra.mxu0 %v2272
      %v2359 = vpop.f32.mrf.mxu0
      %v2360 = vadd.f32 %v2251, %v2359
      %v2361 = vpop.f32.mrf.mxu0
      %v2362 = vpop.f32.mrf.mxu0
      %v2363 = vadd.f32 %v2251, %v2362
      %v2364 = vpop.f32.mrf.mxu0
      %2365 = vmatprep.mubr.bf16.mxu0 0
      %2366 = vmatmul.mubr.bf16.gmra.mxu0 %v2275
      %v2367 = vpop.f32.mrf.mxu0
      %v2368 = vadd.f32 %v2251, %v2367
      %v2369 = vpop.f32.mrf.mxu0
      %v2370 = vpop.f32.mrf.mxu0
      %v2371 = vadd.f32 %v2251, %v2370
      %v2372 = vpop.f32.mrf.mxu0
      %2373 = vdwg.mxu0
      %v2374 = vtanh.pop %v2312
      %v2375 = vtanh.pop %v2315
      %v2376 = vtanh.pop %v2320
      %v2377 = vtanh.pop %v2323
      %v2378 = vtanh.pop %v2328
      %v2379 = vtanh.pop %v2331
      %v2380 = vtanh.pop %v2336
      %v2381 = vtanh.pop %v2339
      %v2382 = vtanh.pop %v2344
      %v2383 = vtanh.pop %v2347
      %v2384 = vtanh.pop %v2352
      %v2385 = vtanh.pop %v2355
      %v2386 = vtanh.pop %v2360
      %v2387 = vtanh.pop %v2363
      %v2388 = vtanh.pop %v2368
      %v2389 = vtanh.pop %v2371
      %v2390 = vpack.c.bf16 %v2375, %v2374
      %v2391 = vpack.c.bf16 %v2377, %v2376
      %v2392 = vpack.c.bf16 %v2379, %v2378
      %v2393 = vpack.c.bf16 %v2381, %v2380
      %v2394 = vpack.c.bf16 %v2383, %v2382
      %v2395 = vpack.c.bf16 %v2385, %v2384
      %v2396 = vpack.c.bf16 %v2387, %v2386
      %v2397 = vpack.c.bf16 %v2389, %v2388
      %v2398 = vld [vmem:[%s23] sm:$0xff]
      %v2399 = vld [vmem:[%s23 + $0x8] sm:$0xff]
      %v2400 = vld [vmem:[%s23 + $0x10] sm:$0xff]
      %v2401 = vld [vmem:[%s23 + $0x18] sm:$0xff]
      %v2402 = vpack.c.bf16 %v2399, %v2398
      %v2403 = vpack.c.bf16 %v2401, %v2400
      %v2404 = vld [vmem:[%s25] sm:$0x1]
      %v2406 = vlaneseq
      %v2407 = vshrl.u32 %v2406, 7
      %v2408 = vsub.s32 0, %v2407
      %v2409 = vrot.slane %v2404, %v2408
      %v2412 = vsel %vm1936, %v2390, 0
      %v2415 = vsel %vm1936, %v2391, 0
      %v2418 = vsel %vm1936, %v2392, 0
      %v2421 = vsel %vm1936, %v2393, 0
      %v2424 = vsel %vm1936, %v2394, 0
      %v2427 = vsel %vm1936, %v2395, 0
      %v2430 = vsel %vm1936, %v2396, 0
      %v2433 = vsel %vm1936, %v2397, 0
      %2435 = vmatprep.subr.bf16.mxu0 0
      %2436 = vmatpush1.bf16.msra.mxu0 0
      %2437 = vmatprep.subr.bf16.mxu0 0
      %2438 = vmatpush1.bf16.msra.mxu0 0
      %2439 = vmatprep.subr.bf16.mxu0 0
      %2440 = vmatpush1.bf16.msra.mxu0 0
      %2441 = vmatprep.subr.bf16.mxu0 0
      %2442 = vmatpush1.bf16.msra.mxu0 0
      %2443 = vmatprep.subr.bf16.mxu0 0
      %2444 = vmatpush1.bf16.msra.mxu0 0
      %2445 = vmatprep.subr.bf16.mxu0 0
      %2446 = vmatpush1.bf16.msra.mxu0 0
      %2447 = vmatprep.subr.bf16.mxu0 0
      %2448 = vmatpush1.bf16.msra.mxu0 %v2403
      %2449 = vmatprep.subr.bf16.mxu0 0
      %2450 = vmatpush1.bf16.msra.mxu0 %v2402
      %2451 = vmatprep.subr.bf16.mxu0 0
      %2452 = vmatpush2.bf16.msra.mxu0 0
      %2453 = vmatprep.subr.bf16.mxu0 0
      %2454 = vmatpush2.bf16.msra.mxu0 0
      %2455 = vmatprep.subr.bf16.mxu0 0
      %2456 = vmatpush2.bf16.msra.mxu0 0
      %2457 = vmatprep.subr.bf16.mxu0 0
      %2458 = vmatpush2.bf16.msra.mxu0 0
      %2459 = vmatprep.subr.bf16.mxu0 0
      %2460 = vmatpush2.bf16.msra.mxu0 0
      %2461 = vmatprep.subr.bf16.mxu0 0
      %2462 = vmatpush2.bf16.msra.mxu0 0
      %2463 = vmatprep.subr.bf16.mxu0 0
      %2464 = vmatpush2.bf16.msra.mxu0 0
      %2465 = vmatprep.subr.bf16.mxu0 0
      %2466 = vmatpush2.bf16.msra.mxu0 0
      %2467 = vmatprep.mubr.bf16.mxu0 0
      %2468 = vmatmul.mubr.bf16.gmra.mxu0 %v2412
      %v2469 = vpop.f32.mrf.mxu0
      %v2470 = vadd.f32 %v2409, %v2469
      %v2471 = vpop.f32.mrf.mxu0
      %v2472 = vpop.f32.mrf.mxu0
      %v2473 = vadd.f32 %v2409, %v2472
      %v2474 = vpop.f32.mrf.mxu0
      %2475 = vmatprep.mubr.bf16.mxu0 0
      %2476 = vmatmul.mubr.bf16.gmra.mxu0 %v2415
      %v2477 = vpop.f32.mrf.mxu0
      %v2478 = vadd.f32 %v2409, %v2477
      %v2479 = vpop.f32.mrf.mxu0
      %v2480 = vpop.f32.mrf.mxu0
      %v2481 = vadd.f32 %v2409, %v2480
      %v2482 = vpop.f32.mrf.mxu0
      %2483 = vmatprep.mubr.bf16.mxu0 0
      %2484 = vmatmul.mubr.bf16.gmra.mxu0 %v2418
      %v2485 = vpop.f32.mrf.mxu0
      %v2486 = vadd.f32 %v2409, %v2485
      %v2487 = vpop.f32.mrf.mxu0
      %v2488 = vpop.f32.mrf.mxu0
      %v2489 = vadd.f32 %v2409, %v2488
      %v2490 = vpop.f32.mrf.mxu0
      %2491 = vmatprep.mubr.bf16.mxu0 0
      %2492 = vmatmul.mubr.bf16.gmra.mxu0 %v2421
      %v2493 = vpop.f32.mrf.mxu0
      %v2494 = vadd.f32 %v2409, %v2493
      %v2495 = vpop.f32.mrf.mxu0
      %v2496 = vpop.f32.mrf.mxu0
      %v2497 = vadd.f32 %v2409, %v2496
      %v2498 = vpop.f32.mrf.mxu0
      %2499 = vmatprep.mubr.bf16.mxu0 0
      %2500 = vmatmul.mubr.bf16.gmra.mxu0 %v2424
      %v2501 = vpop.f32.mrf.mxu0
      %v2502 = vadd.f32 %v2409, %v2501
      %v2503 = vpop.f32.mrf.mxu0
      %v2504 = vpop.f32.mrf.mxu0
      %v2505 = vadd.f32 %v2409, %v2504
      %v2506 = vpop.f32.mrf.mxu0
      %2507 = vmatprep.mubr.bf16.mxu0 0
      %2508 = vmatmul.mubr.bf16.gmra.mxu0 %v2427
      %v2509 = vpop.f32.mrf.mxu0
      %v2510 = vadd.f32 %v2409, %v2509
      %v2511 = vpop.f32.mrf.mxu0
      %v2512 = vpop.f32.mrf.mxu0
      %v2513 = vadd.f32 %v2409, %v2512
      %v2514 = vpop.f32.mrf.mxu0
      %2515 = vmatprep.mubr.bf16.mxu0 0
      %2516 = vmatmul.mubr.bf16.gmra.mxu0 %v2430
      %v2517 = vpop.f32.mrf.mxu0
      %v2518 = vadd.f32 %v2409, %v2517
      %v2519 = vpop.f32.mrf.mxu0
      %v2520 = vpop.f32.mrf.mxu0
      %v2521 = vadd.f32 %v2409, %v2520
      %v2522 = vpop.f32.mrf.mxu0
      %2523 = vmatprep.mubr.bf16.mxu0 0
      %2524 = vmatmul.mubr.bf16.gmra.mxu0 %v2433
      %v2525 = vpop.f32.mrf.mxu0
      %v2526 = vadd.f32 %v2409, %v2525
      %v2527 = vpop.f32.mrf.mxu0
      %v2528 = vpop.f32.mrf.mxu0
      %v2529 = vadd.f32 %v2409, %v2528
      %v2530 = vpop.f32.mrf.mxu0
      %2531 = vdwg.mxu0
      %v2532 = vtanh.pop %v2470
      %v2533 = vtanh.pop %v2473
      %v2534 = vtanh.pop %v2478
      %v2535 = vtanh.pop %v2481
      %v2536 = vtanh.pop %v2486
      %v2537 = vtanh.pop %v2489
      %v2538 = vtanh.pop %v2494
      %v2539 = vtanh.pop %v2497
      %v2540 = vtanh.pop %v2502
      %v2541 = vtanh.pop %v2505
      %v2542 = vtanh.pop %v2510
      %v2543 = vtanh.pop %v2513
      %v2544 = vtanh.pop %v2518
      %v2545 = vtanh.pop %v2521
      %v2546 = vtanh.pop %v2526
      %v2547 = vtanh.pop %v2529
      %v2548 = vpack.c.bf16 %v2533, %v2532
      %v2549 = vpack.c.bf16 %v2535, %v2534
      %v2550 = vpack.c.bf16 %v2537, %v2536
      %v2551 = vpack.c.bf16 %v2539, %v2538
      %v2552 = vpack.c.bf16 %v2541, %v2540
      %v2553 = vpack.c.bf16 %v2543, %v2542
      %v2554 = vpack.c.bf16 %v2545, %v2544
      %v2555 = vpack.c.bf16 %v2547, %v2546
      %v2556 = vld [vmem:[%s27] sm:$0xff]
      %v2557 = vld [vmem:[%s27 + $0x8] sm:$0xff]
      %v2558 = vld [vmem:[%s27 + $0x10] sm:$0xff]
      %v2559 = vld [vmem:[%s27 + $0x18] sm:$0xff]
      %v2560 = vpack.c.bf16 %v2557, %v2556
      %v2561 = vpack.c.bf16 %v2559, %v2558
      %v2562 = vld [vmem:[%s29] sm:$0x1]
      %v2564 = vlaneseq
      %v2565 = vshrl.u32 %v2564, 7
      %v2566 = vsub.s32 0, %v2565
      %v2567 = vrot.slane %v2562, %v2566
      %v2570 = vsel %vm1936, %v2548, 0
      %v2573 = vsel %vm1936, %v2549, 0
      %v2576 = vsel %vm1936, %v2550, 0
      %v2579 = vsel %vm1936, %v2551, 0
      %v2582 = vsel %vm1936, %v2552, 0
      %v2585 = vsel %vm1936, %v2553, 0
      %v2588 = vsel %vm1936, %v2554, 0
      %v2591 = vsel %vm1936, %v2555, 0
      %2593 = vmatprep.subr.bf16.mxu0 0
      %2594 = vmatpush1.bf16.msra.mxu0 0
      %2595 = vmatprep.subr.bf16.mxu0 0
      %2596 = vmatpush1.bf16.msra.mxu0 0
      %2597 = vmatprep.subr.bf16.mxu0 0
      %2598 = vmatpush1.bf16.msra.mxu0 0
      %2599 = vmatprep.subr.bf16.mxu0 0
      %2600 = vmatpush1.bf16.msra.mxu0 0
      %2601 = vmatprep.subr.bf16.mxu0 0
      %2602 = vmatpush1.bf16.msra.mxu0 0
      %2603 = vmatprep.subr.bf16.mxu0 0
      %2604 = vmatpush1.bf16.msra.mxu0 0
      %2605 = vmatprep.subr.bf16.mxu0 0
      %2606 = vmatpush1.bf16.msra.mxu0 %v2561
      %2607 = vmatprep.subr.bf16.mxu0 0
      %2608 = vmatpush1.bf16.msra.mxu0 %v2560
      %2609 = vmatprep.subr.bf16.mxu0 0
      %2610 = vmatpush2.bf16.msra.mxu0 0
      %2611 = vmatprep.subr.bf16.mxu0 0
      %2612 = vmatpush2.bf16.msra.mxu0 0
      %2613 = vmatprep.subr.bf16.mxu0 0
      %2614 = vmatpush2.bf16.msra.mxu0 0
      %2615 = vmatprep.subr.bf16.mxu0 0
      %2616 = vmatpush2.bf16.msra.mxu0 0
      %2617 = vmatprep.subr.bf16.mxu0 0
      %2618 = vmatpush2.bf16.msra.mxu0 0
      %2619 = vmatprep.subr.bf16.mxu0 0
      %2620 = vmatpush2.bf16.msra.mxu0 0
      %2621 = vmatprep.subr.bf16.mxu0 0
      %2622 = vmatpush2.bf16.msra.mxu0 0
      %2623 = vmatprep.subr.bf16.mxu0 0
      %2624 = vmatpush2.bf16.msra.mxu0 0
      %2625 = vmatprep.mubr.bf16.mxu0 0
      %2626 = vmatmul.mubr.bf16.gmra.mxu0 %v2570
      %v2627 = vpop.f32.mrf.mxu0
      %v2628 = vadd.f32 %v2567, %v2627
      %v2629 = vpop.f32.mrf.mxu0
      %v2630 = vpop.f32.mrf.mxu0
      %v2631 = vadd.f32 %v2567, %v2630
      %v2632 = vpop.f32.mrf.mxu0
      %2633 = vmatprep.mubr.bf16.mxu0 0
      %2634 = vmatmul.mubr.bf16.gmra.mxu0 %v2573
      %v2635 = vpop.f32.mrf.mxu0
      %v2636 = vadd.f32 %v2567, %v2635
      %v2637 = vpop.f32.mrf.mxu0
      %v2638 = vpop.f32.mrf.mxu0
      %v2639 = vadd.f32 %v2567, %v2638
      %v2640 = vpop.f32.mrf.mxu0
      %2641 = vmatprep.mubr.bf16.mxu0 0
      %2642 = vmatmul.mubr.bf16.gmra.mxu0 %v2576
      %v2643 = vpop.f32.mrf.mxu0
      %v2644 = vadd.f32 %v2567, %v2643
      %v2645 = vpop.f32.mrf.mxu0
      %v2646 = vpop.f32.mrf.mxu0
      %v2647 = vadd.f32 %v2567, %v2646
      %v2648 = vpop.f32.mrf.mxu0
      %2649 = vmatprep.mubr.bf16.mxu0 0
      %2650 = vmatmul.mubr.bf16.gmra.mxu0 %v2579
      %v2651 = vpop.f32.mrf.mxu0
      %v2652 = vadd.f32 %v2567, %v2651
      %v2653 = vpop.f32.mrf.mxu0
      %v2654 = vpop.f32.mrf.mxu0
      %v2655 = vadd.f32 %v2567, %v2654
      %v2656 = vpop.f32.mrf.mxu0
      %2657 = vmatprep.mubr.bf16.mxu0 0
      %2658 = vmatmul.mubr.bf16.gmra.mxu0 %v2582
      %v2659 = vpop.f32.mrf.mxu0
      %v2660 = vadd.f32 %v2567, %v2659
      %v2661 = vpop.f32.mrf.mxu0
      %v2662 = vpop.f32.mrf.mxu0
      %v2663 = vadd.f32 %v2567, %v2662
      %v2664 = vpop.f32.mrf.mxu0
      %2665 = vmatprep.mubr.bf16.mxu0 0
      %2666 = vmatmul.mubr.bf16.gmra.mxu0 %v2585
      %v2667 = vpop.f32.mrf.mxu0
      %v2668 = vadd.f32 %v2567, %v2667
      %v2669 = vpop.f32.mrf.mxu0
      %v2670 = vpop.f32.mrf.mxu0
      %v2671 = vadd.f32 %v2567, %v2670
      %v2672 = vpop.f32.mrf.mxu0
      %2673 = vmatprep.mubr.bf16.mxu0 0
      %2674 = vmatmul.mubr.bf16.gmra.mxu0 %v2588
      %v2675 = vpop.f32.mrf.mxu0
      %v2676 = vadd.f32 %v2567, %v2675
      %v2677 = vpop.f32.mrf.mxu0
      %v2678 = vpop.f32.mrf.mxu0
      %v2679 = vadd.f32 %v2567, %v2678
      %v2680 = vpop.f32.mrf.mxu0
      %2681 = vmatprep.mubr.bf16.mxu0 0
      %2682 = vmatmul.mubr.bf16.gmra.mxu0 %v2591
      %v2683 = vpop.f32.mrf.mxu0
      %v2684 = vadd.f32 %v2567, %v2683
      %v2685 = vpop.f32.mrf.mxu0
      %v2686 = vpop.f32.mrf.mxu0
      %v2687 = vadd.f32 %v2567, %v2686
      %v2688 = vpop.f32.mrf.mxu0
      %2689 = vdwg.mxu0
      %v2690 = vtanh.pop %v2628
      %v2691 = vtanh.pop %v2631
      %v2692 = vtanh.pop %v2636
      %v2693 = vtanh.pop %v2639
      %v2694 = vtanh.pop %v2644
      %v2695 = vtanh.pop %v2647
      %v2696 = vtanh.pop %v2652
      %v2697 = vtanh.pop %v2655
      %v2698 = vtanh.pop %v2660
      %v2699 = vtanh.pop %v2663
      %v2700 = vtanh.pop %v2668
      %v2701 = vtanh.pop %v2671
      %v2702 = vtanh.pop %v2676
      %v2703 = vtanh.pop %v2679
      %v2704 = vtanh.pop %v2684
      %v2705 = vtanh.pop %v2687
      %v2706 = vld [vmem:[%s31] sm:$0xff]
      %v2707 = vld [vmem:[%s31 + $0x8] sm:$0xff]
      %v2708 = vld [vmem:[%s31 + $0x10] sm:$0xff]
      %v2709 = vld [vmem:[%s31 + $0x18] sm:$0xff]
      %v2710 = vpack.c.bf16 %v2707, %v2706
      %v2711 = vpack.c.bf16 %v2709, %v2708
      %v2712 = vld [vmem:[%s33] sm:$0x1]
      %v2714 = vlaneseq
      %v2715 = vshrl.u32 %v2714, 7
      %v2716 = vsub.s32 0, %v2715
      %v2717 = vrot.slane %v2712, %v2716
      %2719 = vmatprep.subr.bf16.mxu0 0
      %2720 = vmatpush1.bf16.msra.mxu0 0
      %2721 = vmatprep.subr.bf16.mxu0 0
      %2722 = vmatpush1.bf16.msra.mxu0 0
      %2723 = vmatprep.subr.bf16.mxu0 0
      %2724 = vmatpush1.bf16.msra.mxu0 0
      %2725 = vmatprep.subr.bf16.mxu0 0
      %2726 = vmatpush1.bf16.msra.mxu0 0
      %2727 = vmatprep.subr.bf16.mxu0 0
      %2728 = vmatpush1.bf16.msra.mxu0 0
      %2729 = vmatprep.subr.bf16.mxu0 0
      %2730 = vmatpush1.bf16.msra.mxu0 0
      %2731 = vmatprep.subr.bf16.mxu0 0
      %2732 = vmatpush1.bf16.msra.mxu0 %v2711
      %2733 = vmatprep.subr.bf16.mxu0 0
      %2734 = vmatpush1.bf16.msra.mxu0 %v2710
      %2735 = vmatprep.subr.bf16.mxu0 0
      %2736 = vmatpush2.bf16.msra.mxu0 0
      %2737 = vmatprep.subr.bf16.mxu0 0
      %2738 = vmatpush2.bf16.msra.mxu0 0
      %2739 = vmatprep.subr.bf16.mxu0 0
      %2740 = vmatpush2.bf16.msra.mxu0 0
      %2741 = vmatprep.subr.bf16.mxu0 0
      %2742 = vmatpush2.bf16.msra.mxu0 0
      %2743 = vmatprep.subr.bf16.mxu0 0
      %2744 = vmatpush2.bf16.msra.mxu0 0
      %2745 = vmatprep.subr.bf16.mxu0 0
      %2746 = vmatpush2.bf16.msra.mxu0 0
      %2747 = vmatprep.subr.bf16.mxu0 0
      %2748 = vmatpush2.bf16.msra.mxu0 0
      %2749 = vmatprep.subr.bf16.mxu0 0
      %2750 = vmatpush2.bf16.msra.mxu0 0
      %2751 = vmatprep.mubr.bf16.mxu0 0
      %2752 = vmatmul.mubr.bf16.gmra.mxu0 %v2570
      %v2753 = vpop.f32.mrf.mxu0
      %v2754 = vadd.f32 %v2717, %v2753
      %v2755 = vpop.f32.mrf.mxu0
      %v2756 = vpop.f32.mrf.mxu0
      %v2757 = vadd.f32 %v2717, %v2756
      %v2758 = vpop.f32.mrf.mxu0
      %2759 = vmatprep.mubr.bf16.mxu0 0
      %2760 = vmatmul.mubr.bf16.gmra.mxu0 %v2573
      %v2761 = vpop.f32.mrf.mxu0
      %v2762 = vadd.f32 %v2717, %v2761
      %v2763 = vpop.f32.mrf.mxu0
      %v2764 = vpop.f32.mrf.mxu0
      %v2765 = vadd.f32 %v2717, %v2764
      %v2766 = vpop.f32.mrf.mxu0
      %2767 = vmatprep.mubr.bf16.mxu0 0
      %2768 = vmatmul.mubr.bf16.gmra.mxu0 %v2576
      %v2769 = vpop.f32.mrf.mxu0
      %v2770 = vadd.f32 %v2717, %v2769
      %v2771 = vpop.f32.mrf.mxu0
      %v2772 = vpop.f32.mrf.mxu0
      %v2773 = vadd.f32 %v2717, %v2772
      %v2774 = vpop.f32.mrf.mxu0
      %2775 = vmatprep.mubr.bf16.mxu0 0
      %2776 = vmatmul.mubr.bf16.gmra.mxu0 %v2579
      %v2777 = vpop.f32.mrf.mxu0
      %v2778 = vadd.f32 %v2717, %v2777
      %v2779 = vpop.f32.mrf.mxu0
      %v2780 = vpop.f32.mrf.mxu0
      %v2781 = vadd.f32 %v2717, %v2780
      %v2782 = vpop.f32.mrf.mxu0
      %2783 = vmatprep.mubr.bf16.mxu0 0
      %2784 = vmatmul.mubr.bf16.gmra.mxu0 %v2582
      %v2785 = vpop.f32.mrf.mxu0
      %v2786 = vadd.f32 %v2717, %v2785
      %v2787 = vpop.f32.mrf.mxu0
      %v2788 = vpop.f32.mrf.mxu0
      %v2789 = vadd.f32 %v2717, %v2788
      %v2790 = vpop.f32.mrf.mxu0
      %2791 = vmatprep.mubr.bf16.mxu0 0
      %2792 = vmatmul.mubr.bf16.gmra.mxu0 %v2585
      %v2793 = vpop.f32.mrf.mxu0
      %v2794 = vadd.f32 %v2717, %v2793
      %v2795 = vpop.f32.mrf.mxu0
      %v2796 = vpop.f32.mrf.mxu0
      %v2797 = vadd.f32 %v2717, %v2796
      %v2798 = vpop.f32.mrf.mxu0
      %2799 = vmatprep.mubr.bf16.mxu0 0
      %2800 = vmatmul.mubr.bf16.gmra.mxu0 %v2588
      %v2801 = vpop.f32.mrf.mxu0
      %v2802 = vadd.f32 %v2717, %v2801
      %v2803 = vpop.f32.mrf.mxu0
      %v2804 = vpop.f32.mrf.mxu0
      %v2805 = vadd.f32 %v2717, %v2804
      %v2806 = vpop.f32.mrf.mxu0
      %2807 = vmatprep.mubr.bf16.mxu0 0
      %2808 = vmatmul.mubr.bf16.gmra.mxu0 %v2591
      %v2809 = vpop.f32.mrf.mxu0
      %v2810 = vadd.f32 %v2717, %v2809
      %v2811 = vpop.f32.mrf.mxu0
      %v2812 = vpop.f32.mrf.mxu0
      %v2813 = vadd.f32 %v2717, %v2812
      %v2814 = vpop.f32.mrf.mxu0
      %2815 = vdwg.mxu0
      %v2816 = vtanh.pop %v2754
      %v2817 = vtanh.pop %v2757
      %v2818 = vtanh.pop %v2762
      %v2819 = vtanh.pop %v2765
      %v2820 = vtanh.pop %v2770
      %v2821 = vtanh.pop %v2773
      %v2822 = vtanh.pop %v2778
      %v2823 = vtanh.pop %v2781
      %v2824 = vtanh.pop %v2786
      %v2825 = vtanh.pop %v2789
      %v2826 = vtanh.pop %v2794
      %v2827 = vtanh.pop %v2797
      %v2828 = vtanh.pop %v2802
      %v2829 = vtanh.pop %v2805
      %v2830 = vtanh.pop %v2810
      %v2831 = vtanh.pop %v2813
      %v2832 = vld [vmem:[%s35] sm:$0xff]
      %v2833 = vld [vmem:[%s35 + $0x8] sm:$0xff]
      %v2834 = vld [vmem:[%s35 + $0x10] sm:$0xff]
      %v2835 = vld [vmem:[%s35 + $0x18] sm:$0xff]
      %v2836 = vpack.c.bf16 %v2833, %v2832
      %v2837 = vpack.c.bf16 %v2835, %v2834
      %v2838 = vld [vmem:[%s37] sm:$0x1]
      %v2840 = vlaneseq
      %v2841 = vshrl.u32 %v2840, 7
      %v2842 = vsub.s32 0, %v2841
      %v2843 = vrot.slane %v2838, %v2842
      %2845 = vmatprep.subr.bf16.mxu0 0
      %2846 = vmatpush1.bf16.msra.mxu0 0
      %2847 = vmatprep.subr.bf16.mxu0 0
      %2848 = vmatpush1.bf16.msra.mxu0 0
      %2849 = vmatprep.subr.bf16.mxu0 0
      %2850 = vmatpush1.bf16.msra.mxu0 0
      %2851 = vmatprep.subr.bf16.mxu0 0
      %2852 = vmatpush1.bf16.msra.mxu0 0
      %2853 = vmatprep.subr.bf16.mxu0 0
      %2854 = vmatpush1.bf16.msra.mxu0 0
      %2855 = vmatprep.subr.bf16.mxu0 0
      %2856 = vmatpush1.bf16.msra.mxu0 0
      %2857 = vmatprep.subr.bf16.mxu0 0
      %2858 = vmatpush1.bf16.msra.mxu0 %v2837
      %2859 = vmatprep.subr.bf16.mxu0 0
      %2860 = vmatpush1.bf16.msra.mxu0 %v2836
      %2861 = vmatprep.subr.bf16.mxu0 0
      %2862 = vmatpush2.bf16.msra.mxu0 0
      %2863 = vmatprep.subr.bf16.mxu0 0
      %2864 = vmatpush2.bf16.msra.mxu0 0
      %2865 = vmatprep.subr.bf16.mxu0 0
      %2866 = vmatpush2.bf16.msra.mxu0 0
      %2867 = vmatprep.subr.bf16.mxu0 0
      %2868 = vmatpush2.bf16.msra.mxu0 0
      %2869 = vmatprep.subr.bf16.mxu0 0
      %2870 = vmatpush2.bf16.msra.mxu0 0
      %2871 = vmatprep.subr.bf16.mxu0 0
      %2872 = vmatpush2.bf16.msra.mxu0 0
      %2873 = vmatprep.subr.bf16.mxu0 0
      %2874 = vmatpush2.bf16.msra.mxu0 0
      %2875 = vmatprep.subr.bf16.mxu0 0
      %2876 = vmatpush2.bf16.msra.mxu0 0
      %2877 = vmatprep.mubr.bf16.mxu0 0
      %2878 = vmatmul.mubr.bf16.gmra.mxu0 %v2570
      %v2879 = vpop.f32.mrf.mxu0
      %v2880 = vadd.f32 %v2843, %v2879
      %v2881 = vpop.f32.mrf.mxu0
      %v2882 = vpop.f32.mrf.mxu0
      %v2883 = vadd.f32 %v2843, %v2882
      %v2884 = vpop.f32.mrf.mxu0
      %2885 = vmatprep.mubr.bf16.mxu0 0
      %2886 = vmatmul.mubr.bf16.gmra.mxu0 %v2573
      %v2887 = vpop.f32.mrf.mxu0
      %v2888 = vadd.f32 %v2843, %v2887
      %v2889 = vpop.f32.mrf.mxu0
      %v2890 = vpop.f32.mrf.mxu0
      %v2891 = vadd.f32 %v2843, %v2890
      %v2892 = vpop.f32.mrf.mxu0
      %2893 = vmatprep.mubr.bf16.mxu0 0
      %2894 = vmatmul.mubr.bf16.gmra.mxu0 %v2576
      %v2895 = vpop.f32.mrf.mxu0
      %v2896 = vadd.f32 %v2843, %v2895
      %v2897 = vpop.f32.mrf.mxu0
      %v2898 = vpop.f32.mrf.mxu0
      %v2899 = vadd.f32 %v2843, %v2898
      %v2900 = vpop.f32.mrf.mxu0
      %2901 = vmatprep.mubr.bf16.mxu0 0
      %2902 = vmatmul.mubr.bf16.gmra.mxu0 %v2579
      %v2903 = vpop.f32.mrf.mxu0
      %v2904 = vadd.f32 %v2843, %v2903
      %v2905 = vpop.f32.mrf.mxu0
      %v2906 = vpop.f32.mrf.mxu0
      %v2907 = vadd.f32 %v2843, %v2906
      %v2908 = vpop.f32.mrf.mxu0
      %2909 = vmatprep.mubr.bf16.mxu0 0
      %2910 = vmatmul.mubr.bf16.gmra.mxu0 %v2582
      %v2911 = vpop.f32.mrf.mxu0
      %v2912 = vadd.f32 %v2843, %v2911
      %v2913 = vpop.f32.mrf.mxu0
      %v2914 = vpop.f32.mrf.mxu0
      %v2915 = vadd.f32 %v2843, %v2914
      %v2916 = vpop.f32.mrf.mxu0
      %2917 = vmatprep.mubr.bf16.mxu0 0
      %2918 = vmatmul.mubr.bf16.gmra.mxu0 %v2585
      %v2919 = vpop.f32.mrf.mxu0
      %v2920 = vadd.f32 %v2843, %v2919
      %v2921 = vpop.f32.mrf.mxu0
      %v2922 = vpop.f32.mrf.mxu0
      %v2923 = vadd.f32 %v2843, %v2922
      %v2924 = vpop.f32.mrf.mxu0
      %2925 = vmatprep.mubr.bf16.mxu0 0
      %2926 = vmatmul.mubr.bf16.gmra.mxu0 %v2588
      %v2927 = vpop.f32.mrf.mxu0
      %v2928 = vadd.f32 %v2843, %v2927
      %v2929 = vpop.f32.mrf.mxu0
      %v2930 = vpop.f32.mrf.mxu0
      %v2931 = vadd.f32 %v2843, %v2930
      %v2932 = vpop.f32.mrf.mxu0
      %2933 = vmatprep.mubr.bf16.mxu0 0
      %2934 = vmatmul.mubr.bf16.gmra.mxu0 %v2591
      %v2935 = vpop.f32.mrf.mxu0
      %v2936 = vadd.f32 %v2843, %v2935
      %v2937 = vpop.f32.mrf.mxu0
      %v2938 = vpop.f32.mrf.mxu0
      %v2939 = vadd.f32 %v2843, %v2938
      %v2940 = vpop.f32.mrf.mxu0
      %2941 = vdwg.mxu0
      %vm2942 = vcmask 80896
      %v2943 = vsel %vm2942, %v2880, -inf
      %2944 = vmax.xlane.f32.xlu0 %v2943
      %v2945 = vpop.xlane.xlu0 %2944
      %v2946 = vsel %vm2942, %v2883, -inf
      %2947 = vmax.xlane.f32.xlu0 %v2946
      %v2948 = vpop.xlane.xlu0 %2947
      %v2949 = vsel %vm2942, %v2888, -inf
      %2950 = vmax.xlane.f32.xlu0 %v2949
      %v2951 = vpop.xlane.xlu0 %2950
      %v2952 = vsel %vm2942, %v2891, -inf
      %2953 = vmax.xlane.f32.xlu0 %v2952
      %v2954 = vpop.xlane.xlu0 %2953
      %v2955 = vsel %vm2942, %v2896, -inf
      %2956 = vmax.xlane.f32.xlu0 %v2955
      %v2957 = vpop.xlane.xlu0 %2956
      %v2958 = vsel %vm2942, %v2899, -inf
      %2959 = vmax.xlane.f32.xlu0 %v2958
      %v2960 = vpop.xlane.xlu0 %2959
      %v2961 = vsel %vm2942, %v2904, -inf
      %2962 = vmax.xlane.f32.xlu0 %v2961
      %v2963 = vpop.xlane.xlu0 %2962
      %v2964 = vsel %vm2942, %v2907, -inf
      %2965 = vmax.xlane.f32.xlu0 %v2964
      %v2966 = vpop.xlane.xlu0 %2965
      %v2967 = vsel %vm2942, %v2912, -inf
      %2968 = vmax.xlane.f32.xlu0 %v2967
      %v2969 = vpop.xlane.xlu0 %2968
      %v2970 = vsel %vm2942, %v2915, -inf
      %2971 = vmax.xlane.f32.xlu0 %v2970
      %v2972 = vpop.xlane.xlu0 %2971
      %v2973 = vsel %vm2942, %v2920, -inf
      %2974 = vmax.xlane.f32.xlu0 %v2973
      %v2975 = vpop.xlane.xlu0 %2974
      %v2976 = vsel %vm2942, %v2923, -inf
      %2977 = vmax.xlane.f32.xlu0 %v2976
      %v2978 = vpop.xlane.xlu0 %2977
      %v2979 = vsel %vm2942, %v2928, -inf
      %2980 = vmax.xlane.f32.xlu0 %v2979
      %v2981 = vpop.xlane.xlu0 %2980
      %v2982 = vsel %vm2942, %v2931, -inf
      %2983 = vmax.xlane.f32.xlu0 %v2982
      %v2984 = vpop.xlane.xlu0 %2983
      %v2985 = vsel %vm2942, %v2936, -inf
      %2986 = vmax.xlane.f32.xlu0 %v2985
      %v2987 = vpop.xlane.xlu0 %2986
      %v2988 = vsel %vm2942, %v2939, -inf
      %2989 = vmax.xlane.f32.xlu0 %v2988
      %v2990 = vpop.xlane.xlu0 %2989
      %v2991 = vsub.f32 %v2880, %v2945
      %v2992 = vsub.f32 %v2883, %v2948
      %v2993 = vsub.f32 %v2888, %v2951
      %v2994 = vsub.f32 %v2891, %v2954
      %v2995 = vsub.f32 %v2896, %v2957
      %v2996 = vsub.f32 %v2899, %v2960
      %v2997 = vsub.f32 %v2904, %v2963
      %v2998 = vsub.f32 %v2907, %v2966
      %v2999 = vsub.f32 %v2912, %v2969
      %v3000 = vsub.f32 %v2915, %v2972
      %v3001 = vsub.f32 %v2920, %v2975
      %v3002 = vsub.f32 %v2923, %v2978
      %v3003 = vsub.f32 %v2928, %v2981
      %v3004 = vsub.f32 %v2931, %v2984
      %v3005 = vsub.f32 %v2936, %v2987
      %v3006 = vsub.f32 %v2939, %v2990
      %v3007 = vmul.f32 %v2991, 1.442695
      %v3008 = vpow.pop %v3007
      %v3009 = vmul.f32 %v2992, 1.442695
      %v3010 = vpow.pop %v3009
      %v3011 = vmul.f32 %v2993, 1.442695
      %v3012 = vpow.pop %v3011
      %v3013 = vmul.f32 %v2994, 1.442695
      %v3014 = vpow.pop %v3013
      %v3015 = vmul.f32 %v2995, 1.442695
      %v3016 = vpow.pop %v3015
      %v3017 = vmul.f32 %v2996, 1.442695
      %v3018 = vpow.pop %v3017
      %v3019 = vmul.f32 %v2997, 1.442695
      %v3020 = vpow.pop %v3019
      %v3021 = vmul.f32 %v2998, 1.442695
      %v3022 = vpow.pop %v3021
      %v3023 = vmul.f32 %v2999, 1.442695
      %v3024 = vpow.pop %v3023
      %v3025 = vmul.f32 %v3000, 1.442695
      %v3026 = vpow.pop %v3025
      %v3027 = vmul.f32 %v3001, 1.442695
      %v3028 = vpow.pop %v3027
      %v3029 = vmul.f32 %v3002, 1.442695
      %v3030 = vpow.pop %v3029
      %v3031 = vmul.f32 %v3003, 1.442695
      %v3032 = vpow.pop %v3031
      %v3033 = vmul.f32 %v3004, 1.442695
      %v3034 = vpow.pop %v3033
      %v3035 = vmul.f32 %v3005, 1.442695
      %v3036 = vpow.pop %v3035
      %v3037 = vmul.f32 %v3006, 1.442695
      %v3038 = vpow.pop %v3037
      %v3039 = vsel %vm2942, %v3008, 0.0
      %3040 = vadd.xlane.f32.xlu0 %v3039
      %v3041 = vpop.xlane.xlu0 %3040
      %v3042 = vsel %vm2942, %v3010, 0.0
      %3043 = vadd.xlane.f32.xlu0 %v3042
      %v3044 = vpop.xlane.xlu0 %3043
      %v3045 = vsel %vm2942, %v3012, 0.0
      %3046 = vadd.xlane.f32.xlu0 %v3045
      %v3047 = vpop.xlane.xlu0 %3046
      %v3048 = vsel %vm2942, %v3014, 0.0
      %3049 = vadd.xlane.f32.xlu0 %v3048
      %v3050 = vpop.xlane.xlu0 %3049
      %v3051 = vsel %vm2942, %v3016, 0.0
      %3052 = vadd.xlane.f32.xlu0 %v3051
      %v3053 = vpop.xlane.xlu0 %3052
      %v3054 = vsel %vm2942, %v3018, 0.0
      %3055 = vadd.xlane.f32.xlu0 %v3054
      %v3056 = vpop.xlane.xlu0 %3055
      %v3057 = vsel %vm2942, %v3020, 0.0
      %3058 = vadd.xlane.f32.xlu0 %v3057
      %v3059 = vpop.xlane.xlu0 %3058
      %v3060 = vsel %vm2942, %v3022, 0.0
      %3061 = vadd.xlane.f32.xlu0 %v3060
      %v3062 = vpop.xlane.xlu0 %3061
      %v3063 = vsel %vm2942, %v3024, 0.0
      %3064 = vadd.xlane.f32.xlu0 %v3063
      %v3065 = vpop.xlane.xlu0 %3064
      %v3066 = vsel %vm2942, %v3026, 0.0
      %3067 = vadd.xlane.f32.xlu0 %v3066
      %v3068 = vpop.xlane.xlu0 %3067
      %v3069 = vsel %vm2942, %v3028, 0.0
      %3070 = vadd.xlane.f32.xlu0 %v3069
      %v3071 = vpop.xlane.xlu0 %3070
      %v3072 = vsel %vm2942, %v3030, 0.0
      %3073 = vadd.xlane.f32.xlu0 %v3072
      %v3074 = vpop.xlane.xlu0 %3073
      %v3075 = vsel %vm2942, %v3032, 0.0
      %3076 = vadd.xlane.f32.xlu0 %v3075
      %v3077 = vpop.xlane.xlu0 %3076
      %v3078 = vsel %vm2942, %v3034, 0.0
      %3079 = vadd.xlane.f32.xlu0 %v3078
      %v3080 = vpop.xlane.xlu0 %3079
      %v3081 = vsel %vm2942, %v3036, 0.0
      %3082 = vadd.xlane.f32.xlu0 %v3081
      %v3083 = vpop.xlane.xlu0 %3082
      %v3084 = vsel %vm2942, %v3038, 0.0
      %3085 = vadd.xlane.f32.xlu0 %v3084
      %v3086 = vpop.xlane.xlu0 %3085
      %v3087 = vrcp.pop %v3041
      %v3088 = vrcp.pop %v3044
      %v3089 = vrcp.pop %v3047
      %v3090 = vrcp.pop %v3050
      %v3091 = vrcp.pop %v3053
      %v3092 = vrcp.pop %v3056
      %v3093 = vrcp.pop %v3059
      %v3094 = vrcp.pop %v3062
      %v3095 = vrcp.pop %v3065
      %v3096 = vrcp.pop %v3068
      %v3097 = vrcp.pop %v3071
      %v3098 = vrcp.pop %v3074
      %v3099 = vrcp.pop %v3077
      %v3100 = vrcp.pop %v3080
      %v3101 = vrcp.pop %v3083
      %v3102 = vrcp.pop %v3086
      %v3103 = vmul.f32 %v3008, %v3087
      %v3104 = vmul.f32 %v3010, %v3088
      %v3105 = vmul.f32 %v3012, %v3089
      %v3106 = vmul.f32 %v3014, %v3090
      %v3107 = vmul.f32 %v3016, %v3091
      %v3108 = vmul.f32 %v3018, %v3092
      %v3109 = vmul.f32 %v3020, %v3093
      %v3110 = vmul.f32 %v3022, %v3094
      %v3111 = vmul.f32 %v3024, %v3095
      %v3112 = vmul.f32 %v3026, %v3096
      %v3113 = vmul.f32 %v3028, %v3097
      %v3114 = vmul.f32 %v3030, %v3098
      %v3115 = vmul.f32 %v3032, %v3099
      %v3116 = vmul.f32 %v3034, %v3100
      %v3117 = vmul.f32 %v3036, %v3101
      %v3118 = vmul.f32 %v3038, %v3102
      %v3119 = vmul.f32 %v2816, 0.5
      %v3120 = vmul.f32 %v2817, 0.5
      %v3121 = vmul.f32 %v2818, 0.5
      %v3122 = vmul.f32 %v2819, 0.5
      %v3123 = vmul.f32 %v2820, 0.5
      %v3124 = vmul.f32 %v2821, 0.5
      %v3125 = vmul.f32 %v2822, 0.5
      %v3126 = vmul.f32 %v2823, 0.5
      %v3127 = vmul.f32 %v2824, 0.5
      %v3128 = vmul.f32 %v2825, 0.5
      %v3129 = vmul.f32 %v2826, 0.5
      %v3130 = vmul.f32 %v2827, 0.5
      %v3131 = vmul.f32 %v2828, 0.5
      %v3132 = vmul.f32 %v2829, 0.5
      %v3133 = vmul.f32 %v2830, 0.5
      %v3134 = vmul.f32 %v2831, 0.5
      %v3135 = vmul.f32 %v3119, 1.442695
      %v3136 = vpow.pop %v3135
      %v3137 = vmul.f32 %v3120, 1.442695
      %v3138 = vpow.pop %v3137
      %v3139 = vmul.f32 %v3121, 1.442695
      %v3140 = vpow.pop %v3139
      %v3141 = vmul.f32 %v3122, 1.442695
      %v3142 = vpow.pop %v3141
      %v3143 = vmul.f32 %v3123, 1.442695
      %v3144 = vpow.pop %v3143
      %v3145 = vmul.f32 %v3124, 1.442695
      %v3146 = vpow.pop %v3145
      %v3147 = vmul.f32 %v3125, 1.442695
      %v3148 = vpow.pop %v3147
      %v3149 = vmul.f32 %v3126, 1.442695
      %v3150 = vpow.pop %v3149
      %v3151 = vmul.f32 %v3127, 1.442695
      %v3152 = vpow.pop %v3151
      %v3153 = vmul.f32 %v3128, 1.442695
      %v3154 = vpow.pop %v3153
      %v3155 = vmul.f32 %v3129, 1.442695
      %v3156 = vpow.pop %v3155
      %v3157 = vmul.f32 %v3130, 1.442695
      %v3158 = vpow.pop %v3157
      %v3159 = vmul.f32 %v3131, 1.442695
      %v3160 = vpow.pop %v3159
      %v3161 = vmul.f32 %v3132, 1.442695
      %v3162 = vpow.pop %v3161
      %v3163 = vmul.f32 %v3133, 1.442695
      %v3164 = vpow.pop %v3163
      %v3165 = vmul.f32 %v3134, 1.442695
      %v3166 = vpow.pop %v3165
      %v3167 = vld [vmem:[%s1136] sm:$0xff]
      %v3168 = vld [vmem:[%s1136 + $0x8] sm:$0xff]
      %v3169 = vld [vmem:[%s1136 + $0x10] sm:$0xff]
      %v3170 = vld [vmem:[%s1136 + $0x18] sm:$0xff]
      %v3171 = vld [vmem:[%s1136 + $0x20] sm:$0xff]
      %v3172 = vld [vmem:[%s1136 + $0x28] sm:$0xff]
      %v3173 = vld [vmem:[%s1136 + $0x30] sm:$0xff]
      %v3174 = vld [vmem:[%s1136 + $0x38] sm:$0xff]
      %v3175 = vld [vmem:[%s1136 + $0x40] sm:$0xff]
      %v3176 = vld [vmem:[%s1136 + $0x48] sm:$0xff]
      %v3177 = vld [vmem:[%s1136 + $0x50] sm:$0xff]
      %v3178 = vld [vmem:[%s1136 + $0x58] sm:$0xff]
      %v3179 = vld [vmem:[%s1136 + $0x60] sm:$0xff]
      %v3180 = vld [vmem:[%s1136 + $0x68] sm:$0xff]
      %v3181 = vld [vmem:[%s1136 + $0x70] sm:$0xff]
      %v3182 = vld [vmem:[%s1136 + $0x78] sm:$0xff]
      %v3183 = vmul.f32 %v3136, %v3167
      %v3184 = vmul.f32 %v3138, %v3168
      %v3185 = vmul.f32 %v3140, %v3169
      %v3186 = vmul.f32 %v3142, %v3170
      %v3187 = vmul.f32 %v3144, %v3171
      %v3188 = vmul.f32 %v3146, %v3172
      %v3189 = vmul.f32 %v3148, %v3173
      %v3190 = vmul.f32 %v3150, %v3174
      %v3191 = vmul.f32 %v3152, %v3175
      %v3192 = vmul.f32 %v3154, %v3176
      %v3193 = vmul.f32 %v3156, %v3177
      %v3194 = vmul.f32 %v3158, %v3178
      %v3195 = vmul.f32 %v3160, %v3179
      %v3196 = vmul.f32 %v3162, %v3180
      %v3197 = vmul.f32 %v3164, %v3181
      %v3198 = vmul.f32 %v3166, %v3182
      %v3199 = vadd.f32 %v2690, %v3183
      %v3200 = vadd.f32 %v2691, %v3184
      %v3201 = vadd.f32 %v2692, %v3185
      %v3202 = vadd.f32 %v2693, %v3186
      %v3203 = vadd.f32 %v2694, %v3187
      %v3204 = vadd.f32 %v2695, %v3188
      %v3205 = vadd.f32 %v2696, %v3189
      %v3206 = vadd.f32 %v2697, %v3190
      %v3207 = vadd.f32 %v2698, %v3191
      %v3208 = vadd.f32 %v2699, %v3192
      %v3209 = vadd.f32 %v2700, %v3193
      %v3210 = vadd.f32 %v2701, %v3194
      %v3211 = vadd.f32 %v2702, %v3195
      %v3212 = vadd.f32 %v2703, %v3196
      %v3213 = vadd.f32 %v2704, %v3197
      %v3214 = vadd.f32 %v2705, %v3198
      %v3215 = vld [vmem:[%s1130] sm:$0xff]
      %v3216 = vld [vmem:[%s1130 + $0x8] sm:$0xff]
      %v3217 = vld [vmem:[%s1130 + $0x10] sm:$0xff]
      %v3218 = vld [vmem:[%s1130 + $0x18] sm:$0xff]
      %v3219 = vld [vmem:[%s1130 + $0x20] sm:$0xff]
      %v3220 = vld [vmem:[%s1130 + $0x28] sm:$0xff]
      %v3221 = vld [vmem:[%s1130 + $0x30] sm:$0xff]
      %v3222 = vld [vmem:[%s1130 + $0x38] sm:$0xff]
      %v3223 = vld [vmem:[%s1130 + $0x40] sm:$0xff]
      %v3224 = vld [vmem:[%s1130 + $0x48] sm:$0xff]
      %v3225 = vld [vmem:[%s1130 + $0x50] sm:$0xff]
      %v3226 = vld [vmem:[%s1130 + $0x58] sm:$0xff]
      %v3227 = vld [vmem:[%s1130 + $0x60] sm:$0xff]
      %v3228 = vld [vmem:[%s1130 + $0x68] sm:$0xff]
      %v3229 = vld [vmem:[%s1130 + $0x70] sm:$0xff]
      %v3230 = vld [vmem:[%s1130 + $0x78] sm:$0xff]
      %v3231 = vpack.c.bf16 %v3200, %v3199
      %v3232 = vpack.c.bf16 %v3202, %v3201
      %v3233 = vpack.c.bf16 %v3204, %v3203
      %v3234 = vpack.c.bf16 %v3206, %v3205
      %v3235 = vpack.c.bf16 %v3208, %v3207
      %v3236 = vpack.c.bf16 %v3210, %v3209
      %v3237 = vpack.c.bf16 %v3212, %v3211
      %v3238 = vpack.c.bf16 %v3214, %v3213
      %v3239 = vld [vmem:[%s39] sm:$0xff]
      %v3240 = vld [vmem:[%s39 + $0x8] sm:$0xff]
      %v3241 = vpack.c.bf16 %v3240, %v3239
      %v3242 = vpack.c.bf16 %v3216, %v3215
      %v3243 = vpack.c.bf16 %v3218, %v3217
      %v3244 = vpack.c.bf16 %v3220, %v3219
      %v3245 = vpack.c.bf16 %v3222, %v3221
      %v3246 = vpack.c.bf16 %v3224, %v3223
      %v3247 = vpack.c.bf16 %v3226, %v3225
      %v3248 = vpack.c.bf16 %v3228, %v3227
      %v3249 = vpack.c.bf16 %v3230, %v3229
      %v3250 = vld [vmem:[%s41] sm:$0xff]
      %v3251 = vld [vmem:[%s41 + $0x8] sm:$0x3]
      %v3252 = vpack.c.bf16 %v3251, %v3250
      %v3254 = vsel %vm2942, %v3242, 0
      %v3257 = vsel %vm2942, %v3243, 0
      %v3260 = vsel %vm2942, %v3244, 0
      %v3263 = vsel %vm2942, %v3245, 0
      %v3266 = vsel %vm2942, %v3246, 0
      %v3269 = vsel %vm2942, %v3247, 0
      %v3272 = vsel %vm2942, %v3248, 0
      %v3275 = vsel %vm2942, %v3249, 0
      %vm3277 = vcmask 1044480
      %v3279 = vsel %vm3277, %v3252, 0
      %3281 = vmatprep.subr.bf16.mxu0 0
      %3282 = vmatpush1.bf16.msra.mxu0 0
      %3283 = vmatprep.subr.bf16.mxu0 0
      %3284 = vmatpush1.bf16.msra.mxu0 0
      %3285 = vmatprep.subr.bf16.mxu0 0
      %3286 = vmatpush1.bf16.msra.mxu0 0
      %3287 = vmatprep.subr.bf16.mxu0 0
      %3288 = vmatpush1.bf16.msra.mxu0 0
      %3289 = vmatprep.subr.bf16.mxu0 0
      %3290 = vmatpush1.bf16.msra.mxu0 0
      %3291 = vmatprep.subr.bf16.mxu0 0
      %3292 = vmatpush1.bf16.msra.mxu0 0
      %3293 = vmatprep.subr.bf16.mxu0 0
      %3294 = vmatpush1.bf16.msra.mxu0 0
      %3295 = vmatprep.subr.bf16.mxu0 0
      %3296 = vmatpush1.bf16.msra.mxu0 %v3279
      %3297 = vmatprep.subr.bf16.mxu0 0
      %3298 = vmatpush2.bf16.msra.mxu0 0
      %3299 = vmatprep.subr.bf16.mxu0 0
      %3300 = vmatpush2.bf16.msra.mxu0 0
      %3301 = vmatprep.subr.bf16.mxu0 0
      %3302 = vmatpush2.bf16.msra.mxu0 0
      %3303 = vmatprep.subr.bf16.mxu0 0
      %3304 = vmatpush2.bf16.msra.mxu0 0
      %3305 = vmatprep.subr.bf16.mxu0 0
      %3306 = vmatpush2.bf16.msra.mxu0 0
      %3307 = vmatprep.subr.bf16.mxu0 0
      %3308 = vmatpush2.bf16.msra.mxu0 0
      %3309 = vmatprep.subr.bf16.mxu0 0
      %3310 = vmatpush2.bf16.msra.mxu0 0
      %3311 = vmatprep.subr.bf16.mxu0 0
      %3312 = vmatpush2.bf16.msra.mxu0 0
      %3313 = vmatprep.mubr.bf16.mxu0 0
      %3314 = vmatmul.mubr.bf16.gmra.mxu0 %v3254
      %v3315 = vpop.f32.mrf.mxu0
      %v3316 = vadd.f32 0.0, %v3315
      %v3317 = vpop.f32.mrf.mxu0
      %v3318 = vpop.f32.mrf.mxu0
      %v3319 = vadd.f32 0.0, %v3318
      %v3320 = vpop.f32.mrf.mxu0
      %3321 = vmatprep.mubr.bf16.mxu0 0
      %3322 = vmatmul.mubr.bf16.gmra.mxu0 %v3257
      %v3323 = vpop.f32.mrf.mxu0
      %v3324 = vadd.f32 0.0, %v3323
      %v3325 = vpop.f32.mrf.mxu0
      %v3326 = vpop.f32.mrf.mxu0
      %v3327 = vadd.f32 0.0, %v3326
      %v3328 = vpop.f32.mrf.mxu0
      %3329 = vmatprep.mubr.bf16.mxu0 0
      %3330 = vmatmul.mubr.bf16.gmra.mxu0 %v3260
      %v3331 = vpop.f32.mrf.mxu0
      %v3332 = vadd.f32 0.0, %v3331
      %v3333 = vpop.f32.mrf.mxu0
      %v3334 = vpop.f32.mrf.mxu0
      %v3335 = vadd.f32 0.0, %v3334
      %v3336 = vpop.f32.mrf.mxu0
      %3337 = vmatprep.mubr.bf16.mxu0 0
      %3338 = vmatmul.mubr.bf16.gmra.mxu0 %v3263
      %v3339 = vpop.f32.mrf.mxu0
      %v3340 = vadd.f32 0.0, %v3339
      %v3341 = vpop.f32.mrf.mxu0
      %v3342 = vpop.f32.mrf.mxu0
      %v3343 = vadd.f32 0.0, %v3342
      %v3344 = vpop.f32.mrf.mxu0
      %3345 = vmatprep.mubr.bf16.mxu0 0
      %3346 = vmatmul.mubr.bf16.gmra.mxu0 %v3266
      %v3347 = vpop.f32.mrf.mxu0
      %v3348 = vadd.f32 0.0, %v3347
      %v3349 = vpop.f32.mrf.mxu0
      %v3350 = vpop.f32.mrf.mxu0
      %v3351 = vadd.f32 0.0, %v3350
      %v3352 = vpop.f32.mrf.mxu0
      %3353 = vmatprep.mubr.bf16.mxu0 0
      %3354 = vmatmul.mubr.bf16.gmra.mxu0 %v3269
      %v3355 = vpop.f32.mrf.mxu0
      %v3356 = vadd.f32 0.0, %v3355
      %v3357 = vpop.f32.mrf.mxu0
      %v3358 = vpop.f32.mrf.mxu0
      %v3359 = vadd.f32 0.0, %v3358
      %v3360 = vpop.f32.mrf.mxu0
      %3361 = vmatprep.mubr.bf16.mxu0 0
      %3362 = vmatmul.mubr.bf16.gmra.mxu0 %v3272
      %v3363 = vpop.f32.mrf.mxu0
      %v3364 = vadd.f32 0.0, %v3363
      %v3365 = vpop.f32.mrf.mxu0
      %v3366 = vpop.f32.mrf.mxu0
      %v3367 = vadd.f32 0.0, %v3366
      %v3368 = vpop.f32.mrf.mxu0
      %3369 = vmatprep.mubr.bf16.mxu0 0
      %3370 = vmatmul.mubr.bf16.gmra.mxu0 %v3275
      %v3371 = vpop.f32.mrf.mxu0
      %v3372 = vadd.f32 0.0, %v3371
      %v3373 = vpop.f32.mrf.mxu0
      %v3374 = vpop.f32.mrf.mxu0
      %v3375 = vadd.f32 0.0, %v3374
      %v3376 = vpop.f32.mrf.mxu0
      %3377 = vdwg.mxu0
      %v3379 = vsel %vm1486, %v3231, 0
      %v3382 = vsel %vm1486, %v3232, 0
      %v3385 = vsel %vm1486, %v3233, 0
      %v3388 = vsel %vm1486, %v3234, 0
      %v3391 = vsel %vm1486, %v3235, 0
      %v3394 = vsel %vm1486, %v3236, 0
      %v3397 = vsel %vm1486, %v3237, 0
      %v3400 = vsel %vm1486, %v3238, 0
      %3402 = vmatprep.subr.bf16.mxu0 0
      %3403 = vmatpush1.bf16.msra.mxu0 0
      %3404 = vmatprep.subr.bf16.mxu0 0
      %3405 = vmatpush1.bf16.msra.mxu0 0
      %3406 = vmatprep.subr.bf16.mxu0 0
      %3407 = vmatpush1.bf16.msra.mxu0 0
      %3408 = vmatprep.subr.bf16.mxu0 0
      %3409 = vmatpush1.bf16.msra.mxu0 0
      %3410 = vmatprep.subr.bf16.mxu0 0
      %3411 = vmatpush1.bf16.msra.mxu0 0
      %3412 = vmatprep.subr.bf16.mxu0 0
      %3413 = vmatpush1.bf16.msra.mxu0 0
      %3414 = vmatprep.subr.bf16.mxu0 0
      %3415 = vmatpush1.bf16.msra.mxu0 0
      %3416 = vmatprep.subr.bf16.mxu0 0
      %3417 = vmatpush1.bf16.msra.mxu0 %v3241
      %3418 = vmatprep.subr.bf16.mxu0 0
      %3419 = vmatpush2.bf16.msra.mxu0 0
      %3420 = vmatprep.subr.bf16.mxu0 0
      %3421 = vmatpush2.bf16.msra.mxu0 0
      %3422 = vmatprep.subr.bf16.mxu0 0
      %3423 = vmatpush2.bf16.msra.mxu0 0
      %3424 = vmatprep.subr.bf16.mxu0 0
      %3425 = vmatpush2.bf16.msra.mxu0 0
      %3426 = vmatprep.subr.bf16.mxu0 0
      %3427 = vmatpush2.bf16.msra.mxu0 0
      %3428 = vmatprep.subr.bf16.mxu0 0
      %3429 = vmatpush2.bf16.msra.mxu0 0
      %3430 = vmatprep.subr.bf16.mxu0 0
      %3431 = vmatpush2.bf16.msra.mxu0 0
      %3432 = vmatprep.subr.bf16.mxu0 0
      %3433 = vmatpush2.bf16.msra.mxu0 0
      %3434 = vmatprep.mubr.bf16.mxu0 0
      %3435 = vmatmul.mubr.bf16.gmra.mxu0 %v3379
      %v3436 = vpop.f32.mrf.mxu0
      %v3437 = vadd.f32 %v3316, %v3436
      %v3438 = vpop.f32.mrf.mxu0
      %v3439 = vpop.f32.mrf.mxu0
      %v3440 = vadd.f32 %v3319, %v3439
      %v3441 = vpop.f32.mrf.mxu0
      %3442 = vmatprep.mubr.bf16.mxu0 0
      %3443 = vmatmul.mubr.bf16.gmra.mxu0 %v3382
      %v3444 = vpop.f32.mrf.mxu0
      %v3445 = vadd.f32 %v3324, %v3444
      %v3446 = vpop.f32.mrf.mxu0
      %v3447 = vpop.f32.mrf.mxu0
      %v3448 = vadd.f32 %v3327, %v3447
      %v3449 = vpop.f32.mrf.mxu0
      %3450 = vmatprep.mubr.bf16.mxu0 0
      %3451 = vmatmul.mubr.bf16.gmra.mxu0 %v3385
      %v3452 = vpop.f32.mrf.mxu0
      %v3453 = vadd.f32 %v3332, %v3452
      %v3454 = vpop.f32.mrf.mxu0
      %v3455 = vpop.f32.mrf.mxu0
      %v3456 = vadd.f32 %v3335, %v3455
      %v3457 = vpop.f32.mrf.mxu0
      %3458 = vmatprep.mubr.bf16.mxu0 0
      %3459 = vmatmul.mubr.bf16.gmra.mxu0 %v3388
      %v3460 = vpop.f32.mrf.mxu0
      %v3461 = vadd.f32 %v3340, %v3460
      %v3462 = vpop.f32.mrf.mxu0
      %v3463 = vpop.f32.mrf.mxu0
      %v3464 = vadd.f32 %v3343, %v3463
      %v3465 = vpop.f32.mrf.mxu0
      %3466 = vmatprep.mubr.bf16.mxu0 0
      %3467 = vmatmul.mubr.bf16.gmra.mxu0 %v3391
      %v3468 = vpop.f32.mrf.mxu0
      %v3469 = vadd.f32 %v3348, %v3468
      %v3470 = vpop.f32.mrf.mxu0
      %v3471 = vpop.f32.mrf.mxu0
      %v3472 = vadd.f32 %v3351, %v3471
      %v3473 = vpop.f32.mrf.mxu0
      %3474 = vmatprep.mubr.bf16.mxu0 0
      %3475 = vmatmul.mubr.bf16.gmra.mxu0 %v3394
      %v3476 = vpop.f32.mrf.mxu0
      %v3477 = vadd.f32 %v3356, %v3476
      %v3478 = vpop.f32.mrf.mxu0
      %v3479 = vpop.f32.mrf.mxu0
      %v3480 = vadd.f32 %v3359, %v3479
      %v3481 = vpop.f32.mrf.mxu0
      %3482 = vmatprep.mubr.bf16.mxu0 0
      %3483 = vmatmul.mubr.bf16.gmra.mxu0 %v3397
      %v3484 = vpop.f32.mrf.mxu0
      %v3485 = vadd.f32 %v3364, %v3484
      %v3486 = vpop.f32.mrf.mxu0
      %v3487 = vpop.f32.mrf.mxu0
      %v3488 = vadd.f32 %v3367, %v3487
      %v3489 = vpop.f32.mrf.mxu0
      %3490 = vmatprep.mubr.bf16.mxu0 0
      %3491 = vmatmul.mubr.bf16.gmra.mxu0 %v3400
      %v3492 = vpop.f32.mrf.mxu0
      %v3493 = vadd.f32 %v3372, %v3492
      %v3494 = vpop.f32.mrf.mxu0
      %v3495 = vpop.f32.mrf.mxu0
      %v3496 = vadd.f32 %v3375, %v3495
      %v3497 = vpop.f32.mrf.mxu0
      %3498 = vdwg.mxu0
      %v3499 = vld [vmem:[%s43] sm:$0x1]
      %v3501 = vlaneseq
      %v3502 = vshrl.u32 %v3501, 7
      %v3503 = vsub.s32 0, %v3502
      %v3504 = vrot.slane %v3499, %v3503
      %v3506 = vadd.f32 %v3437, %v3504
      %v3507 = vadd.f32 %v3440, %v3504
      %v3508 = vadd.f32 %v3445, %v3504
      %v3509 = vadd.f32 %v3448, %v3504
      %v3510 = vadd.f32 %v3453, %v3504
      %v3511 = vadd.f32 %v3456, %v3504
      %v3512 = vadd.f32 %v3461, %v3504
      %v3513 = vadd.f32 %v3464, %v3504
      %v3514 = vadd.f32 %v3469, %v3504
      %v3515 = vadd.f32 %v3472, %v3504
      %v3516 = vadd.f32 %v3477, %v3504
      %v3517 = vadd.f32 %v3480, %v3504
      %v3518 = vadd.f32 %v3485, %v3504
      %v3519 = vadd.f32 %v3488, %v3504
      %v3520 = vadd.f32 %v3493, %v3504
      %v3521 = vadd.f32 %v3496, %v3504
      %v3522 = vtanh.pop %v3506
      %v3523 = vtanh.pop %v3507
      %v3524 = vtanh.pop %v3508
      %v3525 = vtanh.pop %v3509
      %v3526 = vtanh.pop %v3510
      %v3527 = vtanh.pop %v3511
      %v3528 = vtanh.pop %v3512
      %v3529 = vtanh.pop %v3513
      %v3530 = vtanh.pop %v3514
      %v3531 = vtanh.pop %v3515
      %v3532 = vtanh.pop %v3516
      %v3533 = vtanh.pop %v3517
      %v3534 = vtanh.pop %v3518
      %v3535 = vtanh.pop %v3519
      %v3536 = vtanh.pop %v3520
      %v3537 = vtanh.pop %v3521
      %v3538 = vpack.c.bf16 %v3523, %v3522
      %v3539 = vpack.c.bf16 %v3525, %v3524
      %v3540 = vpack.c.bf16 %v3527, %v3526
      %v3541 = vpack.c.bf16 %v3529, %v3528
      %v3542 = vpack.c.bf16 %v3531, %v3530
      %v3543 = vpack.c.bf16 %v3533, %v3532
      %v3544 = vpack.c.bf16 %v3535, %v3534
      %v3545 = vpack.c.bf16 %v3537, %v3536
      %v3546 = vld [vmem:[%s45] sm:$0xff]
      %v3547 = vld [vmem:[%s45 + $0x8] sm:$0xff]
      %v3548 = vld [vmem:[%s45 + $0x10] sm:$0xff]
      %v3549 = vld [vmem:[%s45 + $0x18] sm:$0xff]
      %v3550 = vpack.c.bf16 %v3547, %v3546
      %v3551 = vpack.c.bf16 %v3549, %v3548
      %v3552 = vld [vmem:[%s47] sm:$0x1]
      %v3554 = vlaneseq
      %v3555 = vshrl.u32 %v3554, 7
      %v3556 = vsub.s32 0, %v3555
      %v3557 = vrot.slane %v3552, %v3556
      %v3560 = vsel %vm1936, %v3538, 0
      %v3563 = vsel %vm1936, %v3539, 0
      %v3566 = vsel %vm1936, %v3540, 0
      %v3569 = vsel %vm1936, %v3541, 0
      %v3572 = vsel %vm1936, %v3542, 0
      %v3575 = vsel %vm1936, %v3543, 0
      %v3578 = vsel %vm1936, %v3544, 0
      %v3581 = vsel %vm1936, %v3545, 0
      %3583 = vmatprep.subr.bf16.mxu0 0
      %3584 = vmatpush1.bf16.msra.mxu0 0
      %3585 = vmatprep.subr.bf16.mxu0 0
      %3586 = vmatpush1.bf16.msra.mxu0 0
      %3587 = vmatprep.subr.bf16.mxu0 0
      %3588 = vmatpush1.bf16.msra.mxu0 0
      %3589 = vmatprep.subr.bf16.mxu0 0
      %3590 = vmatpush1.bf16.msra.mxu0 0
      %3591 = vmatprep.subr.bf16.mxu0 0
      %3592 = vmatpush1.bf16.msra.mxu0 0
      %3593 = vmatprep.subr.bf16.mxu0 0
      %3594 = vmatpush1.bf16.msra.mxu0 0
      %3595 = vmatprep.subr.bf16.mxu0 0
      %3596 = vmatpush1.bf16.msra.mxu0 %v3551
      %3597 = vmatprep.subr.bf16.mxu0 0
      %3598 = vmatpush1.bf16.msra.mxu0 %v3550
      %3599 = vmatprep.subr.bf16.mxu0 0
      %3600 = vmatpush2.bf16.msra.mxu0 0
      %3601 = vmatprep.subr.bf16.mxu0 0
      %3602 = vmatpush2.bf16.msra.mxu0 0
      %3603 = vmatprep.subr.bf16.mxu0 0
      %3604 = vmatpush2.bf16.msra.mxu0 0
      %3605 = vmatprep.subr.bf16.mxu0 0
      %3606 = vmatpush2.bf16.msra.mxu0 0
      %3607 = vmatprep.subr.bf16.mxu0 0
      %3608 = vmatpush2.bf16.msra.mxu0 0
      %3609 = vmatprep.subr.bf16.mxu0 0
      %3610 = vmatpush2.bf16.msra.mxu0 0
      %3611 = vmatprep.subr.bf16.mxu0 0
      %3612 = vmatpush2.bf16.msra.mxu0 0
      %3613 = vmatprep.subr.bf16.mxu0 0
      %3614 = vmatpush2.bf16.msra.mxu0 0
      %3615 = vmatprep.mubr.bf16.mxu0 0
      %3616 = vmatmul.mubr.bf16.gmra.mxu0 %v3560
      %v3617 = vpop.f32.mrf.mxu0
      %v3618 = vadd.f32 %v3557, %v3617
      %v3619 = vpop.f32.mrf.mxu0
      %v3620 = vpop.f32.mrf.mxu0
      %v3621 = vadd.f32 %v3557, %v3620
      %v3622 = vpop.f32.mrf.mxu0
      %3623 = vmatprep.mubr.bf16.mxu0 0
      %3624 = vmatmul.mubr.bf16.gmra.mxu0 %v3563
      %v3625 = vpop.f32.mrf.mxu0
      %v3626 = vadd.f32 %v3557, %v3625
      %v3627 = vpop.f32.mrf.mxu0
      %v3628 = vpop.f32.mrf.mxu0
      %v3629 = vadd.f32 %v3557, %v3628
      %v3630 = vpop.f32.mrf.mxu0
      %3631 = vmatprep.mubr.bf16.mxu0 0
      %3632 = vmatmul.mubr.bf16.gmra.mxu0 %v3566
      %v3633 = vpop.f32.mrf.mxu0
      %v3634 = vadd.f32 %v3557, %v3633
      %v3635 = vpop.f32.mrf.mxu0
      %v3636 = vpop.f32.mrf.mxu0
      %v3637 = vadd.f32 %v3557, %v3636
      %v3638 = vpop.f32.mrf.mxu0
      %3639 = vmatprep.mubr.bf16.mxu0 0
      %3640 = vmatmul.mubr.bf16.gmra.mxu0 %v3569
      %v3641 = vpop.f32.mrf.mxu0
      %v3642 = vadd.f32 %v3557, %v3641
      %v3643 = vpop.f32.mrf.mxu0
      %v3644 = vpop.f32.mrf.mxu0
      %v3645 = vadd.f32 %v3557, %v3644
      %v3646 = vpop.f32.mrf.mxu0
      %3647 = vmatprep.mubr.bf16.mxu0 0
      %3648 = vmatmul.mubr.bf16.gmra.mxu0 %v3572
      %v3649 = vpop.f32.mrf.mxu0
      %v3650 = vadd.f32 %v3557, %v3649
      %v3651 = vpop.f32.mrf.mxu0
      %v3652 = vpop.f32.mrf.mxu0
      %v3653 = vadd.f32 %v3557, %v3652
      %v3654 = vpop.f32.mrf.mxu0
      %3655 = vmatprep.mubr.bf16.mxu0 0
      %3656 = vmatmul.mubr.bf16.gmra.mxu0 %v3575
      %v3657 = vpop.f32.mrf.mxu0
      %v3658 = vadd.f32 %v3557, %v3657
      %v3659 = vpop.f32.mrf.mxu0
      %v3660 = vpop.f32.mrf.mxu0
      %v3661 = vadd.f32 %v3557, %v3660
      %v3662 = vpop.f32.mrf.mxu0
      %3663 = vmatprep.mubr.bf16.mxu0 0
      %3664 = vmatmul.mubr.bf16.gmra.mxu0 %v3578
      %v3665 = vpop.f32.mrf.mxu0
      %v3666 = vadd.f32 %v3557, %v3665
      %v3667 = vpop.f32.mrf.mxu0
      %v3668 = vpop.f32.mrf.mxu0
      %v3669 = vadd.f32 %v3557, %v3668
      %v3670 = vpop.f32.mrf.mxu0
      %3671 = vmatprep.mubr.bf16.mxu0 0
      %3672 = vmatmul.mubr.bf16.gmra.mxu0 %v3581
      %v3673 = vpop.f32.mrf.mxu0
      %v3674 = vadd.f32 %v3557, %v3673
      %v3675 = vpop.f32.mrf.mxu0
      %v3676 = vpop.f32.mrf.mxu0
      %v3677 = vadd.f32 %v3557, %v3676
      %v3678 = vpop.f32.mrf.mxu0
      %3679 = vdwg.mxu0
      %v3680 = vtanh.pop %v3618
      %v3681 = vtanh.pop %v3621
      %v3682 = vtanh.pop %v3626
      %v3683 = vtanh.pop %v3629
      %v3684 = vtanh.pop %v3634
      %v3685 = vtanh.pop %v3637
      %v3686 = vtanh.pop %v3642
      %v3687 = vtanh.pop %v3645
      %v3688 = vtanh.pop %v3650
      %v3689 = vtanh.pop %v3653
      %v3690 = vtanh.pop %v3658
      %v3691 = vtanh.pop %v3661
      %v3692 = vtanh.pop %v3666
      %v3693 = vtanh.pop %v3669
      %v3694 = vtanh.pop %v3674
      %v3695 = vtanh.pop %v3677
      %v3696 = vpack.c.bf16 %v3681, %v3680
      %v3697 = vpack.c.bf16 %v3683, %v3682
      %v3698 = vpack.c.bf16 %v3685, %v3684
      %v3699 = vpack.c.bf16 %v3687, %v3686
      %v3700 = vpack.c.bf16 %v3689, %v3688
      %v3701 = vpack.c.bf16 %v3691, %v3690
      %v3702 = vpack.c.bf16 %v3693, %v3692
      %v3703 = vpack.c.bf16 %v3695, %v3694
      %v3704 = vld [vmem:[%s49] sm:$0xff]
      %v3705 = vld [vmem:[%s49 + $0x8] sm:$0xff]
      %v3706 = vld [vmem:[%s49 + $0x10] sm:$0xff]
      %v3707 = vld [vmem:[%s49 + $0x18] sm:$0xff]
      %v3708 = vpack.c.bf16 %v3705, %v3704
      %v3709 = vpack.c.bf16 %v3707, %v3706
      %v3710 = vld [vmem:[%s51] sm:$0x1]
      %v3712 = vlaneseq
      %v3713 = vshrl.u32 %v3712, 7
      %v3714 = vsub.s32 0, %v3713
      %v3715 = vrot.slane %v3710, %v3714
      %v3718 = vsel %vm1936, %v3696, 0
      %v3721 = vsel %vm1936, %v3697, 0
      %v3724 = vsel %vm1936, %v3698, 0
      %v3727 = vsel %vm1936, %v3699, 0
      %v3730 = vsel %vm1936, %v3700, 0
      %v3733 = vsel %vm1936, %v3701, 0
      %v3736 = vsel %vm1936, %v3702, 0
      %v3739 = vsel %vm1936, %v3703, 0
      %3741 = vmatprep.subr.bf16.mxu0 0
      %3742 = vmatpush1.bf16.msra.mxu0 0
      %3743 = vmatprep.subr.bf16.mxu0 0
      %3744 = vmatpush1.bf16.msra.mxu0 0
      %3745 = vmatprep.subr.bf16.mxu0 0
      %3746 = vmatpush1.bf16.msra.mxu0 0
      %3747 = vmatprep.subr.bf16.mxu0 0
      %3748 = vmatpush1.bf16.msra.mxu0 0
      %3749 = vmatprep.subr.bf16.mxu0 0
      %3750 = vmatpush1.bf16.msra.mxu0 0
      %3751 = vmatprep.subr.bf16.mxu0 0
      %3752 = vmatpush1.bf16.msra.mxu0 0
      %3753 = vmatprep.subr.bf16.mxu0 0
      %3754 = vmatpush1.bf16.msra.mxu0 %v3709
      %3755 = vmatprep.subr.bf16.mxu0 0
      %3756 = vmatpush1.bf16.msra.mxu0 %v3708
      %3757 = vmatprep.subr.bf16.mxu0 0
      %3758 = vmatpush2.bf16.msra.mxu0 0
      %3759 = vmatprep.subr.bf16.mxu0 0
      %3760 = vmatpush2.bf16.msra.mxu0 0
      %3761 = vmatprep.subr.bf16.mxu0 0
      %3762 = vmatpush2.bf16.msra.mxu0 0
      %3763 = vmatprep.subr.bf16.mxu0 0
      %3764 = vmatpush2.bf16.msra.mxu0 0
      %3765 = vmatprep.subr.bf16.mxu0 0
      %3766 = vmatpush2.bf16.msra.mxu0 0
      %3767 = vmatprep.subr.bf16.mxu0 0
      %3768 = vmatpush2.bf16.msra.mxu0 0
      %3769 = vmatprep.subr.bf16.mxu0 0
      %3770 = vmatpush2.bf16.msra.mxu0 0
      %3771 = vmatprep.subr.bf16.mxu0 0
      %3772 = vmatpush2.bf16.msra.mxu0 0
      %3773 = vmatprep.mubr.bf16.mxu0 0
      %3774 = vmatmul.mubr.bf16.gmra.mxu0 %v3718
      %v3775 = vpop.f32.mrf.mxu0
      %v3776 = vadd.f32 %v3715, %v3775
      %v3777 = vpop.f32.mrf.mxu0
      %v3778 = vpop.f32.mrf.mxu0
      %v3779 = vadd.f32 %v3715, %v3778
      %v3780 = vpop.f32.mrf.mxu0
      %3781 = vmatprep.mubr.bf16.mxu0 0
      %3782 = vmatmul.mubr.bf16.gmra.mxu0 %v3721
      %v3783 = vpop.f32.mrf.mxu0
      %v3784 = vadd.f32 %v3715, %v3783
      %v3785 = vpop.f32.mrf.mxu0
      %v3786 = vpop.f32.mrf.mxu0
      %v3787 = vadd.f32 %v3715, %v3786
      %v3788 = vpop.f32.mrf.mxu0
      %3789 = vmatprep.mubr.bf16.mxu0 0
      %3790 = vmatmul.mubr.bf16.gmra.mxu0 %v3724
      %v3791 = vpop.f32.mrf.mxu0
      %v3792 = vadd.f32 %v3715, %v3791
      %v3793 = vpop.f32.mrf.mxu0
      %v3794 = vpop.f32.mrf.mxu0
      %v3795 = vadd.f32 %v3715, %v3794
      %v3796 = vpop.f32.mrf.mxu0
      %3797 = vmatprep.mubr.bf16.mxu0 0
      %3798 = vmatmul.mubr.bf16.gmra.mxu0 %v3727
      %v3799 = vpop.f32.mrf.mxu0
      %v3800 = vadd.f32 %v3715, %v3799
      %v3801 = vpop.f32.mrf.mxu0
      %v3802 = vpop.f32.mrf.mxu0
      %v3803 = vadd.f32 %v3715, %v3802
      %v3804 = vpop.f32.mrf.mxu0
      %3805 = vmatprep.mubr.bf16.mxu0 0
      %3806 = vmatmul.mubr.bf16.gmra.mxu0 %v3730
      %v3807 = vpop.f32.mrf.mxu0
      %v3808 = vadd.f32 %v3715, %v3807
      %v3809 = vpop.f32.mrf.mxu0
      %v3810 = vpop.f32.mrf.mxu0
      %v3811 = vadd.f32 %v3715, %v3810
      %v3812 = vpop.f32.mrf.mxu0
      %3813 = vmatprep.mubr.bf16.mxu0 0
      %3814 = vmatmul.mubr.bf16.gmra.mxu0 %v3733
      %v3815 = vpop.f32.mrf.mxu0
      %v3816 = vadd.f32 %v3715, %v3815
      %v3817 = vpop.f32.mrf.mxu0
      %v3818 = vpop.f32.mrf.mxu0
      %v3819 = vadd.f32 %v3715, %v3818
      %v3820 = vpop.f32.mrf.mxu0
      %3821 = vmatprep.mubr.bf16.mxu0 0
      %3822 = vmatmul.mubr.bf16.gmra.mxu0 %v3736
      %v3823 = vpop.f32.mrf.mxu0
      %v3824 = vadd.f32 %v3715, %v3823
      %v3825 = vpop.f32.mrf.mxu0
      %v3826 = vpop.f32.mrf.mxu0
      %v3827 = vadd.f32 %v3715, %v3826
      %v3828 = vpop.f32.mrf.mxu0
      %3829 = vmatprep.mubr.bf16.mxu0 0
      %3830 = vmatmul.mubr.bf16.gmra.mxu0 %v3739
      %v3831 = vpop.f32.mrf.mxu0
      %v3832 = vadd.f32 %v3715, %v3831
      %v3833 = vpop.f32.mrf.mxu0
      %v3834 = vpop.f32.mrf.mxu0
      %v3835 = vadd.f32 %v3715, %v3834
      %v3836 = vpop.f32.mrf.mxu0
      %3837 = vdwg.mxu0
      %v3838 = vtanh.pop %v3776
      %v3839 = vtanh.pop %v3779
      %v3840 = vtanh.pop %v3784
      %v3841 = vtanh.pop %v3787
      %v3842 = vtanh.pop %v3792
      %v3843 = vtanh.pop %v3795
      %v3844 = vtanh.pop %v3800
      %v3845 = vtanh.pop %v3803
      %v3846 = vtanh.pop %v3808
      %v3847 = vtanh.pop %v3811
      %v3848 = vtanh.pop %v3816
      %v3849 = vtanh.pop %v3819
      %v3850 = vtanh.pop %v3824
      %v3851 = vtanh.pop %v3827
      %v3852 = vtanh.pop %v3832
      %v3853 = vtanh.pop %v3835
      %v3854 = vpack.c.bf16 %v3839, %v3838
      %v3855 = vpack.c.bf16 %v3841, %v3840
      %v3856 = vpack.c.bf16 %v3843, %v3842
      %v3857 = vpack.c.bf16 %v3845, %v3844
      %v3858 = vpack.c.bf16 %v3847, %v3846
      %v3859 = vpack.c.bf16 %v3849, %v3848
      %v3860 = vpack.c.bf16 %v3851, %v3850
      %v3861 = vpack.c.bf16 %v3853, %v3852
      %v3862 = vld [vmem:[%s53] sm:$0xff]
      %v3863 = vld [vmem:[%s53 + $0x8] sm:$0xff]
      %v3864 = vld [vmem:[%s53 + $0x10] sm:$0xff]
      %v3865 = vld [vmem:[%s53 + $0x18] sm:$0xff]
      %v3866 = vpack.c.bf16 %v3863, %v3862
      %v3867 = vpack.c.bf16 %v3865, %v3864
      %v3868 = vld [vmem:[%s55] sm:$0x1]
      %v3870 = vlaneseq
      %v3871 = vshrl.u32 %v3870, 7
      %v3872 = vsub.s32 0, %v3871
      %v3873 = vrot.slane %v3868, %v3872
      %v3876 = vsel %vm1936, %v3854, 0
      %v3879 = vsel %vm1936, %v3855, 0
      %v3882 = vsel %vm1936, %v3856, 0
      %v3885 = vsel %vm1936, %v3857, 0
      %v3888 = vsel %vm1936, %v3858, 0
      %v3891 = vsel %vm1936, %v3859, 0
      %v3894 = vsel %vm1936, %v3860, 0
      %v3897 = vsel %vm1936, %v3861, 0
      %3899 = vmatprep.subr.bf16.mxu0 0
      %3900 = vmatpush1.bf16.msra.mxu0 0
      %3901 = vmatprep.subr.bf16.mxu0 0
      %3902 = vmatpush1.bf16.msra.mxu0 0
      %3903 = vmatprep.subr.bf16.mxu0 0
      %3904 = vmatpush1.bf16.msra.mxu0 0
      %3905 = vmatprep.subr.bf16.mxu0 0
      %3906 = vmatpush1.bf16.msra.mxu0 0
      %3907 = vmatprep.subr.bf16.mxu0 0
      %3908 = vmatpush1.bf16.msra.mxu0 0
      %3909 = vmatprep.subr.bf16.mxu0 0
      %3910 = vmatpush1.bf16.msra.mxu0 0
      %3911 = vmatprep.subr.bf16.mxu0 0
      %3912 = vmatpush1.bf16.msra.mxu0 %v3867
      %3913 = vmatprep.subr.bf16.mxu0 0
      %3914 = vmatpush1.bf16.msra.mxu0 %v3866
      %3915 = vmatprep.subr.bf16.mxu0 0
      %3916 = vmatpush2.bf16.msra.mxu0 0
      %3917 = vmatprep.subr.bf16.mxu0 0
      %3918 = vmatpush2.bf16.msra.mxu0 0
      %3919 = vmatprep.subr.bf16.mxu0 0
      %3920 = vmatpush2.bf16.msra.mxu0 0
      %3921 = vmatprep.subr.bf16.mxu0 0
      %3922 = vmatpush2.bf16.msra.mxu0 0
      %3923 = vmatprep.subr.bf16.mxu0 0
      %3924 = vmatpush2.bf16.msra.mxu0 0
      %3925 = vmatprep.subr.bf16.mxu0 0
      %3926 = vmatpush2.bf16.msra.mxu0 0
      %3927 = vmatprep.subr.bf16.mxu0 0
      %3928 = vmatpush2.bf16.msra.mxu0 0
      %3929 = vmatprep.subr.bf16.mxu0 0
      %3930 = vmatpush2.bf16.msra.mxu0 0
      %3931 = vmatprep.mubr.bf16.mxu0 0
      %3932 = vmatmul.mubr.bf16.gmra.mxu0 %v3876
      %v3933 = vpop.f32.mrf.mxu0
      %v3934 = vadd.f32 %v3873, %v3933
      %v3935 = vpop.f32.mrf.mxu0
      %v3936 = vpop.f32.mrf.mxu0
      %v3937 = vadd.f32 %v3873, %v3936
      %v3938 = vpop.f32.mrf.mxu0
      %3939 = vmatprep.mubr.bf16.mxu0 0
      %3940 = vmatmul.mubr.bf16.gmra.mxu0 %v3879
      %v3941 = vpop.f32.mrf.mxu0
      %v3942 = vadd.f32 %v3873, %v3941
      %v3943 = vpop.f32.mrf.mxu0
      %v3944 = vpop.f32.mrf.mxu0
      %v3945 = vadd.f32 %v3873, %v3944
      %v3946 = vpop.f32.mrf.mxu0
      %3947 = vmatprep.mubr.bf16.mxu0 0
      %3948 = vmatmul.mubr.bf16.gmra.mxu0 %v3882
      %v3949 = vpop.f32.mrf.mxu0
      %v3950 = vadd.f32 %v3873, %v3949
      %v3951 = vpop.f32.mrf.mxu0
      %v3952 = vpop.f32.mrf.mxu0
      %v3953 = vadd.f32 %v3873, %v3952
      %v3954 = vpop.f32.mrf.mxu0
      %3955 = vmatprep.mubr.bf16.mxu0 0
      %3956 = vmatmul.mubr.bf16.gmra.mxu0 %v3885
      %v3957 = vpop.f32.mrf.mxu0
      %v3958 = vadd.f32 %v3873, %v3957
      %v3959 = vpop.f32.mrf.mxu0
      %v3960 = vpop.f32.mrf.mxu0
      %v3961 = vadd.f32 %v3873, %v3960
      %v3962 = vpop.f32.mrf.mxu0
      %3963 = vmatprep.mubr.bf16.mxu0 0
      %3964 = vmatmul.mubr.bf16.gmra.mxu0 %v3888
      %v3965 = vpop.f32.mrf.mxu0
      %v3966 = vadd.f32 %v3873, %v3965
      %v3967 = vpop.f32.mrf.mxu0
      %v3968 = vpop.f32.mrf.mxu0
      %v3969 = vadd.f32 %v3873, %v3968
      %v3970 = vpop.f32.mrf.mxu0
      %3971 = vmatprep.mubr.bf16.mxu0 0
      %3972 = vmatmul.mubr.bf16.gmra.mxu0 %v3891
      %v3973 = vpop.f32.mrf.mxu0
      %v3974 = vadd.f32 %v3873, %v3973
      %v3975 = vpop.f32.mrf.mxu0
      %v3976 = vpop.f32.mrf.mxu0
      %v3977 = vadd.f32 %v3873, %v3976
      %v3978 = vpop.f32.mrf.mxu0
      %3979 = vmatprep.mubr.bf16.mxu0 0
      %3980 = vmatmul.mubr.bf16.gmra.mxu0 %v3894
      %v3981 = vpop.f32.mrf.mxu0
      %v3982 = vadd.f32 %v3873, %v3981
      %v3983 = vpop.f32.mrf.mxu0
      %v3984 = vpop.f32.mrf.mxu0
      %v3985 = vadd.f32 %v3873, %v3984
      %v3986 = vpop.f32.mrf.mxu0
      %3987 = vmatprep.mubr.bf16.mxu0 0
      %3988 = vmatmul.mubr.bf16.gmra.mxu0 %v3897
      %v3989 = vpop.f32.mrf.mxu0
      %v3990 = vadd.f32 %v3873, %v3989
      %v3991 = vpop.f32.mrf.mxu0
      %v3992 = vpop.f32.mrf.mxu0
      %v3993 = vadd.f32 %v3873, %v3992
      %v3994 = vpop.f32.mrf.mxu0
      %3995 = vdwg.mxu0
      %v3996 = vtanh.pop %v3934
      %v3997 = vtanh.pop %v3937
      %v3998 = vtanh.pop %v3942
      %v3999 = vtanh.pop %v3945
      %v4000 = vtanh.pop %v3950
      %v4001 = vtanh.pop %v3953
      %v4002 = vtanh.pop %v3958
      %v4003 = vtanh.pop %v3961
      %v4004 = vtanh.pop %v3966
      %v4005 = vtanh.pop %v3969
      %v4006 = vtanh.pop %v3974
      %v4007 = vtanh.pop %v3977
      %v4008 = vtanh.pop %v3982
      %v4009 = vtanh.pop %v3985
      %v4010 = vtanh.pop %v3990
      %v4011 = vtanh.pop %v3993
      %v4012 = vpack.c.bf16 %v3997, %v3996
      %v4013 = vpack.c.bf16 %v3999, %v3998
      %v4014 = vpack.c.bf16 %v4001, %v4000
      %v4015 = vpack.c.bf16 %v4003, %v4002
      %v4016 = vpack.c.bf16 %v4005, %v4004
      %v4017 = vpack.c.bf16 %v4007, %v4006
      %v4018 = vpack.c.bf16 %v4009, %v4008
      %v4019 = vpack.c.bf16 %v4011, %v4010
      %v4020 = vld [vmem:[%s57] sm:$0xff]
      %v4021 = vld [vmem:[%s57 + $0x8] sm:$0xff]
      %v4022 = vld [vmem:[%s57 + $0x10] sm:$0xff]
      %v4023 = vld [vmem:[%s57 + $0x18] sm:$0xff]
      %v4024 = vpack.c.bf16 %v4021, %v4020
      %v4025 = vpack.c.bf16 %v4023, %v4022
      %v4026 = vld [vmem:[%s59] sm:$0x1]
      %v4028 = vlaneseq
      %v4029 = vshrl.u32 %v4028, 7
      %v4030 = vsub.s32 0, %v4029
      %v4031 = vrot.slane %v4026, %v4030
      %v4034 = vsel %vm1936, %v4012, 0
      %v4037 = vsel %vm1936, %v4013, 0
      %v4040 = vsel %vm1936, %v4014, 0
      %v4043 = vsel %vm1936, %v4015, 0
      %v4046 = vsel %vm1936, %v4016, 0
      %v4049 = vsel %vm1936, %v4017, 0
      %v4052 = vsel %vm1936, %v4018, 0
      %v4055 = vsel %vm1936, %v4019, 0
      %4057 = vmatprep.subr.bf16.mxu0 0
      %4058 = vmatpush1.bf16.msra.mxu0 0
      %4059 = vmatprep.subr.bf16.mxu0 0
      %4060 = vmatpush1.bf16.msra.mxu0 0
      %4061 = vmatprep.subr.bf16.mxu0 0
      %4062 = vmatpush1.bf16.msra.mxu0 0
      %4063 = vmatprep.subr.bf16.mxu0 0
      %4064 = vmatpush1.bf16.msra.mxu0 0
      %4065 = vmatprep.subr.bf16.mxu0 0
      %4066 = vmatpush1.bf16.msra.mxu0 0
      %4067 = vmatprep.subr.bf16.mxu0 0
      %4068 = vmatpush1.bf16.msra.mxu0 0
      %4069 = vmatprep.subr.bf16.mxu0 0
      %4070 = vmatpush1.bf16.msra.mxu0 %v4025
      %4071 = vmatprep.subr.bf16.mxu0 0
      %4072 = vmatpush1.bf16.msra.mxu0 %v4024
      %4073 = vmatprep.subr.bf16.mxu0 0
      %4074 = vmatpush2.bf16.msra.mxu0 0
      %4075 = vmatprep.subr.bf16.mxu0 0
      %4076 = vmatpush2.bf16.msra.mxu0 0
      %4077 = vmatprep.subr.bf16.mxu0 0
      %4078 = vmatpush2.bf16.msra.mxu0 0
      %4079 = vmatprep.subr.bf16.mxu0 0
      %4080 = vmatpush2.bf16.msra.mxu0 0
      %4081 = vmatprep.subr.bf16.mxu0 0
      %4082 = vmatpush2.bf16.msra.mxu0 0
      %4083 = vmatprep.subr.bf16.mxu0 0
      %4084 = vmatpush2.bf16.msra.mxu0 0
      %4085 = vmatprep.subr.bf16.mxu0 0
      %4086 = vmatpush2.bf16.msra.mxu0 0
      %4087 = vmatprep.subr.bf16.mxu0 0
      %4088 = vmatpush2.bf16.msra.mxu0 0
      %4089 = vmatprep.mubr.bf16.mxu0 0
      %4090 = vmatmul.mubr.bf16.gmra.mxu0 %v4034
      %v4091 = vpop.f32.mrf.mxu0
      %v4092 = vadd.f32 %v4031, %v4091
      %v4093 = vpop.f32.mrf.mxu0
      %v4094 = vpop.f32.mrf.mxu0
      %v4095 = vadd.f32 %v4031, %v4094
      %v4096 = vpop.f32.mrf.mxu0
      %4097 = vmatprep.mubr.bf16.mxu0 0
      %4098 = vmatmul.mubr.bf16.gmra.mxu0 %v4037
      %v4099 = vpop.f32.mrf.mxu0
      %v4100 = vadd.f32 %v4031, %v4099
      %v4101 = vpop.f32.mrf.mxu0
      %v4102 = vpop.f32.mrf.mxu0
      %v4103 = vadd.f32 %v4031, %v4102
      %v4104 = vpop.f32.mrf.mxu0
      %4105 = vmatprep.mubr.bf16.mxu0 0
      %4106 = vmatmul.mubr.bf16.gmra.mxu0 %v4040
      %v4107 = vpop.f32.mrf.mxu0
      %v4108 = vadd.f32 %v4031, %v4107
      %v4109 = vpop.f32.mrf.mxu0
      %v4110 = vpop.f32.mrf.mxu0
      %v4111 = vadd.f32 %v4031, %v4110
      %v4112 = vpop.f32.mrf.mxu0
      %4113 = vmatprep.mubr.bf16.mxu0 0
      %4114 = vmatmul.mubr.bf16.gmra.mxu0 %v4043
      %v4115 = vpop.f32.mrf.mxu0
      %v4116 = vadd.f32 %v4031, %v4115
      %v4117 = vpop.f32.mrf.mxu0
      %v4118 = vpop.f32.mrf.mxu0
      %v4119 = vadd.f32 %v4031, %v4118
      %v4120 = vpop.f32.mrf.mxu0
      %4121 = vmatprep.mubr.bf16.mxu0 0
      %4122 = vmatmul.mubr.bf16.gmra.mxu0 %v4046
      %v4123 = vpop.f32.mrf.mxu0
      %v4124 = vadd.f32 %v4031, %v4123
      %v4125 = vpop.f32.mrf.mxu0
      %v4126 = vpop.f32.mrf.mxu0
      %v4127 = vadd.f32 %v4031, %v4126
      %v4128 = vpop.f32.mrf.mxu0
      %4129 = vmatprep.mubr.bf16.mxu0 0
      %4130 = vmatmul.mubr.bf16.gmra.mxu0 %v4049
      %v4131 = vpop.f32.mrf.mxu0
      %v4132 = vadd.f32 %v4031, %v4131
      %v4133 = vpop.f32.mrf.mxu0
      %v4134 = vpop.f32.mrf.mxu0
      %v4135 = vadd.f32 %v4031, %v4134
      %v4136 = vpop.f32.mrf.mxu0
      %4137 = vmatprep.mubr.bf16.mxu0 0
      %4138 = vmatmul.mubr.bf16.gmra.mxu0 %v4052
      %v4139 = vpop.f32.mrf.mxu0
      %v4140 = vadd.f32 %v4031, %v4139
      %v4141 = vpop.f32.mrf.mxu0
      %v4142 = vpop.f32.mrf.mxu0
      %v4143 = vadd.f32 %v4031, %v4142
      %v4144 = vpop.f32.mrf.mxu0
      %4145 = vmatprep.mubr.bf16.mxu0 0
      %4146 = vmatmul.mubr.bf16.gmra.mxu0 %v4055
      %v4147 = vpop.f32.mrf.mxu0
      %v4148 = vadd.f32 %v4031, %v4147
      %v4149 = vpop.f32.mrf.mxu0
      %v4150 = vpop.f32.mrf.mxu0
      %v4151 = vadd.f32 %v4031, %v4150
      %v4152 = vpop.f32.mrf.mxu0
      %4153 = vdwg.mxu0
      %v4154 = vtanh.pop %v4092
      %v4155 = vtanh.pop %v4095
      %v4156 = vtanh.pop %v4100
      %v4157 = vtanh.pop %v4103
      %v4158 = vtanh.pop %v4108
      %v4159 = vtanh.pop %v4111
      %v4160 = vtanh.pop %v4116
      %v4161 = vtanh.pop %v4119
      %v4162 = vtanh.pop %v4124
      %v4163 = vtanh.pop %v4127
      %v4164 = vtanh.pop %v4132
      %v4165 = vtanh.pop %v4135
      %v4166 = vtanh.pop %v4140
      %v4167 = vtanh.pop %v4143
      %v4168 = vtanh.pop %v4148
      %v4169 = vtanh.pop %v4151
      %v4170 = vpack.c.bf16 %v4155, %v4154
      %v4171 = vpack.c.bf16 %v4157, %v4156
      %v4172 = vpack.c.bf16 %v4159, %v4158
      %v4173 = vpack.c.bf16 %v4161, %v4160
      %v4174 = vpack.c.bf16 %v4163, %v4162
      %v4175 = vpack.c.bf16 %v4165, %v4164
      %v4176 = vpack.c.bf16 %v4167, %v4166
      %v4177 = vpack.c.bf16 %v4169, %v4168
      %v4178 = vld [vmem:[%s61] sm:$0xff]
      %v4179 = vld [vmem:[%s61 + $0x8] sm:$0xff]
      %v4180 = vld [vmem:[%s61 + $0x10] sm:$0xff]
      %v4181 = vld [vmem:[%s61 + $0x18] sm:$0xff]
      %v4182 = vld [vmem:[%s61 + $0x20] sm:$0xff]
      %v4183 = vld [vmem:[%s61 + $0x28] sm:$0xff]
      %v4184 = vld [vmem:[%s61 + $0x30] sm:$0xff]
      %v4185 = vld [vmem:[%s61 + $0x38] sm:$0xff]
      %v4186 = vld [vmem:[%s61 + $0x40] sm:$0xff]
      %v4187 = vld [vmem:[%s61 + $0x48] sm:$0xff]
      %v4188 = vld [vmem:[%s61 + $0x50] sm:$0xff]
      %v4189 = vld [vmem:[%s61 + $0x58] sm:$0xff]
      %v4190 = vld [vmem:[%s61 + $0x60] sm:$0xff]
      %v4191 = vld [vmem:[%s61 + $0x68] sm:$0xff]
      %v4192 = vld [vmem:[%s61 + $0x70] sm:$0xff]
      %v4193 = vld [vmem:[%s61 + $0x78] sm:$0xff]
      %v4194 = vld [vmem:[%s61 + $0x80] sm:$0xff]
      %v4195 = vld [vmem:[%s61 + $0x88] sm:$0xff]
      %v4196 = vld [vmem:[%s61 + $0x90] sm:$0xff]
      %v4197 = vld [vmem:[%s61 + $0x98] sm:$0xff]
      %v4198 = vld [vmem:[%s61 + $0xa0] sm:$0xff]
      %v4199 = vld [vmem:[%s61 + $0xa8] sm:$0xff]
      %v4200 = vld [vmem:[%s61 + $0xb0] sm:$0xff]
      %v4201 = vld [vmem:[%s61 + $0xb8] sm:$0xff]
      %v4202 = vld [vmem:[%s61 + $0xc0] sm:$0xff]
      %v4203 = vld [vmem:[%s61 + $0xc8] sm:$0xff]
      %v4204 = vld [vmem:[%s61 + $0xd0] sm:$0xff]
      %v4205 = vld [vmem:[%s61 + $0xd8] sm:$0xff]
      %v4206 = vpack.c.bf16 %v4185, %v4178
      %v4207 = vpack.c.bf16 %v4186, %v4179
      %v4208 = vpack.c.bf16 %v4187, %v4180
      %v4209 = vpack.c.bf16 %v4188, %v4181
      %v4210 = vpack.c.bf16 %v4189, %v4182
      %v4211 = vpack.c.bf16 %v4190, %v4183
      %v4212 = vpack.c.bf16 %v4191, %v4184
      %v4213 = vpack.c.bf16 %v4199, %v4192
      %v4214 = vpack.c.bf16 %v4200, %v4193
      %v4215 = vpack.c.bf16 %v4201, %v4194
      %v4216 = vpack.c.bf16 %v4202, %v4195
      %v4217 = vpack.c.bf16 %v4203, %v4196
      %v4218 = vpack.c.bf16 %v4204, %v4197
      %v4219 = vpack.c.bf16 %v4205, %v4198
      %v4220 = vld [vmem:[%s63] sm:$0x7f]
      %v4222 = vlaneseq
      %v4223 = vshrl.u32 %v4222, 7
      %v4224 = vsub.s32 0, %v4223
      %v4225 = vrot.slane %v4220, %v4224
      %v4226 = vlaneseq
      %v4227 = vshrl.u32 %v4226, 7
      %v4228 = vsub.s32 1, %v4227
      %v4229 = vrot.slane %v4220, %v4228
      %v4230 = vlaneseq
      %v4231 = vshrl.u32 %v4230, 7
      %v4232 = vsub.s32 2, %v4231
      %v4233 = vrot.slane %v4220, %v4232
      %v4234 = vlaneseq
      %v4235 = vshrl.u32 %v4234, 7
      %v4236 = vsub.s32 3, %v4235
      %v4237 = vrot.slane %v4220, %v4236
      %v4238 = vlaneseq
      %v4239 = vshrl.u32 %v4238, 7
      %v4240 = vsub.s32 4, %v4239
      %v4241 = vrot.slane %v4220, %v4240
      %v4242 = vlaneseq
      %v4243 = vshrl.u32 %v4242, 7
      %v4244 = vsub.s32 5, %v4243
      %v4245 = vrot.slane %v4220, %v4244
      %v4246 = vlaneseq
      %v4247 = vshrl.u32 %v4246, 7
      %v4248 = vsub.s32 6, %v4247
      %v4249 = vrot.slane %v4220, %v4248
      %v4258 = vsel %vm1936, %v4170, 0
      %v4261 = vsel %vm1936, %v4171, 0
      %v4264 = vsel %vm1936, %v4172, 0
      %v4267 = vsel %vm1936, %v4173, 0
      %v4270 = vsel %vm1936, %v4174, 0
      %v4273 = vsel %vm1936, %v4175, 0
      %v4276 = vsel %vm1936, %v4176, 0
      %v4279 = vsel %vm1936, %v4177, 0
      %4281 = vmatprep.subr.bf16.mxu0 0
      %4282 = vmatpush1.bf16.msra.mxu0 0
      %4283 = vmatprep.subr.bf16.mxu0 0
      %4284 = vmatpush1.bf16.msra.mxu0 0
      %4285 = vmatprep.subr.bf16.mxu0 0
      %4286 = vmatpush1.bf16.msra.mxu0 0
      %4287 = vmatprep.subr.bf16.mxu0 0
      %4288 = vmatpush1.bf16.msra.mxu0 0
      %4289 = vmatprep.subr.bf16.mxu0 0
      %4290 = vmatpush1.bf16.msra.mxu0 0
      %4291 = vmatprep.subr.bf16.mxu0 0
      %4292 = vmatpush1.bf16.msra.mxu0 0
      %4293 = vmatprep.subr.bf16.mxu0 %v4214
      %4294 = vmatpush1.bf16.msra.mxu0 %v4213
      %4295 = vmatprep.subr.bf16.mxu0 %v4207
      %4296 = vmatpush1.bf16.msra.mxu0 %v4206
      %4297 = vmatprep.subr.bf16.mxu0 0
      %4298 = vmatpush2.bf16.msra.mxu0 0
      %4299 = vmatprep.subr.bf16.mxu0 0
      %4300 = vmatpush2.bf16.msra.mxu0 0
      %4301 = vmatprep.subr.bf16.mxu0 0
      %4302 = vmatpush2.bf16.msra.mxu0 0
      %4303 = vmatprep.subr.bf16.mxu0 0
      %4304 = vmatpush2.bf16.msra.mxu0 0
      %4305 = vmatprep.subr.bf16.mxu0 0
      %4306 = vmatpush2.bf16.msra.mxu0 0
      %4307 = vmatprep.subr.bf16.mxu0 0
      %4308 = vmatpush2.bf16.msra.mxu0 0
      %4309 = vmatprep.subr.bf16.mxu0 0
      %4310 = vmatpush2.bf16.msra.mxu0 0
      %4311 = vmatprep.subr.bf16.mxu0 0
      %4312 = vmatpush2.bf16.msra.mxu0 0
      %4313 = vmatprep.mubr.bf16.mxu0 0
      %4314 = vmatmul.mubr.bf16.gmra.mxu0 %v4258
      %v4315 = vpop.f32.mrf.mxu0
      %v4316 = vadd.f32 %v4225, %v4315
      %v4317 = vpop.f32.mrf.mxu0
      %v4318 = vadd.f32 %v4229, %v4317
      %v4319 = vpop.f32.mrf.mxu0
      %v4320 = vadd.f32 %v4225, %v4319
      %v4321 = vpop.f32.mrf.mxu0
      %v4322 = vadd.f32 %v4229, %v4321
      %4323 = vmatprep.mubr.bf16.mxu0 0
      %4324 = vmatmul.mubr.bf16.gmra.mxu0 %v4261
      %v4325 = vpop.f32.mrf.mxu0
      %v4326 = vadd.f32 %v4225, %v4325
      %v4327 = vpop.f32.mrf.mxu0
      %v4328 = vadd.f32 %v4229, %v4327
      %v4329 = vpop.f32.mrf.mxu0
      %v4330 = vadd.f32 %v4225, %v4329
      %v4331 = vpop.f32.mrf.mxu0
      %v4332 = vadd.f32 %v4229, %v4331
      %4333 = vmatprep.mubr.bf16.mxu0 0
      %4334 = vmatmul.mubr.bf16.gmra.mxu0 %v4264
      %v4335 = vpop.f32.mrf.mxu0
      %v4336 = vadd.f32 %v4225, %v4335
      %v4337 = vpop.f32.mrf.mxu0
      %v4338 = vadd.f32 %v4229, %v4337
      %v4339 = vpop.f32.mrf.mxu0
      %v4340 = vadd.f32 %v4225, %v4339
      %v4341 = vpop.f32.mrf.mxu0
      %v4342 = vadd.f32 %v4229, %v4341
      %4343 = vmatprep.mubr.bf16.mxu0 0
      %4344 = vmatmul.mubr.bf16.gmra.mxu0 %v4267
      %v4345 = vpop.f32.mrf.mxu0
      %v4346 = vadd.f32 %v4225, %v4345
      %v4347 = vpop.f32.mrf.mxu0
      %v4348 = vadd.f32 %v4229, %v4347
      %v4349 = vpop.f32.mrf.mxu0
      %v4350 = vadd.f32 %v4225, %v4349
      %v4351 = vpop.f32.mrf.mxu0
      %v4352 = vadd.f32 %v4229, %v4351
      %4353 = vmatprep.mubr.bf16.mxu0 0
      %4354 = vmatmul.mubr.bf16.gmra.mxu0 %v4270
      %v4355 = vpop.f32.mrf.mxu0
      %v4356 = vadd.f32 %v4225, %v4355
      %v4357 = vpop.f32.mrf.mxu0
      %v4358 = vadd.f32 %v4229, %v4357
      %v4359 = vpop.f32.mrf.mxu0
      %v4360 = vadd.f32 %v4225, %v4359
      %v4361 = vpop.f32.mrf.mxu0
      %v4362 = vadd.f32 %v4229, %v4361
      %4363 = vmatprep.mubr.bf16.mxu0 0
      %4364 = vmatmul.mubr.bf16.gmra.mxu0 %v4273
      %v4365 = vpop.f32.mrf.mxu0
      %v4366 = vadd.f32 %v4225, %v4365
      %v4367 = vpop.f32.mrf.mxu0
      %v4368 = vadd.f32 %v4229, %v4367
      %v4369 = vpop.f32.mrf.mxu0
      %v4370 = vadd.f32 %v4225, %v4369
      %v4371 = vpop.f32.mrf.mxu0
      %v4372 = vadd.f32 %v4229, %v4371
      %4373 = vmatprep.mubr.bf16.mxu0 0
      %4374 = vmatmul.mubr.bf16.gmra.mxu0 %v4276
      %v4375 = vpop.f32.mrf.mxu0
      %v4376 = vadd.f32 %v4225, %v4375
      %v4377 = vpop.f32.mrf.mxu0
      %v4378 = vadd.f32 %v4229, %v4377
      %v4379 = vpop.f32.mrf.mxu0
      %v4380 = vadd.f32 %v4225, %v4379
      %v4381 = vpop.f32.mrf.mxu0
      %v4382 = vadd.f32 %v4229, %v4381
      %4383 = vmatprep.mubr.bf16.mxu0 0
      %4384 = vmatmul.mubr.bf16.gmra.mxu0 %v4279
      %v4385 = vpop.f32.mrf.mxu0
      %v4386 = vadd.f32 %v4225, %v4385
      %v4387 = vpop.f32.mrf.mxu0
      %v4388 = vadd.f32 %v4229, %v4387
      %v4389 = vpop.f32.mrf.mxu0
      %v4390 = vadd.f32 %v4225, %v4389
      %v4391 = vpop.f32.mrf.mxu0
      %v4392 = vadd.f32 %v4229, %v4391
      %4393 = vdwg.mxu0
      %4394 = vmatprep.subr.bf16.mxu0 0
      %4395 = vmatpush1.bf16.msra.mxu0 0
      %4396 = vmatprep.subr.bf16.mxu0 0
      %4397 = vmatpush1.bf16.msra.mxu0 0
      %4398 = vmatprep.subr.bf16.mxu0 0
      %4399 = vmatpush1.bf16.msra.mxu0 0
      %4400 = vmatprep.subr.bf16.mxu0 0
      %4401 = vmatpush1.bf16.msra.mxu0 0
      %4402 = vmatprep.subr.bf16.mxu0 0
      %4403 = vmatpush1.bf16.msra.mxu0 0
      %4404 = vmatprep.subr.bf16.mxu0 0
      %4405 = vmatpush1.bf16.msra.mxu0 0
      %4406 = vmatprep.subr.bf16.mxu0 %v4216
      %4407 = vmatpush1.bf16.msra.mxu0 %v4215
      %4408 = vmatprep.subr.bf16.mxu0 %v4209
      %4409 = vmatpush1.bf16.msra.mxu0 %v4208
      %4410 = vmatprep.subr.bf16.mxu0 0
      %4411 = vmatpush2.bf16.msra.mxu0 0
      %4412 = vmatprep.subr.bf16.mxu0 0
      %4413 = vmatpush2.bf16.msra.mxu0 0
      %4414 = vmatprep.subr.bf16.mxu0 0
      %4415 = vmatpush2.bf16.msra.mxu0 0
      %4416 = vmatprep.subr.bf16.mxu0 0
      %4417 = vmatpush2.bf16.msra.mxu0 0
      %4418 = vmatprep.subr.bf16.mxu0 0
      %4419 = vmatpush2.bf16.msra.mxu0 0
      %4420 = vmatprep.subr.bf16.mxu0 0
      %4421 = vmatpush2.bf16.msra.mxu0 0
      %4422 = vmatprep.subr.bf16.mxu0 0
      %4423 = vmatpush2.bf16.msra.mxu0 0
      %4424 = vmatprep.subr.bf16.mxu0 0
      %4425 = vmatpush2.bf16.msra.mxu0 0
      %4426 = vmatprep.mubr.bf16.mxu0 0
      %4427 = vmatmul.mubr.bf16.gmra.mxu0 %v4258
      %v4428 = vpop.f32.mrf.mxu0
      %v4429 = vadd.f32 %v4233, %v4428
      %v4430 = vpop.f32.mrf.mxu0
      %v4431 = vadd.f32 %v4237, %v4430
      %v4432 = vpop.f32.mrf.mxu0
      %v4433 = vadd.f32 %v4233, %v4432
      %v4434 = vpop.f32.mrf.mxu0
      %v4435 = vadd.f32 %v4237, %v4434
      %4436 = vmatprep.mubr.bf16.mxu0 0
      %4437 = vmatmul.mubr.bf16.gmra.mxu0 %v4261
      %v4438 = vpop.f32.mrf.mxu0
      %v4439 = vadd.f32 %v4233, %v4438
      %v4440 = vpop.f32.mrf.mxu0
      %v4441 = vadd.f32 %v4237, %v4440
      %v4442 = vpop.f32.mrf.mxu0
      %v4443 = vadd.f32 %v4233, %v4442
      %v4444 = vpop.f32.mrf.mxu0
      %v4445 = vadd.f32 %v4237, %v4444
      %4446 = vmatprep.mubr.bf16.mxu0 0
      %4447 = vmatmul.mubr.bf16.gmra.mxu0 %v4264
      %v4448 = vpop.f32.mrf.mxu0
      %v4449 = vadd.f32 %v4233, %v4448
      %v4450 = vpop.f32.mrf.mxu0
      %v4451 = vadd.f32 %v4237, %v4450
      %v4452 = vpop.f32.mrf.mxu0
      %v4453 = vadd.f32 %v4233, %v4452
      %v4454 = vpop.f32.mrf.mxu0
      %v4455 = vadd.f32 %v4237, %v4454
      %4456 = vmatprep.mubr.bf16.mxu0 0
      %4457 = vmatmul.mubr.bf16.gmra.mxu0 %v4267
      %v4458 = vpop.f32.mrf.mxu0
      %v4459 = vadd.f32 %v4233, %v4458
      %v4460 = vpop.f32.mrf.mxu0
      %v4461 = vadd.f32 %v4237, %v4460
      %v4462 = vpop.f32.mrf.mxu0
      %v4463 = vadd.f32 %v4233, %v4462
      %v4464 = vpop.f32.mrf.mxu0
      %v4465 = vadd.f32 %v4237, %v4464
      %4466 = vmatprep.mubr.bf16.mxu0 0
      %4467 = vmatmul.mubr.bf16.gmra.mxu0 %v4270
      %v4468 = vpop.f32.mrf.mxu0
      %v4469 = vadd.f32 %v4233, %v4468
      %v4470 = vpop.f32.mrf.mxu0
      %v4471 = vadd.f32 %v4237, %v4470
      %v4472 = vpop.f32.mrf.mxu0
      %v4473 = vadd.f32 %v4233, %v4472
      %v4474 = vpop.f32.mrf.mxu0
      %v4475 = vadd.f32 %v4237, %v4474
      %4476 = vmatprep.mubr.bf16.mxu0 0
      %4477 = vmatmul.mubr.bf16.gmra.mxu0 %v4273
      %v4478 = vpop.f32.mrf.mxu0
      %v4479 = vadd.f32 %v4233, %v4478
      %v4480 = vpop.f32.mrf.mxu0
      %v4481 = vadd.f32 %v4237, %v4480
      %v4482 = vpop.f32.mrf.mxu0
      %v4483 = vadd.f32 %v4233, %v4482
      %v4484 = vpop.f32.mrf.mxu0
      %v4485 = vadd.f32 %v4237, %v4484
      %4486 = vmatprep.mubr.bf16.mxu0 0
      %4487 = vmatmul.mubr.bf16.gmra.mxu0 %v4276
      %v4488 = vpop.f32.mrf.mxu0
      %v4489 = vadd.f32 %v4233, %v4488
      %v4490 = vpop.f32.mrf.mxu0
      %v4491 = vadd.f32 %v4237, %v4490
      %v4492 = vpop.f32.mrf.mxu0
      %v4493 = vadd.f32 %v4233, %v4492
      %v4494 = vpop.f32.mrf.mxu0
      %v4495 = vadd.f32 %v4237, %v4494
      %4496 = vmatprep.mubr.bf16.mxu0 0
      %4497 = vmatmul.mubr.bf16.gmra.mxu0 %v4279
      %v4498 = vpop.f32.mrf.mxu0
      %v4499 = vadd.f32 %v4233, %v4498
      %v4500 = vpop.f32.mrf.mxu0
      %v4501 = vadd.f32 %v4237, %v4500
      %v4502 = vpop.f32.mrf.mxu0
      %v4503 = vadd.f32 %v4233, %v4502
      %v4504 = vpop.f32.mrf.mxu0
      %v4505 = vadd.f32 %v4237, %v4504
      %4506 = vdwg.mxu0
      %4507 = vmatprep.subr.bf16.mxu0 0
      %4508 = vmatpush1.bf16.msra.mxu0 0
      %4509 = vmatprep.subr.bf16.mxu0 0
      %4510 = vmatpush1.bf16.msra.mxu0 0
      %4511 = vmatprep.subr.bf16.mxu0 0
      %4512 = vmatpush1.bf16.msra.mxu0 0
      %4513 = vmatprep.subr.bf16.mxu0 0
      %4514 = vmatpush1.bf16.msra.mxu0 0
      %4515 = vmatprep.subr.bf16.mxu0 0
      %4516 = vmatpush1.bf16.msra.mxu0 0
      %4517 = vmatprep.subr.bf16.mxu0 0
      %4518 = vmatpush1.bf16.msra.mxu0 0
      %4519 = vmatprep.subr.bf16.mxu0 %v4218
      %4520 = vmatpush1.bf16.msra.mxu0 %v4217
      %4521 = vmatprep.subr.bf16.mxu0 %v4211
      %4522 = vmatpush1.bf16.msra.mxu0 %v4210
      %4523 = vmatprep.subr.bf16.mxu0 0
      %4524 = vmatpush2.bf16.msra.mxu0 0
      %4525 = vmatprep.subr.bf16.mxu0 0
      %4526 = vmatpush2.bf16.msra.mxu0 0
      %4527 = vmatprep.subr.bf16.mxu0 0
      %4528 = vmatpush2.bf16.msra.mxu0 0
      %4529 = vmatprep.subr.bf16.mxu0 0
      %4530 = vmatpush2.bf16.msra.mxu0 0
      %4531 = vmatprep.subr.bf16.mxu0 0
      %4532 = vmatpush2.bf16.msra.mxu0 0
      %4533 = vmatprep.subr.bf16.mxu0 0
      %4534 = vmatpush2.bf16.msra.mxu0 0
      %4535 = vmatprep.subr.bf16.mxu0 0
      %4536 = vmatpush2.bf16.msra.mxu0 0
      %4537 = vmatprep.subr.bf16.mxu0 0
      %4538 = vmatpush2.bf16.msra.mxu0 0
      %4539 = vmatprep.mubr.bf16.mxu0 0
      %4540 = vmatmul.mubr.bf16.gmra.mxu0 %v4258
      %v4541 = vpop.f32.mrf.mxu0
      %v4542 = vadd.f32 %v4241, %v4541
      %v4543 = vpop.f32.mrf.mxu0
      %v4544 = vadd.f32 %v4245, %v4543
      %v4545 = vpop.f32.mrf.mxu0
      %v4546 = vadd.f32 %v4241, %v4545
      %v4547 = vpop.f32.mrf.mxu0
      %v4548 = vadd.f32 %v4245, %v4547
      %4549 = vmatprep.mubr.bf16.mxu0 0
      %4550 = vmatmul.mubr.bf16.gmra.mxu0 %v4261
      %v4551 = vpop.f32.mrf.mxu0
      %v4552 = vadd.f32 %v4241, %v4551
      %v4553 = vpop.f32.mrf.mxu0
      %v4554 = vadd.f32 %v4245, %v4553
      %v4555 = vpop.f32.mrf.mxu0
      %v4556 = vadd.f32 %v4241, %v4555
      %v4557 = vpop.f32.mrf.mxu0
      %v4558 = vadd.f32 %v4245, %v4557
      %4559 = vmatprep.mubr.bf16.mxu0 0
      %4560 = vmatmul.mubr.bf16.gmra.mxu0 %v4264
      %v4561 = vpop.f32.mrf.mxu0
      %v4562 = vadd.f32 %v4241, %v4561
      %v4563 = vpop.f32.mrf.mxu0
      %v4564 = vadd.f32 %v4245, %v4563
      %v4565 = vpop.f32.mrf.mxu0
      %v4566 = vadd.f32 %v4241, %v4565
      %v4567 = vpop.f32.mrf.mxu0
      %v4568 = vadd.f32 %v4245, %v4567
      %4569 = vmatprep.mubr.bf16.mxu0 0
      %4570 = vmatmul.mubr.bf16.gmra.mxu0 %v4267
      %v4571 = vpop.f32.mrf.mxu0
      %v4572 = vadd.f32 %v4241, %v4571
      %v4573 = vpop.f32.mrf.mxu0
      %v4574 = vadd.f32 %v4245, %v4573
      %v4575 = vpop.f32.mrf.mxu0
      %v4576 = vadd.f32 %v4241, %v4575
      %v4577 = vpop.f32.mrf.mxu0
      %v4578 = vadd.f32 %v4245, %v4577
      %4579 = vmatprep.mubr.bf16.mxu0 0
      %4580 = vmatmul.mubr.bf16.gmra.mxu0 %v4270
      %v4581 = vpop.f32.mrf.mxu0
      %v4582 = vadd.f32 %v4241, %v4581
      %v4583 = vpop.f32.mrf.mxu0
      %v4584 = vadd.f32 %v4245, %v4583
      %v4585 = vpop.f32.mrf.mxu0
      %v4586 = vadd.f32 %v4241, %v4585
      %v4587 = vpop.f32.mrf.mxu0
      %v4588 = vadd.f32 %v4245, %v4587
      %4589 = vmatprep.mubr.bf16.mxu0 0
      %4590 = vmatmul.mubr.bf16.gmra.mxu0 %v4273
      %v4591 = vpop.f32.mrf.mxu0
      %v4592 = vadd.f32 %v4241, %v4591
      %v4593 = vpop.f32.mrf.mxu0
      %v4594 = vadd.f32 %v4245, %v4593
      %v4595 = vpop.f32.mrf.mxu0
      %v4596 = vadd.f32 %v4241, %v4595
      %v4597 = vpop.f32.mrf.mxu0
      %v4598 = vadd.f32 %v4245, %v4597
      %4599 = vmatprep.mubr.bf16.mxu0 0
      %4600 = vmatmul.mubr.bf16.gmra.mxu0 %v4276
      %v4601 = vpop.f32.mrf.mxu0
      %v4602 = vadd.f32 %v4241, %v4601
      %v4603 = vpop.f32.mrf.mxu0
      %v4604 = vadd.f32 %v4245, %v4603
      %v4605 = vpop.f32.mrf.mxu0
      %v4606 = vadd.f32 %v4241, %v4605
      %v4607 = vpop.f32.mrf.mxu0
      %v4608 = vadd.f32 %v4245, %v4607
      %4609 = vmatprep.mubr.bf16.mxu0 0
      %4610 = vmatmul.mubr.bf16.gmra.mxu0 %v4279
      %v4611 = vpop.f32.mrf.mxu0
      %v4612 = vadd.f32 %v4241, %v4611
      %v4613 = vpop.f32.mrf.mxu0
      %v4614 = vadd.f32 %v4245, %v4613
      %v4615 = vpop.f32.mrf.mxu0
      %v4616 = vadd.f32 %v4241, %v4615
      %v4617 = vpop.f32.mrf.mxu0
      %v4618 = vadd.f32 %v4245, %v4617
      %4619 = vdwg.mxu0
      %4620 = vmatprep.subr.bf16.mxu0 0
      %4621 = vmatpush1.bf16.msra.mxu0 0
      %4622 = vmatprep.subr.bf16.mxu0 0
      %4623 = vmatpush1.bf16.msra.mxu0 0
      %4624 = vmatprep.subr.bf16.mxu0 0
      %4625 = vmatpush1.bf16.msra.mxu0 0
      %4626 = vmatprep.subr.bf16.mxu0 0
      %4627 = vmatpush1.bf16.msra.mxu0 0
      %4628 = vmatprep.subr.bf16.mxu0 0
      %4629 = vmatpush1.bf16.msra.mxu0 0
      %4630 = vmatprep.subr.bf16.mxu0 0
      %4631 = vmatpush1.bf16.msra.mxu0 0
      %4632 = vmatprep.subr.bf16.mxu0 0
      %4633 = vmatpush1.bf16.msra.mxu0 %v4219
      %4634 = vmatprep.subr.bf16.mxu0 0
      %4635 = vmatpush1.bf16.msra.mxu0 %v4212
      %4636 = vmatprep.subr.bf16.mxu0 0
      %4637 = vmatpush2.bf16.msra.mxu0 0
      %4638 = vmatprep.subr.bf16.mxu0 0
      %4639 = vmatpush2.bf16.msra.mxu0 0
      %4640 = vmatprep.subr.bf16.mxu0 0
      %4641 = vmatpush2.bf16.msra.mxu0 0
      %4642 = vmatprep.subr.bf16.mxu0 0
      %4643 = vmatpush2.bf16.msra.mxu0 0
      %4644 = vmatprep.subr.bf16.mxu0 0
      %4645 = vmatpush2.bf16.msra.mxu0 0
      %4646 = vmatprep.subr.bf16.mxu0 0
      %4647 = vmatpush2.bf16.msra.mxu0 0
      %4648 = vmatprep.subr.bf16.mxu0 0
      %4649 = vmatpush2.bf16.msra.mxu0 0
      %4650 = vmatprep.subr.bf16.mxu0 0
      %4651 = vmatpush2.bf16.msra.mxu0 0
      %4652 = vmatprep.mubr.bf16.mxu0 0
      %4653 = vmatmul.mubr.bf16.gmra.mxu0 %v4258
      %v4654 = vpop.f32.mrf.mxu0
      %v4655 = vadd.f32 %v4249, %v4654
      %v4656 = vpop.f32.mrf.mxu0
      %v4657 = vpop.f32.mrf.mxu0
      %v4658 = vadd.f32 %v4249, %v4657
      %v4659 = vpop.f32.mrf.mxu0
      %4660 = vmatprep.mubr.bf16.mxu0 0
      %4661 = vmatmul.mubr.bf16.gmra.mxu0 %v4261
      %v4662 = vpop.f32.mrf.mxu0
      %v4663 = vadd.f32 %v4249, %v4662
      %v4664 = vpop.f32.mrf.mxu0
      %v4665 = vpop.f32.mrf.mxu0
      %v4666 = vadd.f32 %v4249, %v4665
      %v4667 = vpop.f32.mrf.mxu0
      %4668 = vmatprep.mubr.bf16.mxu0 0
      %4669 = vmatmul.mubr.bf16.gmra.mxu0 %v4264
      %v4670 = vpop.f32.mrf.mxu0
      %v4671 = vadd.f32 %v4249, %v4670
      %v4672 = vpop.f32.mrf.mxu0
      %v4673 = vpop.f32.mrf.mxu0
      %v4674 = vadd.f32 %v4249, %v4673
      %v4675 = vpop.f32.mrf.mxu0
      %4676 = vmatprep.mubr.bf16.mxu0 0
      %4677 = vmatmul.mubr.bf16.gmra.mxu0 %v4267
      %v4678 = vpop.f32.mrf.mxu0
      %v4679 = vadd.f32 %v4249, %v4678
      %v4680 = vpop.f32.mrf.mxu0
      %v4681 = vpop.f32.mrf.mxu0
      %v4682 = vadd.f32 %v4249, %v4681
      %v4683 = vpop.f32.mrf.mxu0
      %4684 = vmatprep.mubr.bf16.mxu0 0
      %4685 = vmatmul.mubr.bf16.gmra.mxu0 %v4270
      %v4686 = vpop.f32.mrf.mxu0
      %v4687 = vadd.f32 %v4249, %v4686
      %v4688 = vpop.f32.mrf.mxu0
      %v4689 = vpop.f32.mrf.mxu0
      %v4690 = vadd.f32 %v4249, %v4689
      %v4691 = vpop.f32.mrf.mxu0
      %4692 = vmatprep.mubr.bf16.mxu0 0
      %4693 = vmatmul.mubr.bf16.gmra.mxu0 %v4273
      %v4694 = vpop.f32.mrf.mxu0
      %v4695 = vadd.f32 %v4249, %v4694
      %v4696 = vpop.f32.mrf.mxu0
      %v4697 = vpop.f32.mrf.mxu0
      %v4698 = vadd.f32 %v4249, %v4697
      %v4699 = vpop.f32.mrf.mxu0
      %4700 = vmatprep.mubr.bf16.mxu0 0
      %4701 = vmatmul.mubr.bf16.gmra.mxu0 %v4276
      %v4702 = vpop.f32.mrf.mxu0
      %v4703 = vadd.f32 %v4249, %v4702
      %v4704 = vpop.f32.mrf.mxu0
      %v4705 = vpop.f32.mrf.mxu0
      %v4706 = vadd.f32 %v4249, %v4705
      %v4707 = vpop.f32.mrf.mxu0
      %4708 = vmatprep.mubr.bf16.mxu0 0
      %4709 = vmatmul.mubr.bf16.gmra.mxu0 %v4279
      %v4710 = vpop.f32.mrf.mxu0
      %v4711 = vadd.f32 %v4249, %v4710
      %v4712 = vpop.f32.mrf.mxu0
      %v4713 = vpop.f32.mrf.mxu0
      %v4714 = vadd.f32 %v4249, %v4713
      %v4715 = vpop.f32.mrf.mxu0
      %4716 = vdwg.mxu0
      %v4717 = vsub.f32 0.0, %v4316
      %v4718 = vsub.f32 0.0, %v4318
      %v4719 = vsub.f32 0.0, %v4429
      %v4720 = vsub.f32 0.0, %v4431
      %v4721 = vsub.f32 0.0, %v4542
      %v4722 = vsub.f32 0.0, %v4544
      %v4723 = vsub.f32 0.0, %v4655
      %v4724 = vsub.f32 0.0, %v4320
      %v4725 = vsub.f32 0.0, %v4322
      %v4726 = vsub.f32 0.0, %v4433
      %v4727 = vsub.f32 0.0, %v4435
      %v4728 = vsub.f32 0.0, %v4546
      %v4729 = vsub.f32 0.0, %v4548
      %v4730 = vsub.f32 0.0, %v4658
      %v4731 = vsub.f32 0.0, %v4326
      %v4732 = vsub.f32 0.0, %v4328
      %v4733 = vsub.f32 0.0, %v4439
      %v4734 = vsub.f32 0.0, %v4441
      %v4735 = vsub.f32 0.0, %v4552
      %v4736 = vsub.f32 0.0, %v4554
      %v4737 = vsub.f32 0.0, %v4663
      %v4738 = vsub.f32 0.0, %v4330
      %v4739 = vsub.f32 0.0, %v4332
      %v4740 = vsub.f32 0.0, %v4443
      %v4741 = vsub.f32 0.0, %v4445
      %v4742 = vsub.f32 0.0, %v4556
      %v4743 = vsub.f32 0.0, %v4558
      %v4744 = vsub.f32 0.0, %v4666
      %v4745 = vsub.f32 0.0, %v4336
      %v4746 = vsub.f32 0.0, %v4338
      %v4747 = vsub.f32 0.0, %v4449
      %v4748 = vsub.f32 0.0, %v4451
      %v4749 = vsub.f32 0.0, %v4562
      %v4750 = vsub.f32 0.0, %v4564
      %v4751 = vsub.f32 0.0, %v4671
      %v4752 = vsub.f32 0.0, %v4340
      %v4753 = vsub.f32 0.0, %v4342
      %v4754 = vsub.f32 0.0, %v4453
      %v4755 = vsub.f32 0.0, %v4455
      %v4756 = vsub.f32 0.0, %v4566
      %v4757 = vsub.f32 0.0, %v4568
      %v4758 = vsub.f32 0.0, %v4674
      %v4759 = vsub.f32 0.0, %v4346
      %v4760 = vsub.f32 0.0, %v4348
      %v4761 = vsub.f32 0.0, %v4459
      %v4762 = vsub.f32 0.0, %v4461
      %v4763 = vsub.f32 0.0, %v4572
      %v4764 = vsub.f32 0.0, %v4574
      %v4765 = vsub.f32 0.0, %v4679
      %v4766 = vsub.f32 0.0, %v4350
      %v4767 = vsub.f32 0.0, %v4352
      %v4768 = vsub.f32 0.0, %v4463
      %v4769 = vsub.f32 0.0, %v4465
      %v4770 = vsub.f32 0.0, %v4576
      %v4771 = vsub.f32 0.0, %v4578
      %v4772 = vsub.f32 0.0, %v4682
      %v4773 = vsub.f32 0.0, %v4356
      %v4774 = vsub.f32 0.0, %v4358
      %v4775 = vsub.f32 0.0, %v4469
      %v4776 = vsub.f32 0.0, %v4471
      %v4777 = vsub.f32 0.0, %v4582
      %v4778 = vsub.f32 0.0, %v4584
      %v4779 = vsub.f32 0.0, %v4687
      %v4780 = vsub.f32 0.0, %v4360
      %v4781 = vsub.f32 0.0, %v4362
      %v4782 = vsub.f32 0.0, %v4473
      %v4783 = vsub.f32 0.0, %v4475
      %v4784 = vsub.f32 0.0, %v4586
      %v4785 = vsub.f32 0.0, %v4588
      %v4786 = vsub.f32 0.0, %v4690
      %v4787 = vsub.f32 0.0, %v4366
      %v4788 = vsub.f32 0.0, %v4368
      %v4789 = vsub.f32 0.0, %v4479
      %v4790 = vsub.f32 0.0, %v4481
      %v4791 = vsub.f32 0.0, %v4592
      %v4792 = vsub.f32 0.0, %v4594
      %v4793 = vsub.f32 0.0, %v4695
      %v4794 = vsub.f32 0.0, %v4370
      %v4795 = vsub.f32 0.0, %v4372
      %v4796 = vsub.f32 0.0, %v4483
      %v4797 = vsub.f32 0.0, %v4485
      %v4798 = vsub.f32 0.0, %v4596
      %v4799 = vsub.f32 0.0, %v4598
      %v4800 = vsub.f32 0.0, %v4698
      %v4801 = vsub.f32 0.0, %v4376
      %v4802 = vsub.f32 0.0, %v4378
      %v4803 = vsub.f32 0.0, %v4489
      %v4804 = vsub.f32 0.0, %v4491
      %v4805 = vsub.f32 0.0, %v4602
      %v4806 = vsub.f32 0.0, %v4604
      %v4807 = vsub.f32 0.0, %v4703
      %v4808 = vsub.f32 0.0, %v4380
      %v4809 = vsub.f32 0.0, %v4382
      %v4810 = vsub.f32 0.0, %v4493
      %v4811 = vsub.f32 0.0, %v4495
      %v4812 = vsub.f32 0.0, %v4606
      %v4813 = vsub.f32 0.0, %v4608
      %v4814 = vsub.f32 0.0, %v4706
      %v4815 = vsub.f32 0.0, %v4386
      %v4816 = vsub.f32 0.0, %v4388
      %v4817 = vsub.f32 0.0, %v4499
      %v4818 = vsub.f32 0.0, %v4501
      %v4819 = vsub.f32 0.0, %v4612
      %v4820 = vsub.f32 0.0, %v4614
      %v4821 = vsub.f32 0.0, %v4711
      %v4822 = vsub.f32 0.0, %v4390
      %v4823 = vsub.f32 0.0, %v4392
      %v4824 = vsub.f32 0.0, %v4503
      %v4825 = vsub.f32 0.0, %v4505
      %v4826 = vsub.f32 0.0, %v4616
      %v4827 = vsub.f32 0.0, %v4618
      %v4828 = vsub.f32 0.0, %v4714
      %v4829 = vmul.f32 %v4717, 1.442695
      %v4830 = vpow.pop %v4829
      %v4831 = vmul.f32 %v4718, 1.442695
      %v4832 = vpow.pop %v4831
      %v4833 = vmul.f32 %v4719, 1.442695
      %v4834 = vpow.pop %v4833
      %v4835 = vmul.f32 %v4720, 1.442695
      %v4836 = vpow.pop %v4835
      %v4837 = vmul.f32 %v4721, 1.442695
      %v4838 = vpow.pop %v4837
      %v4839 = vmul.f32 %v4722, 1.442695
      %v4840 = vpow.pop %v4839
      %v4841 = vmul.f32 %v4723, 1.442695
      %v4842 = vpow.pop %v4841
      %v4843 = vmul.f32 %v4724, 1.442695
      %v4844 = vpow.pop %v4843
      %v4845 = vmul.f32 %v4725, 1.442695
      %v4846 = vpow.pop %v4845
      %v4847 = vmul.f32 %v4726, 1.442695
      %v4848 = vpow.pop %v4847
      %v4849 = vmul.f32 %v4727, 1.442695
      %v4850 = vpow.pop %v4849
      %v4851 = vmul.f32 %v4728, 1.442695
      %v4852 = vpow.pop %v4851
      %v4853 = vmul.f32 %v4729, 1.442695
      %v4854 = vpow.pop %v4853
      %v4855 = vmul.f32 %v4730, 1.442695
      %v4856 = vpow.pop %v4855
      %v4857 = vmul.f32 %v4731, 1.442695
      %v4858 = vpow.pop %v4857
      %v4859 = vmul.f32 %v4732, 1.442695
      %v4860 = vpow.pop %v4859
      %v4861 = vmul.f32 %v4733, 1.442695
      %v4862 = vpow.pop %v4861
      %v4863 = vmul.f32 %v4734, 1.442695
      %v4864 = vpow.pop %v4863
      %v4865 = vmul.f32 %v4735, 1.442695
      %v4866 = vpow.pop %v4865
      %v4867 = vmul.f32 %v4736, 1.442695
      %v4868 = vpow.pop %v4867
      %v4869 = vmul.f32 %v4737, 1.442695
      %v4870 = vpow.pop %v4869
      %v4871 = vmul.f32 %v4738, 1.442695
      %v4872 = vpow.pop %v4871
      %v4873 = vmul.f32 %v4739, 1.442695
      %v4874 = vpow.pop %v4873
      %v4875 = vmul.f32 %v4740, 1.442695
      %v4876 = vpow.pop %v4875
      %v4877 = vmul.f32 %v4741, 1.442695
      %v4878 = vpow.pop %v4877
      %v4879 = vmul.f32 %v4742, 1.442695
      %v4880 = vpow.pop %v4879
      %v4881 = vmul.f32 %v4743, 1.442695
      %v4882 = vpow.pop %v4881
      %v4883 = vmul.f32 %v4744, 1.442695
      %v4884 = vpow.pop %v4883
      %v4885 = vmul.f32 %v4745, 1.442695
      %v4886 = vpow.pop %v4885
      %v4887 = vmul.f32 %v4746, 1.442695
      %v4888 = vpow.pop %v4887
      %v4889 = vmul.f32 %v4747, 1.442695
      %v4890 = vpow.pop %v4889
      %v4891 = vmul.f32 %v4748, 1.442695
      %v4892 = vpow.pop %v4891
      %v4893 = vmul.f32 %v4749, 1.442695
      %v4894 = vpow.pop %v4893
      %v4895 = vmul.f32 %v4750, 1.442695
      %v4896 = vpow.pop %v4895
      %v4897 = vmul.f32 %v4751, 1.442695
      %v4898 = vpow.pop %v4897
      %v4899 = vmul.f32 %v4752, 1.442695
      %v4900 = vpow.pop %v4899
      %v4901 = vmul.f32 %v4753, 1.442695
      %v4902 = vpow.pop %v4901
      %v4903 = vmul.f32 %v4754, 1.442695
      %v4904 = vpow.pop %v4903
      %v4905 = vmul.f32 %v4755, 1.442695
      %v4906 = vpow.pop %v4905
      %v4907 = vmul.f32 %v4756, 1.442695
      %v4908 = vpow.pop %v4907
      %v4909 = vmul.f32 %v4757, 1.442695
      %v4910 = vpow.pop %v4909
      %v4911 = vmul.f32 %v4758, 1.442695
      %v4912 = vpow.pop %v4911
      %v4913 = vmul.f32 %v4759, 1.442695
      %v4914 = vpow.pop %v4913
      %v4915 = vmul.f32 %v4760, 1.442695
      %v4916 = vpow.pop %v4915
      %v4917 = vmul.f32 %v4761, 1.442695
      %v4918 = vpow.pop %v4917
      %v4919 = vmul.f32 %v4762, 1.442695
      %v4920 = vpow.pop %v4919
      %v4921 = vmul.f32 %v4763, 1.442695
      %v4922 = vpow.pop %v4921
      %v4923 = vmul.f32 %v4764, 1.442695
      %v4924 = vpow.pop %v4923
      %v4925 = vmul.f32 %v4765, 1.442695
      %v4926 = vpow.pop %v4925
      %v4927 = vmul.f32 %v4766, 1.442695
      %v4928 = vpow.pop %v4927
      %v4929 = vmul.f32 %v4767, 1.442695
      %v4930 = vpow.pop %v4929
      %v4931 = vmul.f32 %v4768, 1.442695
      %v4932 = vpow.pop %v4931
      %v4933 = vmul.f32 %v4769, 1.442695
      %v4934 = vpow.pop %v4933
      %v4935 = vmul.f32 %v4770, 1.442695
      %v4936 = vpow.pop %v4935
      %v4937 = vmul.f32 %v4771, 1.442695
      %v4938 = vpow.pop %v4937
      %v4939 = vmul.f32 %v4772, 1.442695
      %v4940 = vpow.pop %v4939
      %v4941 = vmul.f32 %v4773, 1.442695
      %v4942 = vpow.pop %v4941
      %v4943 = vmul.f32 %v4774, 1.442695
      %v4944 = vpow.pop %v4943
      %v4945 = vmul.f32 %v4775, 1.442695
      %v4946 = vpow.pop %v4945
      %v4947 = vmul.f32 %v4776, 1.442695
      %v4948 = vpow.pop %v4947
      %v4949 = vmul.f32 %v4777, 1.442695
      %v4950 = vpow.pop %v4949
      %v4951 = vmul.f32 %v4778, 1.442695
      %v4952 = vpow.pop %v4951
      %v4953 = vmul.f32 %v4779, 1.442695
      %v4954 = vpow.pop %v4953
      %v4955 = vmul.f32 %v4780, 1.442695
      %v4956 = vpow.pop %v4955
      %v4957 = vmul.f32 %v4781, 1.442695
      %v4958 = vpow.pop %v4957
      %v4959 = vmul.f32 %v4782, 1.442695
      %v4960 = vpow.pop %v4959
      %v4961 = vmul.f32 %v4783, 1.442695
      %v4962 = vpow.pop %v4961
      %v4963 = vmul.f32 %v4784, 1.442695
      %v4964 = vpow.pop %v4963
      %v4965 = vmul.f32 %v4785, 1.442695
      %v4966 = vpow.pop %v4965
      %v4967 = vmul.f32 %v4786, 1.442695
      %v4968 = vpow.pop %v4967
      %v4969 = vmul.f32 %v4787, 1.442695
      %v4970 = vpow.pop %v4969
      %v4971 = vmul.f32 %v4788, 1.442695
      %v4972 = vpow.pop %v4971
      %v4973 = vmul.f32 %v4789, 1.442695
      %v4974 = vpow.pop %v4973
      %v4975 = vmul.f32 %v4790, 1.442695
      %v4976 = vpow.pop %v4975
      %v4977 = vmul.f32 %v4791, 1.442695
      %v4978 = vpow.pop %v4977
      %v4979 = vmul.f32 %v4792, 1.442695
      %v4980 = vpow.pop %v4979
      %v4981 = vmul.f32 %v4793, 1.442695
      %v4982 = vpow.pop %v4981
      %v4983 = vmul.f32 %v4794, 1.442695
      %v4984 = vpow.pop %v4983
      %v4985 = vmul.f32 %v4795, 1.442695
      %v4986 = vpow.pop %v4985
      %v4987 = vmul.f32 %v4796, 1.442695
      %v4988 = vpow.pop %v4987
      %v4989 = vmul.f32 %v4797, 1.442695
      %v4990 = vpow.pop %v4989
      %v4991 = vmul.f32 %v4798, 1.442695
      %v4992 = vpow.pop %v4991
      %v4993 = vmul.f32 %v4799, 1.442695
      %v4994 = vpow.pop %v4993
      %v4995 = vmul.f32 %v4800, 1.442695
      %v4996 = vpow.pop %v4995
      %v4997 = vmul.f32 %v4801, 1.442695
      %v4998 = vpow.pop %v4997
      %v4999 = vmul.f32 %v4802, 1.442695
      %v5000 = vpow.pop %v4999
      %v5001 = vmul.f32 %v4803, 1.442695
      %v5002 = vpow.pop %v5001
      %v5003 = vmul.f32 %v4804, 1.442695
      %v5004 = vpow.pop %v5003
      %v5005 = vmul.f32 %v4805, 1.442695
      %v5006 = vpow.pop %v5005
      %v5007 = vmul.f32 %v4806, 1.442695
      %v5008 = vpow.pop %v5007
      %v5009 = vmul.f32 %v4807, 1.442695
      %v5010 = vpow.pop %v5009
      %v5011 = vmul.f32 %v4808, 1.442695
      %v5012 = vpow.pop %v5011
      %v5013 = vmul.f32 %v4809, 1.442695
      %v5014 = vpow.pop %v5013
      %v5015 = vmul.f32 %v4810, 1.442695
      %v5016 = vpow.pop %v5015
      %v5017 = vmul.f32 %v4811, 1.442695
      %v5018 = vpow.pop %v5017
      %v5019 = vmul.f32 %v4812, 1.442695
      %v5020 = vpow.pop %v5019
      %v5021 = vmul.f32 %v4813, 1.442695
      %v5022 = vpow.pop %v5021
      %v5023 = vmul.f32 %v4814, 1.442695
      %v5024 = vpow.pop %v5023
      %v5025 = vmul.f32 %v4815, 1.442695
      %v5026 = vpow.pop %v5025
      %v5027 = vmul.f32 %v4816, 1.442695
      %v5028 = vpow.pop %v5027
      %v5029 = vmul.f32 %v4817, 1.442695
      %v5030 = vpow.pop %v5029
      %v5031 = vmul.f32 %v4818, 1.442695
      %v5032 = vpow.pop %v5031
      %v5033 = vmul.f32 %v4819, 1.442695
      %v5034 = vpow.pop %v5033
      %v5035 = vmul.f32 %v4820, 1.442695
      %v5036 = vpow.pop %v5035
      %v5037 = vmul.f32 %v4821, 1.442695
      %v5038 = vpow.pop %v5037
      %v5039 = vmul.f32 %v4822, 1.442695
      %v5040 = vpow.pop %v5039
      %v5041 = vmul.f32 %v4823, 1.442695
      %v5042 = vpow.pop %v5041
      %v5043 = vmul.f32 %v4824, 1.442695
      %v5044 = vpow.pop %v5043
      %v5045 = vmul.f32 %v4825, 1.442695
      %v5046 = vpow.pop %v5045
      %v5047 = vmul.f32 %v4826, 1.442695
      %v5048 = vpow.pop %v5047
      %v5049 = vmul.f32 %v4827, 1.442695
      %v5050 = vpow.pop %v5049
      %v5051 = vmul.f32 %v4828, 1.442695
      %v5052 = vpow.pop %v5051
      %v5053 = vadd.f32 %v4830, 1.0
      %v5054 = vadd.f32 %v4832, 1.0
      %v5055 = vadd.f32 %v4834, 1.0
      %v5056 = vadd.f32 %v4836, 1.0
      %v5057 = vadd.f32 %v4838, 1.0
      %v5058 = vadd.f32 %v4840, 1.0
      %v5059 = vadd.f32 %v4842, 1.0
      %v5060 = vadd.f32 %v4844, 1.0
      %v5061 = vadd.f32 %v4846, 1.0
      %v5062 = vadd.f32 %v4848, 1.0
      %v5063 = vadd.f32 %v4850, 1.0
      %v5064 = vadd.f32 %v4852, 1.0
      %v5065 = vadd.f32 %v4854, 1.0
      %v5066 = vadd.f32 %v4856, 1.0
      %v5067 = vadd.f32 %v4858, 1.0
      %v5068 = vadd.f32 %v4860, 1.0
      %v5069 = vadd.f32 %v4862, 1.0
      %v5070 = vadd.f32 %v4864, 1.0
      %v5071 = vadd.f32 %v4866, 1.0
      %v5072 = vadd.f32 %v4868, 1.0
      %v5073 = vadd.f32 %v4870, 1.0
      %v5074 = vadd.f32 %v4872, 1.0
      %v5075 = vadd.f32 %v4874, 1.0
      %v5076 = vadd.f32 %v4876, 1.0
      %v5077 = vadd.f32 %v4878, 1.0
      %v5078 = vadd.f32 %v4880, 1.0
      %v5079 = vadd.f32 %v4882, 1.0
      %v5080 = vadd.f32 %v4884, 1.0
      %v5081 = vadd.f32 %v4886, 1.0
      %v5082 = vadd.f32 %v4888, 1.0
      %v5083 = vadd.f32 %v4890, 1.0
      %v5084 = vadd.f32 %v4892, 1.0
      %v5085 = vadd.f32 %v4894, 1.0
      %v5086 = vadd.f32 %v4896, 1.0
      %v5087 = vadd.f32 %v4898, 1.0
      %v5088 = vadd.f32 %v4900, 1.0
      %v5089 = vadd.f32 %v4902, 1.0
      %v5090 = vadd.f32 %v4904, 1.0
      %v5091 = vadd.f32 %v4906, 1.0
      %v5092 = vadd.f32 %v4908, 1.0
      %v5093 = vadd.f32 %v4910, 1.0
      %v5094 = vadd.f32 %v4912, 1.0
      %v5095 = vadd.f32 %v4914, 1.0
      %v5096 = vadd.f32 %v4916, 1.0
      %v5097 = vadd.f32 %v4918, 1.0
      %v5098 = vadd.f32 %v4920, 1.0
      %v5099 = vadd.f32 %v4922, 1.0
      %v5100 = vadd.f32 %v4924, 1.0
      %v5101 = vadd.f32 %v4926, 1.0
      %v5102 = vadd.f32 %v4928, 1.0
      %v5103 = vadd.f32 %v4930, 1.0
      %v5104 = vadd.f32 %v4932, 1.0
      %v5105 = vadd.f32 %v4934, 1.0
      %v5106 = vadd.f32 %v4936, 1.0
      %v5107 = vadd.f32 %v4938, 1.0
      %v5108 = vadd.f32 %v4940, 1.0
      %v5109 = vadd.f32 %v4942, 1.0
      %v5110 = vadd.f32 %v4944, 1.0
      %v5111 = vadd.f32 %v4946, 1.0
      %v5112 = vadd.f32 %v4948, 1.0
      %v5113 = vadd.f32 %v4950, 1.0
      %v5114 = vadd.f32 %v4952, 1.0
      %v5115 = vadd.f32 %v4954, 1.0
      %v5116 = vadd.f32 %v4956, 1.0
      %v5117 = vadd.f32 %v4958, 1.0
      %v5118 = vadd.f32 %v4960, 1.0
      %v5119 = vadd.f32 %v4962, 1.0
      %v5120 = vadd.f32 %v4964, 1.0
      %v5121 = vadd.f32 %v4966, 1.0
      %v5122 = vadd.f32 %v4968, 1.0
      %v5123 = vadd.f32 %v4970, 1.0
      %v5124 = vadd.f32 %v4972, 1.0
      %v5125 = vadd.f32 %v4974, 1.0
      %v5126 = vadd.f32 %v4976, 1.0
      %v5127 = vadd.f32 %v4978, 1.0
      %v5128 = vadd.f32 %v4980, 1.0
      %v5129 = vadd.f32 %v4982, 1.0
      %v5130 = vadd.f32 %v4984, 1.0
      %v5131 = vadd.f32 %v4986, 1.0
      %v5132 = vadd.f32 %v4988, 1.0
      %v5133 = vadd.f32 %v4990, 1.0
      %v5134 = vadd.f32 %v4992, 1.0
      %v5135 = vadd.f32 %v4994, 1.0
      %v5136 = vadd.f32 %v4996, 1.0
      %v5137 = vadd.f32 %v4998, 1.0
      %v5138 = vadd.f32 %v5000, 1.0
      %v5139 = vadd.f32 %v5002, 1.0
      %v5140 = vadd.f32 %v5004, 1.0
      %v5141 = vadd.f32 %v5006, 1.0
      %v5142 = vadd.f32 %v5008, 1.0
      %v5143 = vadd.f32 %v5010, 1.0
      %v5144 = vadd.f32 %v5012, 1.0
      %v5145 = vadd.f32 %v5014, 1.0
      %v5146 = vadd.f32 %v5016, 1.0
      %v5147 = vadd.f32 %v5018, 1.0
      %v5148 = vadd.f32 %v5020, 1.0
      %v5149 = vadd.f32 %v5022, 1.0
      %v5150 = vadd.f32 %v5024, 1.0
      %v5151 = vadd.f32 %v5026, 1.0
      %v5152 = vadd.f32 %v5028, 1.0
      %v5153 = vadd.f32 %v5030, 1.0
      %v5154 = vadd.f32 %v5032, 1.0
      %v5155 = vadd.f32 %v5034, 1.0
      %v5156 = vadd.f32 %v5036, 1.0
      %v5157 = vadd.f32 %v5038, 1.0
      %v5158 = vadd.f32 %v5040, 1.0
      %v5159 = vadd.f32 %v5042, 1.0
      %v5160 = vadd.f32 %v5044, 1.0
      %v5161 = vadd.f32 %v5046, 1.0
      %v5162 = vadd.f32 %v5048, 1.0
      %v5163 = vadd.f32 %v5050, 1.0
      %v5164 = vadd.f32 %v5052, 1.0
      %v5165 = vrcp.pop %v5053
      %v5166 = vrcp.pop %v5054
      %v5167 = vrcp.pop %v5055
      %v5168 = vrcp.pop %v5056
      %v5169 = vrcp.pop %v5057
      %v5170 = vrcp.pop %v5058
      %v5171 = vrcp.pop %v5059
      %v5172 = vrcp.pop %v5060
      %v5173 = vrcp.pop %v5061
      %v5174 = vrcp.pop %v5062
      %v5175 = vrcp.pop %v5063
      %v5176 = vrcp.pop %v5064
      %v5177 = vrcp.pop %v5065
      %v5178 = vrcp.pop %v5066
      %v5179 = vrcp.pop %v5067
      %v5180 = vrcp.pop %v5068
      %v5181 = vrcp.pop %v5069
      %v5182 = vrcp.pop %v5070
      %v5183 = vrcp.pop %v5071
      %v5184 = vrcp.pop %v5072
      %v5185 = vrcp.pop %v5073
      %v5186 = vrcp.pop %v5074
      %v5187 = vrcp.pop %v5075
      %v5188 = vrcp.pop %v5076
      %v5189 = vrcp.pop %v5077
      %v5190 = vrcp.pop %v5078
      %v5191 = vrcp.pop %v5079
      %v5192 = vrcp.pop %v5080
      %v5193 = vrcp.pop %v5081
      %v5194 = vrcp.pop %v5082
      %v5195 = vrcp.pop %v5083
      %v5196 = vrcp.pop %v5084
      %v5197 = vrcp.pop %v5085
      %v5198 = vrcp.pop %v5086
      %v5199 = vrcp.pop %v5087
      %v5200 = vrcp.pop %v5088
      %v5201 = vrcp.pop %v5089
      %v5202 = vrcp.pop %v5090
      %v5203 = vrcp.pop %v5091
      %v5204 = vrcp.pop %v5092
      %v5205 = vrcp.pop %v5093
      %v5206 = vrcp.pop %v5094
      %v5207 = vrcp.pop %v5095
      %v5208 = vrcp.pop %v5096
      %v5209 = vrcp.pop %v5097
      %v5210 = vrcp.pop %v5098
      %v5211 = vrcp.pop %v5099
      %v5212 = vrcp.pop %v5100
      %v5213 = vrcp.pop %v5101
      %v5214 = vrcp.pop %v5102
      %v5215 = vrcp.pop %v5103
      %v5216 = vrcp.pop %v5104
      %v5217 = vrcp.pop %v5105
      %v5218 = vrcp.pop %v5106
      %v5219 = vrcp.pop %v5107
      %v5220 = vrcp.pop %v5108
      %v5221 = vrcp.pop %v5109
      %v5222 = vrcp.pop %v5110
      %v5223 = vrcp.pop %v5111
      %v5224 = vrcp.pop %v5112
      %v5225 = vrcp.pop %v5113
      %v5226 = vrcp.pop %v5114
      %v5227 = vrcp.pop %v5115
      %v5228 = vrcp.pop %v5116
      %v5229 = vrcp.pop %v5117
      %v5230 = vrcp.pop %v5118
      %v5231 = vrcp.pop %v5119
      %v5232 = vrcp.pop %v5120
      %v5233 = vrcp.pop %v5121
      %v5234 = vrcp.pop %v5122
      %v5235 = vrcp.pop %v5123
      %v5236 = vrcp.pop %v5124
      %v5237 = vrcp.pop %v5125
      %v5238 = vrcp.pop %v5126
      %v5239 = vrcp.pop %v5127
      %v5240 = vrcp.pop %v5128
      %v5241 = vrcp.pop %v5129
      %v5242 = vrcp.pop %v5130
      %v5243 = vrcp.pop %v5131
      %v5244 = vrcp.pop %v5132
      %v5245 = vrcp.pop %v5133
      %v5246 = vrcp.pop %v5134
      %v5247 = vrcp.pop %v5135
      %v5248 = vrcp.pop %v5136
      %v5249 = vrcp.pop %v5137
      %v5250 = vrcp.pop %v5138
      %v5251 = vrcp.pop %v5139
      %v5252 = vrcp.pop %v5140
      %v5253 = vrcp.pop %v5141
      %v5254 = vrcp.pop %v5142
      %v5255 = vrcp.pop %v5143
      %v5256 = vrcp.pop %v5144
      %v5257 = vrcp.pop %v5145
      %v5258 = vrcp.pop %v5146
      %v5259 = vrcp.pop %v5147
      %v5260 = vrcp.pop %v5148
      %v5261 = vrcp.pop %v5149
      %v5262 = vrcp.pop %v5150
      %v5263 = vrcp.pop %v5151
      %v5264 = vrcp.pop %v5152
      %v5265 = vrcp.pop %v5153
      %v5266 = vrcp.pop %v5154
      %v5267 = vrcp.pop %v5155
      %v5268 = vrcp.pop %v5156
      %v5269 = vrcp.pop %v5157
      %v5270 = vrcp.pop %v5158
      %v5271 = vrcp.pop %v5159
      %v5272 = vrcp.pop %v5160
      %v5273 = vrcp.pop %v5161
      %v5274 = vrcp.pop %v5162
      %v5275 = vrcp.pop %v5163
      %v5276 = vrcp.pop %v5164
      %5277 = vst [vmem:[%s1143] sm:$0xff] %v5165
      %5278 = vst [vmem:[%s1143 + $0x8] sm:$0xff] %v5166
      %5279 = vst [vmem:[%s1143 + $0x10] sm:$0xff] %v5167
      %5280 = vst [vmem:[%s1143 + $0x18] sm:$0xff] %v5168
      %5281 = vst [vmem:[%s1143 + $0x20] sm:$0xff] %v5169
      %5282 = vst [vmem:[%s1143 + $0x28] sm:$0xff] %v5170
      %5283 = vst.msk [vmem:[%s1143 + $0x30] sm:$0xff] %vm1486, %v5171
      %5284 = vst [vmem:[%s1143 + $0x38] sm:$0xff] %v5172
      %5285 = vst [vmem:[%s1143 + $0x40] sm:$0xff] %v5173
      %5286 = vst [vmem:[%s1143 + $0x48] sm:$0xff] %v5174
      %5287 = vst [vmem:[%s1143 + $0x50] sm:$0xff] %v5175
      %5288 = vst [vmem:[%s1143 + $0x58] sm:$0xff] %v5176
      %5289 = vst [vmem:[%s1143 + $0x60] sm:$0xff] %v5177
      %5290 = vst.msk [vmem:[%s1143 + $0x68] sm:$0xff] %vm1486, %v5178
      %5291 = vst [vmem:[%s1143 + $0x70] sm:$0xff] %v5179
      %5292 = vst [vmem:[%s1143 + $0x78] sm:$0xff] %v5180
      %5293 = vst [vmem:[%s1143 + $0x80] sm:$0xff] %v5181
      %5294 = vst [vmem:[%s1143 + $0x88] sm:$0xff] %v5182
      %5295 = vst [vmem:[%s1143 + $0x90] sm:$0xff] %v5183
      %5296 = vst [vmem:[%s1143 + $0x98] sm:$0xff] %v5184
      %5297 = vst.msk [vmem:[%s1143 + $0xa0] sm:$0xff] %vm1486, %v5185
      %5298 = vst [vmem:[%s1143 + $0xa8] sm:$0xff] %v5186
      %5299 = vst [vmem:[%s1143 + $0xb0] sm:$0xff] %v5187
      %5300 = vst [vmem:[%s1143 + $0xb8] sm:$0xff] %v5188
      %5301 = vst [vmem:[%s1143 + $0xc0] sm:$0xff] %v5189
      %5302 = vst [vmem:[%s1143 + $0xc8] sm:$0xff] %v5190
      %5303 = vst [vmem:[%s1143 + $0xd0] sm:$0xff] %v5191
      %5304 = vst.msk [vmem:[%s1143 + $0xd8] sm:$0xff] %vm1486, %v5192
      %5305 = vst [vmem:[%s1143 + $0xe0] sm:$0xff] %v5193
      %5306 = vst [vmem:[%s1143 + $0xe8] sm:$0xff] %v5194
      %5307 = vst [vmem:[%s1143 + $0xf0] sm:$0xff] %v5195
      %5308 = vst [vmem:[%s1143 + $0xf8] sm:$0xff] %v5196
      %5309 = vst [vmem:[%s1143 + $0x100] sm:$0xff] %v5197
      %5310 = vst [vmem:[%s1143 + $0x108] sm:$0xff] %v5198
      %5311 = vst.msk [vmem:[%s1143 + $0x110] sm:$0xff] %vm1486, %v5199
      %5312 = vst [vmem:[%s1143 + $0x118] sm:$0xff] %v5200
      %5313 = vst [vmem:[%s1143 + $0x120] sm:$0xff] %v5201
      %5314 = vst [vmem:[%s1143 + $0x128] sm:$0xff] %v5202
      %5315 = vst [vmem:[%s1143 + $0x130] sm:$0xff] %v5203
      %5316 = vst [vmem:[%s1143 + $0x138] sm:$0xff] %v5204
      %5317 = vst [vmem:[%s1143 + $0x140] sm:$0xff] %v5205
      %5318 = vst.msk [vmem:[%s1143 + $0x148] sm:$0xff] %vm1486, %v5206
      %5319 = vst [vmem:[%s1143 + $0x150] sm:$0xff] %v5207
      %5320 = vst [vmem:[%s1143 + $0x158] sm:$0xff] %v5208
      %5321 = vst [vmem:[%s1143 + $0x160] sm:$0xff] %v5209
      %5322 = vst [vmem:[%s1143 + $0x168] sm:$0xff] %v5210
      %5323 = vst [vmem:[%s1143 + $0x170] sm:$0xff] %v5211
      %5324 = vst [vmem:[%s1143 + $0x178] sm:$0xff] %v5212
      %5325 = vst.msk [vmem:[%s1143 + $0x180] sm:$0xff] %vm1486, %v5213
      %5326 = vst [vmem:[%s1143 + $0x188] sm:$0xff] %v5214
      %5327 = vst [vmem:[%s1143 + $0x190] sm:$0xff] %v5215
      %5328 = vst [vmem:[%s1143 + $0x198] sm:$0xff] %v5216
      %5329 = vst [vmem:[%s1143 + $0x1a0] sm:$0xff] %v5217
      %5330 = vst [vmem:[%s1143 + $0x1a8] sm:$0xff] %v5218
      %5331 = vst [vmem:[%s1143 + $0x1b0] sm:$0xff] %v5219
      %5332 = vst.msk [vmem:[%s1143 + $0x1b8] sm:$0xff] %vm1486, %v5220
      %5333 = vst [vmem:[%s1143 + $0x1c0] sm:$0xff] %v5221
      %5334 = vst [vmem:[%s1143 + $0x1c8] sm:$0xff] %v5222
      %5335 = vst [vmem:[%s1143 + $0x1d0] sm:$0xff] %v5223
      %5336 = vst [vmem:[%s1143 + $0x1d8] sm:$0xff] %v5224
      %5337 = vst [vmem:[%s1143 + $0x1e0] sm:$0xff] %v5225
      %5338 = vst [vmem:[%s1143 + $0x1e8] sm:$0xff] %v5226
      %5339 = vst.msk [vmem:[%s1143 + $0x1f0] sm:$0xff] %vm1486, %v5227
      %5340 = vst [vmem:[%s1143 + $0x1f8] sm:$0xff] %v5228
      %5341 = vst [vmem:[%s1143 + $0x200] sm:$0xff] %v5229
      %5342 = vst [vmem:[%s1143 + $0x208] sm:$0xff] %v5230
      %5343 = vst [vmem:[%s1143 + $0x210] sm:$0xff] %v5231
      %5344 = vst [vmem:[%s1143 + $0x218] sm:$0xff] %v5232
      %5345 = vst [vmem:[%s1143 + $0x220] sm:$0xff] %v5233
      %5346 = vst.msk [vmem:[%s1143 + $0x228] sm:$0xff] %vm1486, %v5234
      %5347 = vst [vmem:[%s1143 + $0x230] sm:$0xff] %v5235
      %5348 = vst [vmem:[%s1143 + $0x238] sm:$0xff] %v5236
      %5349 = vst [vmem:[%s1143 + $0x240] sm:$0xff] %v5237
      %5350 = vst [vmem:[%s1143 + $0x248] sm:$0xff] %v5238
      %5351 = vst [vmem:[%s1143 + $0x250] sm:$0xff] %v5239
      %5352 = vst [vmem:[%s1143 + $0x258] sm:$0xff] %v5240
      %5353 = vst.msk [vmem:[%s1143 + $0x260] sm:$0xff] %vm1486, %v5241
      %5354 = vst [vmem:[%s1143 + $0x268] sm:$0xff] %v5242
      %5355 = vst [vmem:[%s1143 + $0x270] sm:$0xff] %v5243
      %5356 = vst [vmem:[%s1143 + $0x278] sm:$0xff] %v5244
      %5357 = vst [vmem:[%s1143 + $0x280] sm:$0xff] %v5245
      %5358 = vst [vmem:[%s1143 + $0x288] sm:$0xff] %v5246
      %5359 = vst [vmem:[%s1143 + $0x290] sm:$0xff] %v5247
      %5360 = vst.msk [vmem:[%s1143 + $0x298] sm:$0xff] %vm1486, %v5248
      %5361 = vst [vmem:[%s1143 + $0x2a0] sm:$0xff] %v5249
      %5362 = vst [vmem:[%s1143 + $0x2a8] sm:$0xff] %v5250
      %5363 = vst [vmem:[%s1143 + $0x2b0] sm:$0xff] %v5251
      %5364 = vst [vmem:[%s1143 + $0x2b8] sm:$0xff] %v5252
      %5365 = vst [vmem:[%s1143 + $0x2c0] sm:$0xff] %v5253
      %5366 = vst [vmem:[%s1143 + $0x2c8] sm:$0xff] %v5254
      %5367 = vst.msk [vmem:[%s1143 + $0x2d0] sm:$0xff] %vm1486, %v5255
      %5368 = vst [vmem:[%s1143 + $0x2d8] sm:$0xff] %v5256
      %5369 = vst [vmem:[%s1143 + $0x2e0] sm:$0xff] %v5257
      %5370 = vst [vmem:[%s1143 + $0x2e8] sm:$0xff] %v5258
      %5371 = vst [vmem:[%s1143 + $0x2f0] sm:$0xff] %v5259
      %5372 = vst [vmem:[%s1143 + $0x2f8] sm:$0xff] %v5260
      %5373 = vst [vmem:[%s1143 + $0x300] sm:$0xff] %v5261
      %5374 = vst.msk [vmem:[%s1143 + $0x308] sm:$0xff] %vm1486, %v5262
      %5375 = vst [vmem:[%s1143 + $0x310] sm:$0xff] %v5263
      %5376 = vst [vmem:[%s1143 + $0x318] sm:$0xff] %v5264
      %5377 = vst [vmem:[%s1143 + $0x320] sm:$0xff] %v5265
      %5378 = vst [vmem:[%s1143 + $0x328] sm:$0xff] %v5266
      %5379 = vst [vmem:[%s1143 + $0x330] sm:$0xff] %v5267
      %5380 = vst [vmem:[%s1143 + $0x338] sm:$0xff] %v5268
      %5381 = vst.msk [vmem:[%s1143 + $0x340] sm:$0xff] %vm1486, %v5269
      %5382 = vst [vmem:[%s1143 + $0x348] sm:$0xff] %v5270
      %5383 = vst [vmem:[%s1143 + $0x350] sm:$0xff] %v5271
      %5384 = vst [vmem:[%s1143 + $0x358] sm:$0xff] %v5272
      %5385 = vst [vmem:[%s1143 + $0x360] sm:$0xff] %v5273
      %5386 = vst [vmem:[%s1143 + $0x368] sm:$0xff] %v5274
      %5387 = vst [vmem:[%s1143 + $0x370] sm:$0xff] %v5275
      %5388 = vst.msk [vmem:[%s1143 + $0x378] sm:$0xff] %vm1486, %v5276
      %5389 = vst.msk [vmem:[%s1149] sm:$0xff] %vm1486, %v2690
      %5390 = vst.msk [vmem:[%s1149 + $0x8] sm:$0xff] %vm1486, %v2691
      %5391 = vst.msk [vmem:[%s1149 + $0x10] sm:$0xff] %vm1486, %v2692
      %5392 = vst.msk [vmem:[%s1149 + $0x18] sm:$0xff] %vm1486, %v2693
      %5393 = vst.msk [vmem:[%s1149 + $0x20] sm:$0xff] %vm1486, %v2694
      %5394 = vst.msk [vmem:[%s1149 + $0x28] sm:$0xff] %vm1486, %v2695
      %5395 = vst.msk [vmem:[%s1149 + $0x30] sm:$0xff] %vm1486, %v2696
      %5396 = vst.msk [vmem:[%s1149 + $0x38] sm:$0xff] %vm1486, %v2697
      %5397 = vst.msk [vmem:[%s1149 + $0x40] sm:$0xff] %vm1486, %v2698
      %5398 = vst.msk [vmem:[%s1149 + $0x48] sm:$0xff] %vm1486, %v2699
      %5399 = vst.msk [vmem:[%s1149 + $0x50] sm:$0xff] %vm1486, %v2700
      %5400 = vst.msk [vmem:[%s1149 + $0x58] sm:$0xff] %vm1486, %v2701
      %5401 = vst.msk [vmem:[%s1149 + $0x60] sm:$0xff] %vm1486, %v2702
      %5402 = vst.msk [vmem:[%s1149 + $0x68] sm:$0xff] %vm1486, %v2703
      %5403 = vst.msk [vmem:[%s1149 + $0x70] sm:$0xff] %vm1486, %v2704
      %5404 = vst.msk [vmem:[%s1149 + $0x78] sm:$0xff] %vm1486, %v2705
      %5405 = vst.msk [vmem:[%s1155] sm:$0xff] %vm1486, %v2816
      %5406 = vst.msk [vmem:[%s1155 + $0x8] sm:$0xff] %vm1486, %v2817
      %5407 = vst.msk [vmem:[%s1155 + $0x10] sm:$0xff] %vm1486, %v2818
      %5408 = vst.msk [vmem:[%s1155 + $0x18] sm:$0xff] %vm1486, %v2819
      %5409 = vst.msk [vmem:[%s1155 + $0x20] sm:$0xff] %vm1486, %v2820
      %5410 = vst.msk [vmem:[%s1155 + $0x28] sm:$0xff] %vm1486, %v2821
      %5411 = vst.msk [vmem:[%s1155 + $0x30] sm:$0xff] %vm1486, %v2822
      %5412 = vst.msk [vmem:[%s1155 + $0x38] sm:$0xff] %vm1486, %v2823
      %5413 = vst.msk [vmem:[%s1155 + $0x40] sm:$0xff] %vm1486, %v2824
      %5414 = vst.msk [vmem:[%s1155 + $0x48] sm:$0xff] %vm1486, %v2825
      %5415 = vst.msk [vmem:[%s1155 + $0x50] sm:$0xff] %vm1486, %v2826
      %5416 = vst.msk [vmem:[%s1155 + $0x58] sm:$0xff] %vm1486, %v2827
      %5417 = vst.msk [vmem:[%s1155 + $0x60] sm:$0xff] %vm1486, %v2828
      %5418 = vst.msk [vmem:[%s1155 + $0x68] sm:$0xff] %vm1486, %v2829
      %5419 = vst.msk [vmem:[%s1155 + $0x70] sm:$0xff] %vm1486, %v2830
      %5420 = vst.msk [vmem:[%s1155 + $0x78] sm:$0xff] %vm1486, %v2831
      %5421 = vst.msk [vmem:[%s1161] sm:$0xff] %vm2942, %v3103
      %5422 = vst.msk [vmem:[%s1161 + $0x8] sm:$0xff] %vm2942, %v3104
      %5423 = vst.msk [vmem:[%s1161 + $0x10] sm:$0xff] %vm2942, %v3105
      %5424 = vst.msk [vmem:[%s1161 + $0x18] sm:$0xff] %vm2942, %v3106
      %5425 = vst.msk [vmem:[%s1161 + $0x20] sm:$0xff] %vm2942, %v3107
      %5426 = vst.msk [vmem:[%s1161 + $0x28] sm:$0xff] %vm2942, %v3108
      %5427 = vst.msk [vmem:[%s1161 + $0x30] sm:$0xff] %vm2942, %v3109
      %5428 = vst.msk [vmem:[%s1161 + $0x38] sm:$0xff] %vm2942, %v3110
      %5429 = vst.msk [vmem:[%s1161 + $0x40] sm:$0xff] %vm2942, %v3111
      %5430 = vst.msk [vmem:[%s1161 + $0x48] sm:$0xff] %vm2942, %v3112
      %5431 = vst.msk [vmem:[%s1161 + $0x50] sm:$0xff] %vm2942, %v3113
      %5432 = vst.msk [vmem:[%s1161 + $0x58] sm:$0xff] %vm2942, %v3114
      %5433 = vst.msk [vmem:[%s1161 + $0x60] sm:$0xff] %vm2942, %v3115
      %5434 = vst.msk [vmem:[%s1161 + $0x68] sm:$0xff] %vm2942, %v3116
      %5435 = vst.msk [vmem:[%s1161 + $0x70] sm:$0xff] %vm2942, %v3117
      %5436 = vst.msk [vmem:[%s1161 + $0x78] sm:$0xff] %vm2942, %v3118
      %s5437 = smul.u32 16, %s83
      %p5438 = scmp.lt.s32.totalorder %s5437, 31
      %s5439 = scalar_select %p5438, %s5437, 31
      %s5440 = smul.addr %s5439, 7
      %s5441 = smul.addr %s5440, 8
      %s5442 = scalar_lea.vmem %s65, %s5441
      %s5443 = smul.u32 16, %s83
      %p5444 = scmp.lt.s32.totalorder %s5443, 31
      %s5445 = scalar_select %p5444, %s5443, 31
      %s5446 = smul.addr %s5445, 8
      %s5447 = scalar_lea.vmem %s67, %s5446
      %s5448 = smul.u32 16, %s83
      %p5449 = scmp.lt.s32.totalorder %s5448, 31
      %s5450 = scalar_select %p5449, %s5448, 31
      %s5451 = smul.addr %s5450, 8
      %s5452 = scalar_lea.vmem %s69, %s5451
      %s5453 = smul.u32 16, %s83
      %p5454 = scmp.lt.s32.totalorder %s5453, 31
      %s5455 = scalar_select %p5454, %s5453, 31
      %s5456 = smul.addr %s5455, 8
      %s5457 = scalar_lea.vmem %s71, %s5456
      // Predicated region
      $region149: #{m2_forward.1} parent=147 // pred_check
        %p5458 = pneg %p788
      $region150: #{m2_forward.1} parent=147 // pred_check_branch
        %5460 = sbr.rel (%p5458) target = $region152
      $region151: #{m2_forward.1} parent=147 // pred_region
        %s5461 = smul.u32 16, %s83
      $region152: #{m2_forward.1} parent=147 // pred_fallthru
        _
      // Predicated region
      $region153: #{m2_forward.1} parent=147 // pred_check
        %p5462 = pneg %p814
      $region154: #{m2_forward.1} parent=147 // pred_check_branch
        %5464 = sbr.rel (%p5462) target = $region156
      $region155: #{m2_forward.1} parent=147 // pred_region
        %s5465 = smul.u32 16, %s83
      $region156: #{m2_forward.1} parent=147 // pred_fallthru
        _
      // Predicated region
      $region157: #{m2_forward.1} parent=147 // pred_check
        %p5466 = pneg %p840
      $region158: #{m2_forward.1} parent=147 // pred_check_branch
        %5468 = sbr.rel (%p5466) target = $region160
      $region159: #{m2_forward.1} parent=147 // pred_region
        %s5469 = smul.u32 16, %s83
      $region160: #{m2_forward.1} parent=147 // pred_fallthru
        _
      // Predicated region
      $region161: #{m2_forward.1} parent=147 // pred_check
        %p5470 = pneg %p866
      $region162: #{m2_forward.1} parent=147 // pred_check_branch
        %5472 = sbr.rel (%p5470) target = $region164
      $region163: #{m2_forward.1} parent=147 // pred_region
        %s5473 = smul.u32 16, %s83
      $region164: #{m2_forward.1} parent=147 // pred_fallthru
        _
    $region148: #{m2_forward.1} parent=5 // pred_fallthru
      _
    %p5474 = scmp.le.s32.totalorder 2, %s78
    // Predicated region
    $region165: #{m2_forward.1} parent=5 // pred_check
      %p5475 = pneg %p5474
    $region166: #{m2_forward.1} parent=5 // pred_check_branch
      %5477 = sbr.rel (%p5475) target = $region168
    $region167: #{m2_forward.1} parent=5 // pred_region
      %s5478 = ssub.s32 %s78, 2
      // Predicated region
      $region169: #{m2_forward.1} parent=167 // pred_check
        %p5479 = pneg %p794
      $region170: #{m2_forward.1} parent=167 // pred_check_branch
        %5481 = sbr.rel (%p5479) target = $region172
      $region171: #{m2_forward.1} parent=167 // pred_region
        %s5482 = smul.u32 16, %s84
        %p5483 = scmp.lt.s32.totalorder %s5482, 31
        %s5484 = scalar_select %p5483, %s5482, 31
        %s5485 = smul.addr %s5484, 7
        %s5486 = smul.addr %s5485, 8
        %s5487 = scalar_lea.vmem %s65, %s5486
      $region172: #{m2_forward.1} parent=167 // pred_fallthru
        _
      // Predicated region
      $region173: #{m2_forward.1} parent=167 // pred_check
        %p5488 = pneg %p820
      $region174: #{m2_forward.1} parent=167 // pred_check_branch
        %5490 = sbr.rel (%p5488) target = $region176
      $region175: #{m2_forward.1} parent=167 // pred_region
        %s5491 = smul.u32 16, %s84
        %p5492 = scmp.lt.s32.totalorder %s5491, 31
        %s5493 = scalar_select %p5492, %s5491, 31
        %s5494 = smul.addr %s5493, 8
        %s5495 = scalar_lea.vmem %s67, %s5494
      $region176: #{m2_forward.1} parent=167 // pred_fallthru
        _
      // Predicated region
      $region177: #{m2_forward.1} parent=167 // pred_check
        %p5496 = pneg %p846
      $region178: #{m2_forward.1} parent=167 // pred_check_branch
        %5498 = sbr.rel (%p5496) target = $region180
      $region179: #{m2_forward.1} parent=167 // pred_region
        %s5499 = smul.u32 16, %s84
        %p5500 = scmp.lt.s32.totalorder %s5499, 31
        %s5501 = scalar_select %p5500, %s5499, 31
        %s5502 = smul.addr %s5501, 8
        %s5503 = scalar_lea.vmem %s69, %s5502
      $region180: #{m2_forward.1} parent=167 // pred_fallthru
        _
      // Predicated region
      $region181: #{m2_forward.1} parent=167 // pred_check
        %p5504 = pneg %p872
      $region182: #{m2_forward.1} parent=167 // pred_check_branch
        %5506 = sbr.rel (%p5504) target = $region184
      $region183: #{m2_forward.1} parent=167 // pred_region
        %s5507 = smul.u32 16, %s84
        %p5508 = scmp.lt.s32.totalorder %s5507, 31
        %s5509 = scalar_select %p5508, %s5507, 31
        %s5510 = smul.addr %s5509, 8
        %s5511 = scalar_lea.vmem %s71, %s5510
      $region184: #{m2_forward.1} parent=167 // pred_fallthru
        _
    $region168: #{m2_forward.1} parent=5 // pred_fallthru
      _
  $region6: #{m2_forward.1} parent=0 // loop_footer
    %s82 = sadd.s32 1, %s78
  $region7: #{m2_forward.1} parent=0 // loop_footer_branch
    %77 = sbr.rel target = $region3
  $region8: #{m2_forward.1} parent=0 // loop_exit
    _

</llo_original>
